<compile_context>
chip_gen: v7x
topology: tpu7x:2x2x1
jax: 0.10.0
libtpu: 0.0.40
codegen_flags: <defaults>
</compile_context>

<pallas_src>
import jax
import jax.numpy as jnp
from jax.experimental import pallas as pl
from jax.experimental.pallas import tpu as pltpu


# ---------------------------------------------------------------------------
# Layer-size bookkeeping (mirrors Model1.__init__)
# ---------------------------------------------------------------------------
def model1_layer_dims(cll_in, drug_in):
    ccl_dims = [
        (cll_in, int(cll_in * 0.5)),
        (int(cll_in * 0.5), int(cll_in * 0.25)),
        (int(cll_in * 0.25), int(cll_in * 0.125)),
        (int(cll_in * 0.125), int(cll_in * 0.0625)),
    ]
    drug_dims = [
        (drug_in, drug_in - 100),
        (drug_in - 100, drug_in - 200),
        (drug_in - 200, int((drug_in - 200) * 0.5)),
    ]
    concat_in = int(cll_in * 0.0625) + int((drug_in - 200) * 0.5)
    concat_dims = [
        (concat_in, 1000),
        (1000, 500),
        (500, 250),
        (250, 1),
    ]
    return ccl_dims + drug_dims + concat_dims  # 11 layers total


def _round_up(x, m):
    return ((x + m - 1) // m) * m


def _cdiv(a, b):
    return -(-a // b)


def _pad2d(a, rows, cols):
    return jnp.pad(a, ((0, rows - a.shape[0]), (0, cols - a.shape[1])))


# ---------------------------------------------------------------------------
# Fused Pallas kernel: whole forward pass in VMEM per batch tile.
# Param ref order (fused-concat mode, 22 param refs):
#   [W1c,b1c, W2c,b2c, W3c,b3c, W4c,b4c,          # ccl tower (bf16 W, f32 b)
#    W1d,b1d, W2d,b2d, W3d,b3d,                   # drug tower (W3d lane-shifted)
#    W7p, b7,                                     # 128-row-padded concat layer
#    W8,b8, W9,b9, W10,b10]                       # rest of concat head
# (split mode inserts W7_ccl, W7_drug, b7 instead of W7p, b7)
# ---------------------------------------------------------------------------
def _make_kernel(fuse_concat):
    def kernel(ccl_ref, drug_ref, *refs):
        p = refs[:-1]
        out_ref = refs[-1]

        def lin(x, w_ref, b_ref, relu=True):
            # bf16 MXU dot, f32 accumulate, f32 bias-add / ReLU.
            y = jnp.dot(x.astype(jnp.bfloat16), w_ref[...],
                        preferred_element_type=jnp.float32) + b_ref[...]
            return jnp.maximum(y, 0.0) if relu else y

        # ccl tower: 4 x (Linear -> ReLU)
        x_c = ccl_ref[...]
        for i in range(4):
            x_c = lin(x_c, p[2 * i], p[2 * i + 1])

        # drug tower: 3 x (Linear -> ReLU)
        x_d = drug_ref[...]
        for i in range(4, 7):
            x_d = lin(x_d, p[2 * i], p[2 * i + 1])

        if fuse_concat:
            # The wrapper placed the drug tower's output columns at lane
            # offset ccl_out, so x_c and x_d occupy disjoint non-zero lanes
            # and a plain add realizes the concat with no relayout.
            x_cat = x_c + x_d
            y = (jnp.dot(x_cat.astype(jnp.bfloat16), p[14][...],
                         preferred_element_type=jnp.float32) + p[15][...])
            nxt = 16
        else:
            # Fallback: cat([x_c, x_d]) @ W7 == x_c @ W7_ccl + x_d @ W7_drug
            y = (jnp.dot(x_c.astype(jnp.bfloat16), p[14][...],
                         preferred_element_type=jnp.float32)
                 + jnp.dot(x_d.astype(jnp.bfloat16), p[15][...],
                           preferred_element_type=jnp.float32)
                 + p[16][...])
            nxt = 17
        x = jnp.maximum(y, 0.0)

        # rest of the concat head: 2 x (Linear -> ReLU) + final Linear
        x = lin(x, p[nxt], p[nxt + 1])
        x = lin(x, p[nxt + 2], p[nxt + 3])
        out_ref[...] = lin(x, p[nxt + 4], p[nxt + 5], relu=False)

    return kernel


# ---------------------------------------------------------------------------
# Wrapper: pad everything lane-dense, tile the batch, call the kernel.
# ---------------------------------------------------------------------------
def model1_forward(train_ccl, train_drug, params):
    """params: list of 11 (W, b) tuples, W:(in,out) f32, b:(1,out) f32."""
    batch = train_ccl.shape[0]
    ccl_in = train_ccl.shape[1]
    drug_in = train_drug.shape[1]

    ccl_out = params[3][0].shape[1]          # int(cll_in * 0.0625)
    drug_out = params[6][0].shape[1]         # int((drug_in - 200) * 0.5)
    fuse_concat = (ccl_out + drug_out) <= 128

    # --- batch tiling (TB multiple of 16 for bf16 sublane packing) ---
    TB_CAP = 512
    if batch > TB_CAP:
        n_tiles = _cdiv(batch, TB_CAP)
        TB = _round_up(_cdiv(batch, n_tiles), 16)   # minimise padded-tail waste
    elif batch >= 32:
        TB = _round_up(_cdiv(batch, 2), 16)         # grid>=2: both v7x TCs get work
    else:
        TB = _round_up(batch, 16)
    padded_batch = _round_up(batch, TB)
    grid = (padded_batch // TB,)

    # --- pad inputs (zero rows for batch pad, zero cols for features), bf16 ---
    ccl_pad = _round_up(ccl_in, 128)
    drug_pad = _round_up(drug_in, 128)
    ccl_x = _pad2d(train_ccl.astype(jnp.bfloat16), padded_batch, ccl_pad)
    drug_x = _pad2d(train_drug.astype(jnp.bfloat16), padded_batch, drug_pad)

    # --- pad params: bf16 weights, f32 biases ---
    def pad_w(w):
        return _pad2d(w, _round_up(w.shape[0], 128),
                      _round_up(w.shape[1], 128)).astype(jnp.bfloat16)

    def pad_b(b):
        return _pad2d(b, 1, _round_up(b.shape[1], 128)).astype(jnp.float32)

    flat_params = []
    for i in range(0, 4):                    # ccl tower
        w, b = params[i]
        flat_params += [pad_w(w), pad_b(b)]

    for i in range(4, 7):                    # drug tower
        w, b = params[i]
        if fuse_concat and i == 6:
            # Shift the last drug layer's output columns to lane offset ccl_out
            # so the concat becomes a plain add in the kernel.
            rows_pad = _round_up(w.shape[0], 128) - w.shape[0]
            w_sh = jnp.pad(w, ((0, rows_pad),
                               (ccl_out, 128 - ccl_out - w.shape[1])))
            b_sh = jnp.pad(b, ((0, 0), (ccl_out, 128 - ccl_out - b.shape[1])))
            flat_params += [w_sh.astype(jnp.bfloat16), b_sh.astype(jnp.float32)]
        else:
            flat_params += [pad_w(w), pad_b(b)]

    w7, b7 = params[7]
    op7 = _round_up(w7.shape[1], 128)
    if fuse_concat:
        # Rows 0..ccl_out-1 feed the ccl lanes, rows ccl_out..ccl_out+drug_out-1
        # feed the shifted drug lanes; remaining rows (padded) are zero.
        flat_params += [_pad2d(w7, 128, op7).astype(jnp.bfloat16), pad_b(b7)]
    else:
        w7_ccl = w7[:ccl_out, :]
        w7_drug = w7[ccl_out:, :]
        flat_params += [
            _pad2d(w7_ccl, _round_up(ccl_out, 128), op7).astype(jnp.bfloat16),
            _pad2d(w7_drug, _round_up(drug_out, 128), op7).astype(jnp.bfloat16),
            pad_b(b7),
        ]

    for i in range(8, 11):                   # rest of concat head
        w, b = params[i]
        flat_params += [pad_w(w), pad_b(b)]

    out_feat = params[-1][0].shape[1]        # = 1
    out_pad = _round_up(out_feat, 128)

    # --- BlockSpecs ---
    in_specs = [
        pl.BlockSpec((TB, ccl_pad), lambda i: (i, 0)),
        pl.BlockSpec((TB, drug_pad), lambda i: (i, 0)),
    ]
    # Weights/biases: full-array blocks with constant index_map -> VMEM-resident
    # across grid steps (re-DMA'd only once).
    in_specs += [pl.BlockSpec(a.shape, lambda i: (0, 0)) for a in flat_params]
    out_spec = pl.BlockSpec((TB, out_pad), lambda i: (i, 0))

    out_padded = pl.pallas_call(
        _make_kernel(fuse_concat),
        out_shape=jax.ShapeDtypeStruct((padded_batch, out_pad), jnp.float32),
        grid=grid,
        in_specs=in_specs,
        out_specs=out_spec,
        compiler_params=pltpu.CompilerParams(
            dimension_semantics=("parallel",),
            vmem_limit_bytes=32 * 1024 * 1024,
        ),
    )(ccl_x, drug_x, *flat_params)

    return out_padded[:batch, :out_feat]


# ---------------------------------------------------------------------------
# Deterministic parameter init (PyTorch nn.Linear-style uniform(-k, k), k=1/sqrt(fan_in))
# ---------------------------------------------------------------------------
def init_params(key, dims):
    params = []
    for (fan_in, fan_out) in dims:
        key, kw, kb = jax.random.split(key, 3)
        bound = 1.0 / jnp.sqrt(jnp.float32(fan_in))
        w = jax.random.uniform(kw, (fan_in, fan_out), jnp.float32, -bound, bound)
        b = jax.random.uniform(kb, (1, fan_out), jnp.float32, -bound, bound)
        params.append((w, b))
    return params


if __name__ == "__main__":
    # Small-but-consistent sizes: drug_input must exceed 200 for valid layer dims.
    cll_input_layer_size = 256   # tower: 256 -> 128 -> 64 -> 32 -> 16
    drug_input_layer_size = 300  # tower: 300 -> 200 -> 100 -> 50
    batch = 4                    # concat: 66 -> 1000 -> 500 -> 250 -> 1

    key = jax.random.PRNGKey(0)
    k_ccl, k_drug, k_params = jax.random.split(key, 3)

    train_ccl = jax.random.normal(k_ccl, (batch, cll_input_layer_size), jnp.float32)
    train_drug = jax.random.normal(k_drug, (batch, drug_input_layer_size), jnp.float32)

    dims = model1_layer_dims(cll_input_layer_size, drug_input_layer_size)
    params = init_params(k_params, dims)

    out = model1_forward(train_ccl, train_drug, params)
    jax.block_until_ready(out)
    assert out.shape == (batch, 1)

    # Pure-JAX reference with the same deliberate bf16 weight/activation storage
    # (f32 accumulate), using a real concat — checks the kernel's padding /
    # lane-shift / tiling logic.
    def ref_forward(ccl, drug, params):
        def lin(x, w, b, relu=True):
            y = jnp.dot(x.astype(jnp.bfloat16), w.astype(jnp.bfloat16),
                        preferred_element_type=jnp.float32) + b
            return jnp.maximum(y, 0.0) if relu else y

        x_ccl = ccl
        for i in range(0, 4):
            x_ccl = lin(x_ccl, *params[i])
        x_drug = drug
        for i in range(4, 7):
            x_drug = lin(x_drug, *params[i])
        x = jnp.concatenate([x_ccl, x_drug], axis=1)
        for i in range(7, 10):
            x = lin(x, *params[i])
        return lin(x, *params[10], relu=False)

    ref = ref_forward(train_ccl, train_drug, params)
    max_diff = jnp.max(jnp.abs(out - ref))
    assert jnp.allclose(out, ref, atol=1e-2, rtol=1e-2), f"max abs diff {max_diff}"
    print("KERNEL_OK")
</pallas_src>

<mosaic_0001>
module attributes {stable_mosaic.version = 11 : i64} {
  func.func @kernel(%arg0: i32, %arg1: memref<16x256xbf16, #tpu.memory_space<vmem>>, %arg2: memref<16x384xbf16, #tpu.memory_space<vmem>>, %arg3: memref<256x128xbf16, #tpu.memory_space<vmem>>, %arg4: memref<1x128xf32, #tpu.memory_space<vmem>>, %arg5: memref<128x128xbf16, #tpu.memory_space<vmem>>, %arg6: memref<1x128xf32, #tpu.memory_space<vmem>>, %arg7: memref<128x128xbf16, #tpu.memory_space<vmem>>, %arg8: memref<1x128xf32, #tpu.memory_space<vmem>>, %arg9: memref<128x128xbf16, #tpu.memory_space<vmem>>, %arg10: memref<1x128xf32, #tpu.memory_space<vmem>>, %arg11: memref<384x256xbf16, #tpu.memory_space<vmem>>, %arg12: memref<1x256xf32, #tpu.memory_space<vmem>>, %arg13: memref<256x128xbf16, #tpu.memory_space<vmem>>, %arg14: memref<1x128xf32, #tpu.memory_space<vmem>>, %arg15: memref<128x128xbf16, #tpu.memory_space<vmem>>, %arg16: memref<1x128xf32, #tpu.memory_space<vmem>>, %arg17: memref<128x1024xbf16, #tpu.memory_space<vmem>>, %arg18: memref<1x1024xf32, #tpu.memory_space<vmem>>, %arg19: memref<1024x512xbf16, #tpu.memory_space<vmem>>, %arg20: memref<1x512xf32, #tpu.memory_space<vmem>>, %arg21: memref<512x256xbf16, #tpu.memory_space<vmem>>, %arg22: memref<1x256xf32, #tpu.memory_space<vmem>>, %arg23: memref<256x128xbf16, #tpu.memory_space<vmem>>, %arg24: memref<1x128xf32, #tpu.memory_space<vmem>>, %arg25: memref<16x128xf32, #tpu.memory_space<vmem>>) attributes {dimension_semantics = [#tpu.dimension_semantics<parallel>], iteration_bounds = array<i64: 1>, scalar_prefetch = 0 : i64, scratch_operands = 0 : i64, tpu.core_type = #tpu.core_type<tc>, window_params = [{transform_indices = @transform_0, window_bounds = array<i64: 16, 256>}, {transform_indices = @transform_1, window_bounds = array<i64: 16, 384>}, {pipeline_mode = #tpu.pipeline_mode<synchronous>, transform_indices = @transform_2, window_bounds = array<i64: 256, 128>}, {pipeline_mode = #tpu.pipeline_mode<synchronous>, transform_indices = @transform_3, window_bounds = array<i64: 1, 128>}, {pipeline_mode = #tpu.pipeline_mode<synchronous>, transform_indices = @transform_4, window_bounds = array<i64: 128, 128>}, {pipeline_mode = #tpu.pipeline_mode<synchronous>, transform_indices = @transform_5, window_bounds = array<i64: 1, 128>}, {pipeline_mode = #tpu.pipeline_mode<synchronous>, transform_indices = @transform_6, window_bounds = array<i64: 128, 128>}, {pipeline_mode = #tpu.pipeline_mode<synchronous>, transform_indices = @transform_7, window_bounds = array<i64: 1, 128>}, {pipeline_mode = #tpu.pipeline_mode<synchronous>, transform_indices = @transform_8, window_bounds = array<i64: 128, 128>}, {pipeline_mode = #tpu.pipeline_mode<synchronous>, transform_indices = @transform_9, window_bounds = array<i64: 1, 128>}, {pipeline_mode = #tpu.pipeline_mode<synchronous>, transform_indices = @transform_10, window_bounds = array<i64: 384, 256>}, {pipeline_mode = #tpu.pipeline_mode<synchronous>, transform_indices = @transform_11, window_bounds = array<i64: 1, 256>}, {pipeline_mode = #tpu.pipeline_mode<synchronous>, transform_indices = @transform_12, window_bounds = array<i64: 256, 128>}, {pipeline_mode = #tpu.pipeline_mode<synchronous>, transform_indices = @transform_13, window_bounds = array<i64: 1, 128>}, {pipeline_mode = #tpu.pipeline_mode<synchronous>, transform_indices = @transform_14, window_bounds = array<i64: 128, 128>}, {pipeline_mode = #tpu.pipeline_mode<synchronous>, transform_indices = @transform_15, window_bounds = array<i64: 1, 128>}, {pipeline_mode = #tpu.pipeline_mode<synchronous>, transform_indices = @transform_16, window_bounds = array<i64: 128, 1024>}, {pipeline_mode = #tpu.pipeline_mode<synchronous>, transform_indices = @transform_17, window_bounds = array<i64: 1, 1024>}, {pipeline_mode = #tpu.pipeline_mode<synchronous>, transform_indices = @transform_18, window_bounds = array<i64: 1024, 512>}, {pipeline_mode = #tpu.pipeline_mode<synchronous>, transform_indices = @transform_19, window_bounds = array<i64: 1, 512>}, {pipeline_mode = #tpu.pipeline_mode<synchronous>, transform_indices = @transform_20, window_bounds = array<i64: 512, 256>}, {pipeline_mode = #tpu.pipeline_mode<synchronous>, transform_indices = @transform_21, window_bounds = array<i64: 1, 256>}, {pipeline_mode = #tpu.pipeline_mode<synchronous>, transform_indices = @transform_22, window_bounds = array<i64: 256, 128>}, {pipeline_mode = #tpu.pipeline_mode<synchronous>, transform_indices = @transform_23, window_bounds = array<i64: 1, 128>}, {transform_indices = @transform_24, window_bounds = array<i64: 16, 128>}]} {
    %c0 = arith.constant 0 : index
    %c0_0 = arith.constant 0 : index
    %0 = vector.load %arg1[%c0, %c0_0] : memref<16x256xbf16, #tpu.memory_space<vmem>>, vector<16x256xbf16>
    %c0_1 = arith.constant 0 : index
    %c0_2 = arith.constant 0 : index
    %1 = vector.load %arg3[%c0_1, %c0_2] : memref<256x128xbf16, #tpu.memory_space<vmem>>, vector<256x128xbf16>
    %cst = arith.constant dense<0.000000e+00> : vector<16x128xf32>
    %2 = tpu.matmul %0, %1, %cst {dimension_numbers = #tpu.dot_dimension_numbers<[1], [0], [0], [1], [0, 0, 1, 1], [], []>} : vector<16x256xbf16>, vector<256x128xbf16>, vector<16x128xf32> -> vector<16x128xf32>
    %c0_3 = arith.constant 0 : index
    %c0_4 = arith.constant 0 : index
    %3 = vector.load %arg4[%c0_3, %c0_4] : memref<1x128xf32, #tpu.memory_space<vmem>>, vector<1x128xf32>
    %4 = vector.broadcast %3 : vector<1x128xf32> to vector<16x128xf32>
    %5 = arith.addf %2, %4 : vector<16x128xf32>
    %cst_5 = arith.constant 0.000000e+00 : f32
    %6 = vector.broadcast %cst_5 : f32 to vector<16x128xf32>
    %7 = arith.maximumf %5, %6 : vector<16x128xf32>
    %8 = arith.truncf %7 : vector<16x128xf32> to vector<16x128xbf16>
    %c0_6 = arith.constant 0 : index
    %c0_7 = arith.constant 0 : index
    %9 = vector.load %arg5[%c0_6, %c0_7] : memref<128x128xbf16, #tpu.memory_space<vmem>>, vector<128x128xbf16>
    %cst_8 = arith.constant dense<0.000000e+00> : vector<16x128xf32>
    %10 = tpu.matmul %8, %9, %cst_8 {dimension_numbers = #tpu.dot_dimension_numbers<[1], [0], [0], [1], [0, 0, 1, 1], [], []>} : vector<16x128xbf16>, vector<128x128xbf16>, vector<16x128xf32> -> vector<16x128xf32>
    %c0_9 = arith.constant 0 : index
    %c0_10 = arith.constant 0 : index
    %11 = vector.load %arg6[%c0_9, %c0_10] : memref<1x128xf32, #tpu.memory_space<vmem>>, vector<1x128xf32>
    %12 = vector.broadcast %11 : vector<1x128xf32> to vector<16x128xf32>
    %13 = arith.addf %10, %12 : vector<16x128xf32>
    %cst_11 = arith.constant 0.000000e+00 : f32
    %14 = vector.broadcast %cst_11 : f32 to vector<16x128xf32>
    %15 = arith.maximumf %13, %14 : vector<16x128xf32>
    %16 = arith.truncf %15 : vector<16x128xf32> to vector<16x128xbf16>
    %c0_12 = arith.constant 0 : index
    %c0_13 = arith.constant 0 : index
    %17 = vector.load %arg7[%c0_12, %c0_13] : memref<128x128xbf16, #tpu.memory_space<vmem>>, vector<128x128xbf16>
    %cst_14 = arith.constant dense<0.000000e+00> : vector<16x128xf32>
    %18 = tpu.matmul %16, %17, %cst_14 {dimension_numbers = #tpu.dot_dimension_numbers<[1], [0], [0], [1], [0, 0, 1, 1], [], []>} : vector<16x128xbf16>, vector<128x128xbf16>, vector<16x128xf32> -> vector<16x128xf32>
    %c0_15 = arith.constant 0 : index
    %c0_16 = arith.constant 0 : index
    %19 = vector.load %arg8[%c0_15, %c0_16] : memref<1x128xf32, #tpu.memory_space<vmem>>, vector<1x128xf32>
    %20 = vector.broadcast %19 : vector<1x128xf32> to vector<16x128xf32>
    %21 = arith.addf %18, %20 : vector<16x128xf32>
    %cst_17 = arith.constant 0.000000e+00 : f32
    %22 = vector.broadcast %cst_17 : f32 to vector<16x128xf32>
    %23 = arith.maximumf %21, %22 : vector<16x128xf32>
    %24 = arith.truncf %23 : vector<16x128xf32> to vector<16x128xbf16>
    %c0_18 = arith.constant 0 : index
    %c0_19 = arith.constant 0 : index
    %25 = vector.load %arg9[%c0_18, %c0_19] : memref<128x128xbf16, #tpu.memory_space<vmem>>, vector<128x128xbf16>
    %cst_20 = arith.constant dense<0.000000e+00> : vector<16x128xf32>
    %26 = tpu.matmul %24, %25, %cst_20 {dimension_numbers = #tpu.dot_dimension_numbers<[1], [0], [0], [1], [0, 0, 1, 1], [], []>} : vector<16x128xbf16>, vector<128x128xbf16>, vector<16x128xf32> -> vector<16x128xf32>
    %c0_21 = arith.constant 0 : index
    %c0_22 = arith.constant 0 : index
    %27 = vector.load %arg10[%c0_21, %c0_22] : memref<1x128xf32, #tpu.memory_space<vmem>>, vector<1x128xf32>
    %28 = vector.broadcast %27 : vector<1x128xf32> to vector<16x128xf32>
    %29 = arith.addf %26, %28 : vector<16x128xf32>
    %cst_23 = arith.constant 0.000000e+00 : f32
    %30 = vector.broadcast %cst_23 : f32 to vector<16x128xf32>
    %31 = arith.maximumf %29, %30 : vector<16x128xf32>
    %c0_24 = arith.constant 0 : index
    %c0_25 = arith.constant 0 : index
    %32 = vector.load %arg2[%c0_24, %c0_25] : memref<16x384xbf16, #tpu.memory_space<vmem>>, vector<16x384xbf16>
    %c0_26 = arith.constant 0 : index
    %c0_27 = arith.constant 0 : index
    %33 = vector.load %arg11[%c0_26, %c0_27] : memref<384x256xbf16, #tpu.memory_space<vmem>>, vector<384x256xbf16>
    %cst_28 = arith.constant dense<0.000000e+00> : vector<16x256xf32>
    %34 = tpu.matmul %32, %33, %cst_28 {dimension_numbers = #tpu.dot_dimension_numbers<[1], [0], [0], [1], [0, 0, 1, 1], [], []>} : vector<16x384xbf16>, vector<384x256xbf16>, vector<16x256xf32> -> vector<16x256xf32>
    %c0_29 = arith.constant 0 : index
    %c0_30 = arith.constant 0 : index
    %35 = vector.load %arg12[%c0_29, %c0_30] : memref<1x256xf32, #tpu.memory_space<vmem>>, vector<1x256xf32>
    %36 = vector.broadcast %35 : vector<1x256xf32> to vector<16x256xf32>
    %37 = arith.addf %34, %36 : vector<16x256xf32>
    %cst_31 = arith.constant 0.000000e+00 : f32
    %38 = vector.broadcast %cst_31 : f32 to vector<16x256xf32>
    %39 = arith.maximumf %37, %38 : vector<16x256xf32>
    %40 = arith.truncf %39 : vector<16x256xf32> to vector<16x256xbf16>
    %c0_32 = arith.constant 0 : index
    %c0_33 = arith.constant 0 : index
    %41 = vector.load %arg13[%c0_32, %c0_33] : memref<256x128xbf16, #tpu.memory_space<vmem>>, vector<256x128xbf16>
    %cst_34 = arith.constant dense<0.000000e+00> : vector<16x128xf32>
    %42 = tpu.matmul %40, %41, %cst_34 {dimension_numbers = #tpu.dot_dimension_numbers<[1], [0], [0], [1], [0, 0, 1, 1], [], []>} : vector<16x256xbf16>, vector<256x128xbf16>, vector<16x128xf32> -> vector<16x128xf32>
    %c0_35 = arith.constant 0 : index
    %c0_36 = arith.constant 0 : index
    %43 = vector.load %arg14[%c0_35, %c0_36] : memref<1x128xf32, #tpu.memory_space<vmem>>, vector<1x128xf32>
    %44 = vector.broadcast %43 : vector<1x128xf32> to vector<16x128xf32>
    %45 = arith.addf %42, %44 : vector<16x128xf32>
    %cst_37 = arith.constant 0.000000e+00 : f32
    %46 = vector.broadcast %cst_37 : f32 to vector<16x128xf32>
    %47 = arith.maximumf %45, %46 : vector<16x128xf32>
    %48 = arith.truncf %47 : vector<16x128xf32> to vector<16x128xbf16>
    %c0_38 = arith.constant 0 : index
    %c0_39 = arith.constant 0 : index
    %49 = vector.load %arg15[%c0_38, %c0_39] : memref<128x128xbf16, #tpu.memory_space<vmem>>, vector<128x128xbf16>
    %cst_40 = arith.constant dense<0.000000e+00> : vector<16x128xf32>
    %50 = tpu.matmul %48, %49, %cst_40 {dimension_numbers = #tpu.dot_dimension_numbers<[1], [0], [0], [1], [0, 0, 1, 1], [], []>} : vector<16x128xbf16>, vector<128x128xbf16>, vector<16x128xf32> -> vector<16x128xf32>
    %c0_41 = arith.constant 0 : index
    %c0_42 = arith.constant 0 : index
    %51 = vector.load %arg16[%c0_41, %c0_42] : memref<1x128xf32, #tpu.memory_space<vmem>>, vector<1x128xf32>
    %52 = vector.broadcast %51 : vector<1x128xf32> to vector<16x128xf32>
    %53 = arith.addf %50, %52 : vector<16x128xf32>
    %cst_43 = arith.constant 0.000000e+00 : f32
    %54 = vector.broadcast %cst_43 : f32 to vector<16x128xf32>
    %55 = arith.maximumf %53, %54 : vector<16x128xf32>
    %56 = arith.addf %31, %55 : vector<16x128xf32>
    %57 = arith.truncf %56 : vector<16x128xf32> to vector<16x128xbf16>
    %c0_44 = arith.constant 0 : index
    %c0_45 = arith.constant 0 : index
    %58 = vector.load %arg17[%c0_44, %c0_45] : memref<128x1024xbf16, #tpu.memory_space<vmem>>, vector<128x1024xbf16>
    %cst_46 = arith.constant dense<0.000000e+00> : vector<16x1024xf32>
    %59 = tpu.matmul %57, %58, %cst_46 {dimension_numbers = #tpu.dot_dimension_numbers<[1], [0], [0], [1], [0, 0, 1, 1], [], []>} : vector<16x128xbf16>, vector<128x1024xbf16>, vector<16x1024xf32> -> vector<16x1024xf32>
    %c0_47 = arith.constant 0 : index
    %c0_48 = arith.constant 0 : index
    %60 = vector.load %arg18[%c0_47, %c0_48] : memref<1x1024xf32, #tpu.memory_space<vmem>>, vector<1x1024xf32>
    %61 = vector.broadcast %60 : vector<1x1024xf32> to vector<16x1024xf32>
    %62 = arith.addf %59, %61 : vector<16x1024xf32>
    %cst_49 = arith.constant 0.000000e+00 : f32
    %63 = vector.broadcast %cst_49 : f32 to vector<16x1024xf32>
    %64 = arith.maximumf %62, %63 : vector<16x1024xf32>
    %65 = arith.truncf %64 : vector<16x1024xf32> to vector<16x1024xbf16>
    %c0_50 = arith.constant 0 : index
    %c0_51 = arith.constant 0 : index
    %66 = vector.load %arg19[%c0_50, %c0_51] : memref<1024x512xbf16, #tpu.memory_space<vmem>>, vector<1024x512xbf16>
    %cst_52 = arith.constant dense<0.000000e+00> : vector<16x512xf32>
    %67 = tpu.matmul %65, %66, %cst_52 {dimension_numbers = #tpu.dot_dimension_numbers<[1], [0], [0], [1], [0, 0, 1, 1], [], []>} : vector<16x1024xbf16>, vector<1024x512xbf16>, vector<16x512xf32> -> vector<16x512xf32>
    %c0_53 = arith.constant 0 : index
    %c0_54 = arith.constant 0 : index
    %68 = vector.load %arg20[%c0_53, %c0_54] : memref<1x512xf32, #tpu.memory_space<vmem>>, vector<1x512xf32>
    %69 = vector.broadcast %68 : vector<1x512xf32> to vector<16x512xf32>
    %70 = arith.addf %67, %69 : vector<16x512xf32>
    %cst_55 = arith.constant 0.000000e+00 : f32
    %71 = vector.broadcast %cst_55 : f32 to vector<16x512xf32>
    %72 = arith.maximumf %70, %71 : vector<16x512xf32>
    %73 = arith.truncf %72 : vector<16x512xf32> to vector<16x512xbf16>
    %c0_56 = arith.constant 0 : index
    %c0_57 = arith.constant 0 : index
    %74 = vector.load %arg21[%c0_56, %c0_57] : memref<512x256xbf16, #tpu.memory_space<vmem>>, vector<512x256xbf16>
    %cst_58 = arith.constant dense<0.000000e+00> : vector<16x256xf32>
    %75 = tpu.matmul %73, %74, %cst_58 {dimension_numbers = #tpu.dot_dimension_numbers<[1], [0], [0], [1], [0, 0, 1, 1], [], []>} : vector<16x512xbf16>, vector<512x256xbf16>, vector<16x256xf32> -> vector<16x256xf32>
    %c0_59 = arith.constant 0 : index
    %c0_60 = arith.constant 0 : index
    %76 = vector.load %arg22[%c0_59, %c0_60] : memref<1x256xf32, #tpu.memory_space<vmem>>, vector<1x256xf32>
    %77 = vector.broadcast %76 : vector<1x256xf32> to vector<16x256xf32>
    %78 = arith.addf %75, %77 : vector<16x256xf32>
    %cst_61 = arith.constant 0.000000e+00 : f32
    %79 = vector.broadcast %cst_61 : f32 to vector<16x256xf32>
    %80 = arith.maximumf %78, %79 : vector<16x256xf32>
    %81 = arith.truncf %80 : vector<16x256xf32> to vector<16x256xbf16>
    %c0_62 = arith.constant 0 : index
    %c0_63 = arith.constant 0 : index
    %82 = vector.load %arg23[%c0_62, %c0_63] : memref<256x128xbf16, #tpu.memory_space<vmem>>, vector<256x128xbf16>
    %cst_64 = arith.constant dense<0.000000e+00> : vector<16x128xf32>
    %83 = tpu.matmul %81, %82, %cst_64 {dimension_numbers = #tpu.dot_dimension_numbers<[1], [0], [0], [1], [0, 0, 1, 1], [], []>} : vector<16x256xbf16>, vector<256x128xbf16>, vector<16x128xf32> -> vector<16x128xf32>
    %c0_65 = arith.constant 0 : index
    %c0_66 = arith.constant 0 : index
    %84 = vector.load %arg24[%c0_65, %c0_66] : memref<1x128xf32, #tpu.memory_space<vmem>>, vector<1x128xf32>
    %85 = vector.broadcast %84 : vector<1x128xf32> to vector<16x128xf32>
    %86 = arith.addf %83, %85 : vector<16x128xf32>
    %c0_67 = arith.constant 0 : index
    %c0_68 = arith.constant 0 : index
    %87 = vector.load %arg25[%c0_67, %c0_68] : memref<16x128xf32, #tpu.memory_space<vmem>>, vector<16x128xf32>
    tpu.vector_store %arg25[%c0_67, %c0_68], %86 {strides = array<i32>} : memref<16x128xf32, #tpu.memory_space<vmem>>, vector<16x128xf32>,
    return
  }
  func.func @transform_0(%arg0: i32) -> (i32, i32) {
    %c0_i32 = arith.constant 0 : i32
    %c0_i32_0 = arith.constant 0 : i32
    return %arg0, %c0_i32 : i32, i32
  }
  func.func @transform_1(%arg0: i32) -> (i32, i32) {
    %c0_i32 = arith.constant 0 : i32
    %c0_i32_0 = arith.constant 0 : i32
    return %arg0, %c0_i32 : i32, i32
  }
  func.func @transform_2(%arg0: i32) -> (i32, i32) {
    %c0_i32 = arith.constant 0 : i32
    %c0_i32_0 = arith.constant 0 : i32
    %c0_i32_1 = arith.constant 0 : i32
    return %c0_i32, %c0_i32_0 : i32, i32
  }
  func.func @transform_3(%arg0: i32) -> (i32, i32) {
    %c0_i32 = arith.constant 0 : i32
    %c0_i32_0 = arith.constant 0 : i32
    %c0_i32_1 = arith.constant 0 : i32
    return %c0_i32, %c0_i32_0 : i32, i32
  }
  func.func @transform_4(%arg0: i32) -> (i32, i32) {
    %c0_i32 = arith.constant 0 : i32
    %c0_i32_0 = arith.constant 0 : i32
    %c0_i32_1 = arith.constant 0 : i32
    return %c0_i32, %c0_i32_0 : i32, i32
  }
  func.func @transform_5(%arg0: i32) -> (i32, i32) {
    %c0_i32 = arith.constant 0 : i32
    %c0_i32_0 = arith.constant 0 : i32
    %c0_i32_1 = arith.constant 0 : i32
    return %c0_i32, %c0_i32_0 : i32, i32
  }
  func.func @transform_6(%arg0: i32) -> (i32, i32) {
    %c0_i32 = arith.constant 0 : i32
    %c0_i32_0 = arith.constant 0 : i32
    %c0_i32_1 = arith.constant 0 : i32
    return %c0_i32, %c0_i32_0 : i32, i32
  }
  func.func @transform_7(%arg0: i32) -> (i32, i32) {
    %c0_i32 = arith.constant 0 : i32
    %c0_i32_0 = arith.constant 0 : i32
    %c0_i32_1 = arith.constant 0 : i32
    return %c0_i32, %c0_i32_0 : i32, i32
  }
  func.func @transform_8(%arg0: i32) -> (i32, i32) {
    %c0_i32 = arith.constant 0 : i32
    %c0_i32_0 = arith.constant 0 : i32
    %c0_i32_1 = arith.constant 0 : i32
    return %c0_i32, %c0_i32_0 : i32, i32
  }
  func.func @transform_9(%arg0: i32) -> (i32, i32) {
    %c0_i32 = arith.constant 0 : i32
    %c0_i32_0 = arith.constant 0 : i32
    %c0_i32_1 = arith.constant 0 : i32
    return %c0_i32, %c0_i32_0 : i32, i32
  }
  func.func @transform_10(%arg0: i32) -> (i32, i32) {
    %c0_i32 = arith.constant 0 : i32
    %c0_i32_0 = arith.constant 0 : i32
    %c0_i32_1 = arith.constant 0 : i32
    return %c0_i32, %c0_i32_0 : i32, i32
  }
  func.func @transform_11(%arg0: i32) -> (i32, i32) {
    %c0_i32 = arith.constant 0 : i32
    %c0_i32_0 = arith.constant 0 : i32
    %c0_i32_1 = arith.constant 0 : i32
    return %c0_i32, %c0_i32_0 : i32, i32
  }
  func.func @transform_12(%arg0: i32) -> (i32, i32) {
    %c0_i32 = arith.constant 0 : i32
    %c0_i32_0 = arith.constant 0 : i32
    %c0_i32_1 = arith.constant 0 : i32
    return %c0_i32, %c0_i32_0 : i32, i32
  }
  func.func @transform_13(%arg0: i32) -> (i32, i32) {
    %c0_i32 = arith.constant 0 : i32
    %c0_i32_0 = arith.constant 0 : i32
    %c0_i32_1 = arith.constant 0 : i32
    return %c0_i32, %c0_i32_0 : i32, i32
  }
  func.func @transform_14(%arg0: i32) -> (i32, i32) {
    %c0_i32 = arith.constant 0 : i32
    %c0_i32_0 = arith.constant 0 : i32
    %c0_i32_1 = arith.constant 0 : i32
    return %c0_i32, %c0_i32_0 : i32, i32
  }
  func.func @transform_15(%arg0: i32) -> (i32, i32) {
    %c0_i32 = arith.constant 0 : i32
    %c0_i32_0 = arith.constant 0 : i32
    %c0_i32_1 = arith.constant 0 : i32
    return %c0_i32, %c0_i32_0 : i32, i32
  }
  func.func @transform_16(%arg0: i32) -> (i32, i32) {
    %c0_i32 = arith.constant 0 : i32
    %c0_i32_0 = arith.constant 0 : i32
    %c0_i32_1 = arith.constant 0 : i32
    return %c0_i32, %c0_i32_0 : i32, i32
  }
  func.func @transform_17(%arg0: i32) -> (i32, i32) {
    %c0_i32 = arith.constant 0 : i32
    %c0_i32_0 = arith.constant 0 : i32
    %c0_i32_1 = arith.constant 0 : i32
    return %c0_i32, %c0_i32_0 : i32, i32
  }
  func.func @transform_18(%arg0: i32) -> (i32, i32) {
    %c0_i32 = arith.constant 0 : i32
    %c0_i32_0 = arith.constant 0 : i32
    %c0_i32_1 = arith.constant 0 : i32
    return %c0_i32, %c0_i32_0 : i32, i32
  }
  func.func @transform_19(%arg0: i32) -> (i32, i32) {
    %c0_i32 = arith.constant 0 : i32
    %c0_i32_0 = arith.constant 0 : i32
    %c0_i32_1 = arith.constant 0 : i32
    return %c0_i32, %c0_i32_0 : i32, i32
  }
  func.func @transform_20(%arg0: i32) -> (i32, i32) {
    %c0_i32 = arith.constant 0 : i32
    %c0_i32_0 = arith.constant 0 : i32
    %c0_i32_1 = arith.constant 0 : i32
    return %c0_i32, %c0_i32_0 : i32, i32
  }
  func.func @transform_21(%arg0: i32) -> (i32, i32) {
    %c0_i32 = arith.constant 0 : i32
    %c0_i32_0 = arith.constant 0 : i32
    %c0_i32_1 = arith.constant 0 : i32
    return %c0_i32, %c0_i32_0 : i32, i32
  }
  func.func @transform_22(%arg0: i32) -> (i32, i32) {
    %c0_i32 = arith.constant 0 : i32
    %c0_i32_0 = arith.constant 0 : i32
    %c0_i32_1 = arith.constant 0 : i32
    return %c0_i32, %c0_i32_0 : i32, i32
  }
  func.func @transform_23(%arg0: i32) -> (i32, i32) {
    %c0_i32 = arith.constant 0 : i32
    %c0_i32_0 = arith.constant 0 : i32
    %c0_i32_1 = arith.constant 0 : i32
    return %c0_i32, %c0_i32_0 : i32, i32
  }
  func.func @transform_24(%arg0: i32) -> (i32, i32) {
    %c0_i32 = arith.constant 0 : i32
    %c0_i32_0 = arith.constant 0 : i32
    return %arg0, %c0_i32 : i32, i32
  }
}

</mosaic_0001>

<llo_original>
// kernel: tpu_custom_call.1
$region0: #{tpu_custom_call.1}
  #allocation0 [shape = 'u32[]', space=smem, size = 0x4, offset = 0x4, fixed_abs, tag = 'smem constant byte address 0x4 - core index']
  #allocation1 [shape = 'u32[144,128]{1,0:T(1,128)}', space=vmem, size = 0x12000, scoped, tag = 'internal scratch']
  %s0 = inlined_call_operand.hbm [shape: bf16[16,256], index: 0, kind: input, shape index: {}]
  %s1 = inlined_call_operand.hbm [shape: bf16[16,384], index: 1, kind: input, shape index: {}]
  %s2 = inlined_call_operand.hbm [shape: bf16[256,128], index: 2, kind: input, shape index: {}]
  %s3 = inlined_call_operand.vmem [shape: f32[1,128], index: 3, kind: input, shape index: {}]
  %s4 = inlined_call_operand.hbm [shape: bf16[128,128], index: 4, kind: input, shape index: {}]
  %s5 = inlined_call_operand.vmem [shape: f32[1,128], index: 5, kind: input, shape index: {}]
  %s6 = inlined_call_operand.hbm [shape: bf16[128,128], index: 6, kind: input, shape index: {}]
  %s7 = inlined_call_operand.vmem [shape: f32[1,128], index: 7, kind: input, shape index: {}]
  %s8 = inlined_call_operand.hbm [shape: bf16[128,128], index: 8, kind: input, shape index: {}]
  %s9 = inlined_call_operand.vmem [shape: f32[1,128], index: 9, kind: input, shape index: {}]
  %s10 = inlined_call_operand.hbm [shape: bf16[384,256], index: 10, kind: input, shape index: {}]
  %s11 = inlined_call_operand.vmem [shape: f32[1,256], index: 11, kind: input, shape index: {}]
  %s12 = inlined_call_operand.hbm [shape: bf16[256,128], index: 12, kind: input, shape index: {}]
  %s13 = inlined_call_operand.vmem [shape: f32[1,128], index: 13, kind: input, shape index: {}]
  %s14 = inlined_call_operand.hbm [shape: bf16[128,128], index: 14, kind: input, shape index: {}]
  %s15 = inlined_call_operand.vmem [shape: f32[1,128], index: 15, kind: input, shape index: {}]
  %s16 = inlined_call_operand.hbm [shape: bf16[128,1024], index: 16, kind: input, shape index: {}]
  %s17 = inlined_call_operand.vmem [shape: f32[1,1024], index: 17, kind: input, shape index: {}]
  %s18 = inlined_call_operand.hbm [shape: bf16[1024,512], index: 18, kind: input, shape index: {}]
  %s19 = inlined_call_operand.vmem [shape: f32[1,512], index: 19, kind: input, shape index: {}]
  %s20 = inlined_call_operand.hbm [shape: bf16[512,256], index: 20, kind: input, shape index: {}]
  %s21 = inlined_call_operand.vmem [shape: f32[1,256], index: 21, kind: input, shape index: {}]
  %s22 = inlined_call_operand.hbm [shape: bf16[256,128], index: 22, kind: input, shape index: {}]
  %s23 = inlined_call_operand.vmem [shape: f32[1,128], index: 23, kind: input, shape index: {}]
  %s24 = inlined_call_operand.hbm [shape: f32[16,128], index: 24, kind: output, shape index: {}]
  %s25 = sld [smem:[#allocation0]]
  $region158: #{tpu_custom_call.1} parent=0
    _
  %s27 = ssub.s32 1, %s25
  %s28 = scalar_select 0, %s27, %s25
  $region1: #{tpu_custom_call.1} parent=0
    #allocation2 [shape = 'u8[8192]{0}', space=vmem, size = 0x2000, scoped, tag = 'input window, operand 0, single buffered']
    #allocation3 [shape = 's32[1]{0}', space=sflag, size = 0x4, scoped, tag = 'scoped memory for tpu_custom_call.1']
    #allocation4 [shape = 's32[1]{0}', space=sflag, size = 0x4, scoped, tag = 'scoped memory for tpu_custom_call.1']
    #allocation5 [shape = 'u8[12288]{0}', space=vmem, size = 0x3000, scoped, tag = 'input window, operand 1, single buffered']
    #allocation6 [shape = 's32[1]{0}', space=sflag, size = 0x4, scoped, tag = 'scoped memory for tpu_custom_call.1']
    #allocation7 [shape = 'u8[65536]{0}', space=vmem, size = 0x10000, scoped, tag = 'input window, operand 2, single buffered']
    #allocation8 [shape = 'u8[32768]{0}', space=vmem, size = 0x8000, scoped, tag = 'input window, operand 4, single buffered']
    #allocation9 [shape = 's32[1]{0}', space=sflag, size = 0x4, scoped, tag = 'scoped memory for tpu_custom_call.1']
    #allocation10 [shape = 'u8[32768]{0}', space=vmem, size = 0x8000, scoped, tag = 'input window, operand 6, single buffered']
    #allocation11 [shape = 'u8[32768]{0}', space=vmem, size = 0x8000, scoped, tag = 'input window, operand 8, single buffered']
    #allocation12 [shape = 's32[1]{0}', space=sflag, size = 0x4, scoped, tag = 'scoped memory for tpu_custom_call.1']
    #allocation13 [shape = 'u8[196608]{0}', space=vmem, size = 0x30000, scoped, tag = 'input window, operand 10, single buffered']
    #allocation14 [shape = 'u8[65536]{0}', space=vmem, size = 0x10000, scoped, tag = 'input window, operand 12, single buffered']
    #allocation15 [shape = 's32[1]{0}', space=sflag, size = 0x4, scoped, tag = 'scoped memory for tpu_custom_call.1']
    #allocation16 [shape = 'u8[32768]{0}', space=vmem, size = 0x8000, scoped, tag = 'input window, operand 14, single buffered']
    #allocation17 [shape = 'u8[262144]{0}', space=vmem, size = 0x40000, scoped, tag = 'input window, operand 16, single buffered']
    #allocation18 [shape = 's32[1]{0}', space=sflag, size = 0x4, scoped, tag = 'scoped memory for tpu_custom_call.1']
    #allocation19 [shape = 'u8[1048576]{0}', space=vmem, size = 0x100000, scoped, tag = 'input window, operand 18, single buffered']
    #allocation20 [shape = 'u8[262144]{0}', space=vmem, size = 0x40000, scoped, tag = 'input window, operand 20, single buffered']
    #allocation21 [shape = 's32[1]{0}', space=sflag, size = 0x4, scoped, tag = 'scoped memory for tpu_custom_call.1']
    #allocation22 [shape = 'u8[65536]{0}', space=vmem, size = 0x10000, scoped, tag = 'input window, operand 22, single buffered']
    #allocation23 [shape = 'u8[8192]{0}', space=vmem, size = 0x2000, scoped, tag = 'output window, operand 0, single buffered']
    %29 = vsyncpa [#allocation3], 0
    %30 = vsyncpa [#allocation6], 0
    %31 = vsyncpa [#allocation9], 0
    %32 = vsyncpa [#allocation12], 0
    %33 = vsyncpa [#allocation15], 0
    %34 = vsyncpa [#allocation18], 0
    %35 = vsyncpa [#allocation21], 0
    %36 = vsyncpa [#allocation4], 0
    // Predicated region
    $region2: #{tpu_custom_call.1} parent=1 // pred_check
      _
    $region3: #{tpu_custom_call.1} parent=1 // pred_check_branch
      %38 = sbr.rel (0) target = $region5
    $region4: #{tpu_custom_call.1} parent=1 // pred_region
      %s40 = ssub.s32 256, 256
      %41 = vsyncadd [#allocation3], %s40
      %s42 = sshll.u32 [#allocation2], 4
      %s43 = int_to_ptr.vmem [resolvable:$true] %s42
      %48 = dma.hbm_to_vmem [thread:$0]  %s0, 256, %s43, [#allocation3], 128, 128, 8
    $region5: #{tpu_custom_call.1} parent=1 // pred_fallthru
      _
    // Predicated region
    $region6: #{tpu_custom_call.1} parent=1 // pred_check
      _
    $region7: #{tpu_custom_call.1} parent=1 // pred_check_branch
      %50 = sbr.rel (0) target = $region9
    $region8: #{tpu_custom_call.1} parent=1 // pred_region
      %s52 = ssub.s32 384, 384
      %53 = vsyncadd [#allocation6], %s52
      %s54 = sshll.u32 [#allocation5], 4
      %s55 = int_to_ptr.vmem [resolvable:$true] %s54
      %60 = dma.hbm_to_vmem [thread:$0]  %s1, 384, %s55, [#allocation6], 192, 192, 12
    $region9: #{tpu_custom_call.1} parent=1 // pred_fallthru
      _
    // Predicated region
    $region10: #{tpu_custom_call.1} parent=1 // pred_check
      _
    $region11: #{tpu_custom_call.1} parent=1 // pred_check_branch
      %62 = sbr.rel (0) target = $region13
    $region12: #{tpu_custom_call.1} parent=1 // pred_region
      %s64 = ssub.s32 2048, 2048
      %65 = vsyncadd [#allocation6], %s64
      %s66 = sshll.u32 [#allocation7], 4
      %s67 = int_to_ptr.vmem [resolvable:$true] %s66
      %72 = dma.hbm_to_vmem [thread:$0]  %s2, 2048, %s67, [#allocation6], 64, 64, 4
    $region13: #{tpu_custom_call.1} parent=1 // pred_fallthru
      _
    // Predicated region
    $region14: #{tpu_custom_call.1} parent=1 // pred_check
      _
    $region15: #{tpu_custom_call.1} parent=1 // pred_check_branch
      %74 = sbr.rel (0) target = $region17
    $region16: #{tpu_custom_call.1} parent=1 // pred_region
      _
    $region17: #{tpu_custom_call.1} parent=1 // pred_fallthru
      _
    // Predicated region
    $region18: #{tpu_custom_call.1} parent=1 // pred_check
      _
    $region19: #{tpu_custom_call.1} parent=1 // pred_check_branch
      %76 = sbr.rel (0) target = $region21
    $region20: #{tpu_custom_call.1} parent=1 // pred_region
      %s78 = ssub.s32 1024, 1024
      %79 = vsyncadd [#allocation9], %s78
      %s80 = sshll.u32 [#allocation8], 4
      %s81 = int_to_ptr.vmem [resolvable:$true] %s80
      %86 = dma.hbm_to_vmem [thread:$0]  %s4, 1024, %s81, [#allocation9], 64, 64, 4
    $region21: #{tpu_custom_call.1} parent=1 // pred_fallthru
      _
    // Predicated region
    $region22: #{tpu_custom_call.1} parent=1 // pred_check
      _
    $region23: #{tpu_custom_call.1} parent=1 // pred_check_branch
      %88 = sbr.rel (0) target = $region25
    $region24: #{tpu_custom_call.1} parent=1 // pred_region
      _
    $region25: #{tpu_custom_call.1} parent=1 // pred_fallthru
      _
    // Predicated region
    $region26: #{tpu_custom_call.1} parent=1 // pred_check
      _
    $region27: #{tpu_custom_call.1} parent=1 // pred_check_branch
      %90 = sbr.rel (0) target = $region29
    $region28: #{tpu_custom_call.1} parent=1 // pred_region
      %s92 = ssub.s32 1024, 1024
      %93 = vsyncadd [#allocation9], %s92
      %s94 = sshll.u32 [#allocation10], 4
      %s95 = int_to_ptr.vmem [resolvable:$true] %s94
      %100 = dma.hbm_to_vmem [thread:$0]  %s6, 1024, %s95, [#allocation9], 64, 64, 4
    $region29: #{tpu_custom_call.1} parent=1 // pred_fallthru
      _
    // Predicated region
    $region30: #{tpu_custom_call.1} parent=1 // pred_check
      _
    $region31: #{tpu_custom_call.1} parent=1 // pred_check_branch
      %102 = sbr.rel (0) target = $region33
    $region32: #{tpu_custom_call.1} parent=1 // pred_region
      _
    $region33: #{tpu_custom_call.1} parent=1 // pred_fallthru
      _
    // Predicated region
    $region34: #{tpu_custom_call.1} parent=1 // pred_check
      _
    $region35: #{tpu_custom_call.1} parent=1 // pred_check_branch
      %104 = sbr.rel (0) target = $region37
    $region36: #{tpu_custom_call.1} parent=1 // pred_region
      %s106 = ssub.s32 1024, 1024
      %107 = vsyncadd [#allocation12], %s106
      %s108 = sshll.u32 [#allocation11], 4
      %s109 = int_to_ptr.vmem [resolvable:$true] %s108
      %114 = dma.hbm_to_vmem [thread:$0]  %s8, 1024, %s109, [#allocation12], 64, 64, 4
    $region37: #{tpu_custom_call.1} parent=1 // pred_fallthru
      _
    // Predicated region
    $region38: #{tpu_custom_call.1} parent=1 // pred_check
      _
    $region39: #{tpu_custom_call.1} parent=1 // pred_check_branch
      %116 = sbr.rel (0) target = $region41
    $region40: #{tpu_custom_call.1} parent=1 // pred_region
      _
    $region41: #{tpu_custom_call.1} parent=1 // pred_fallthru
      _
    // Predicated region
    $region42: #{tpu_custom_call.1} parent=1 // pred_check
      _
    $region43: #{tpu_custom_call.1} parent=1 // pred_check_branch
      %118 = sbr.rel (0) target = $region45
    $region44: #{tpu_custom_call.1} parent=1 // pred_region
      %s120 = ssub.s32 6144, 6144
      %121 = vsyncadd [#allocation12], %s120
      %s122 = sshll.u32 [#allocation13], 4
      %s123 = int_to_ptr.vmem [resolvable:$true] %s122
      %128 = dma.hbm_to_vmem [thread:$0]  %s10, 6144, %s123, [#allocation12], 128, 128, 8
    $region45: #{tpu_custom_call.1} parent=1 // pred_fallthru
      _
    // Predicated region
    $region46: #{tpu_custom_call.1} parent=1 // pred_check
      _
    $region47: #{tpu_custom_call.1} parent=1 // pred_check_branch
      %130 = sbr.rel (0) target = $region49
    $region48: #{tpu_custom_call.1} parent=1 // pred_region
      _
    $region49: #{tpu_custom_call.1} parent=1 // pred_fallthru
      _
    // Predicated region
    $region50: #{tpu_custom_call.1} parent=1 // pred_check
      _
    $region51: #{tpu_custom_call.1} parent=1 // pred_check_branch
      %132 = sbr.rel (0) target = $region53
    $region52: #{tpu_custom_call.1} parent=1 // pred_region
      %s134 = ssub.s32 2048, 2048
      %135 = vsyncadd [#allocation15], %s134
      %s136 = sshll.u32 [#allocation14], 4
      %s137 = int_to_ptr.vmem [resolvable:$true] %s136
      %142 = dma.hbm_to_vmem [thread:$0]  %s12, 2048, %s137, [#allocation15], 64, 64, 4
    $region53: #{tpu_custom_call.1} parent=1 // pred_fallthru
      _
    // Predicated region
    $region54: #{tpu_custom_call.1} parent=1 // pred_check
      _
    $region55: #{tpu_custom_call.1} parent=1 // pred_check_branch
      %144 = sbr.rel (0) target = $region57
    $region56: #{tpu_custom_call.1} parent=1 // pred_region
      _
    $region57: #{tpu_custom_call.1} parent=1 // pred_fallthru
      _
    // Predicated region
    $region58: #{tpu_custom_call.1} parent=1 // pred_check
      _
    $region59: #{tpu_custom_call.1} parent=1 // pred_check_branch
      %146 = sbr.rel (0) target = $region61
    $region60: #{tpu_custom_call.1} parent=1 // pred_region
      %s148 = ssub.s32 1024, 1024
      %149 = vsyncadd [#allocation15], %s148
      %s150 = sshll.u32 [#allocation16], 4
      %s151 = int_to_ptr.vmem [resolvable:$true] %s150
      %156 = dma.hbm_to_vmem [thread:$0]  %s14, 1024, %s151, [#allocation15], 64, 64, 4
    $region61: #{tpu_custom_call.1} parent=1 // pred_fallthru
      _
    // Predicated region
    $region62: #{tpu_custom_call.1} parent=1 // pred_check
      _
    $region63: #{tpu_custom_call.1} parent=1 // pred_check_branch
      %158 = sbr.rel (0) target = $region65
    $region64: #{tpu_custom_call.1} parent=1 // pred_region
      _
    $region65: #{tpu_custom_call.1} parent=1 // pred_fallthru
      _
    // Predicated region
    $region66: #{tpu_custom_call.1} parent=1 // pred_check
      _
    $region67: #{tpu_custom_call.1} parent=1 // pred_check_branch
      %160 = sbr.rel (0) target = $region69
    $region68: #{tpu_custom_call.1} parent=1 // pred_region
      %s162 = ssub.s32 8192, 8192
      %163 = vsyncadd [#allocation18], %s162
      %s164 = sshll.u32 [#allocation17], 4
      %s165 = int_to_ptr.vmem [resolvable:$true] %s164
      %170 = dma.hbm_to_vmem [thread:$0]  %s16, 8192, %s165, [#allocation18], 512, 512, 32
    $region69: #{tpu_custom_call.1} parent=1 // pred_fallthru
      _
    // Predicated region
    $region70: #{tpu_custom_call.1} parent=1 // pred_check
      _
    $region71: #{tpu_custom_call.1} parent=1 // pred_check_branch
      %172 = sbr.rel (0) target = $region73
    $region72: #{tpu_custom_call.1} parent=1 // pred_region
      _
    $region73: #{tpu_custom_call.1} parent=1 // pred_fallthru
      _
    // Predicated region
    $region74: #{tpu_custom_call.1} parent=1 // pred_check
      _
    $region75: #{tpu_custom_call.1} parent=1 // pred_check_branch
      %174 = sbr.rel (0) target = $region77
    $region76: #{tpu_custom_call.1} parent=1 // pred_region
      %s176 = ssub.s32 32768, 32768
      %177 = vsyncadd [#allocation18], %s176
      %s178 = sshll.u32 [#allocation19], 4
      %s179 = int_to_ptr.vmem [resolvable:$true] %s178
      %184 = dma.hbm_to_vmem [thread:$0]  %s18, 32768, %s179, [#allocation18], 256, 256, 16
    $region77: #{tpu_custom_call.1} parent=1 // pred_fallthru
      _
    // Predicated region
    $region78: #{tpu_custom_call.1} parent=1 // pred_check
      _
    $region79: #{tpu_custom_call.1} parent=1 // pred_check_branch
      %186 = sbr.rel (0) target = $region81
    $region80: #{tpu_custom_call.1} parent=1 // pred_region
      _
    $region81: #{tpu_custom_call.1} parent=1 // pred_fallthru
      _
    // Predicated region
    $region82: #{tpu_custom_call.1} parent=1 // pred_check
      _
    $region83: #{tpu_custom_call.1} parent=1 // pred_check_branch
      %188 = sbr.rel (0) target = $region85
    $region84: #{tpu_custom_call.1} parent=1 // pred_region
      %s190 = ssub.s32 8192, 8192
      %191 = vsyncadd [#allocation21], %s190
      %s192 = sshll.u32 [#allocation20], 4
      %s193 = int_to_ptr.vmem [resolvable:$true] %s192
      %198 = dma.hbm_to_vmem [thread:$0]  %s20, 8192, %s193, [#allocation21], 128, 128, 8
    $region85: #{tpu_custom_call.1} parent=1 // pred_fallthru
      _
    // Predicated region
    $region86: #{tpu_custom_call.1} parent=1 // pred_check
      _
    $region87: #{tpu_custom_call.1} parent=1 // pred_check_branch
      %200 = sbr.rel (0) target = $region89
    $region88: #{tpu_custom_call.1} parent=1 // pred_region
      _
    $region89: #{tpu_custom_call.1} parent=1 // pred_fallthru
      _
    // Predicated region
    $region90: #{tpu_custom_call.1} parent=1 // pred_check
      _
    $region91: #{tpu_custom_call.1} parent=1 // pred_check_branch
      %202 = sbr.rel (0) target = $region93
    $region92: #{tpu_custom_call.1} parent=1 // pred_region
      %s204 = ssub.s32 2048, 2048
      %205 = vsyncadd [#allocation21], %s204
      %s206 = sshll.u32 [#allocation22], 4
      %s207 = int_to_ptr.vmem [resolvable:$true] %s206
      %212 = dma.hbm_to_vmem [thread:$0]  %s22, 2048, %s207, [#allocation21], 64, 64, 4
    $region93: #{tpu_custom_call.1} parent=1 // pred_fallthru
      _
    // Predicated region
    $region94: #{tpu_custom_call.1} parent=1 // pred_check
      _
    $region95: #{tpu_custom_call.1} parent=1 // pred_check_branch
      %214 = sbr.rel (0) target = $region97
    $region96: #{tpu_custom_call.1} parent=1 // pred_region
      _
    $region97: #{tpu_custom_call.1} parent=1 // pred_fallthru
      _
    // Predicated region
    $region98: #{tpu_custom_call.1} parent=1 // pred_check
      _
    $region99: #{tpu_custom_call.1} parent=1 // pred_check_branch
      %216 = sbr.rel (0) target = $region101
    $region100: #{tpu_custom_call.1} parent=1 // pred_region
      %217 = dma.done [#allocation3], 256
    $region101: #{tpu_custom_call.1} parent=1 // pred_fallthru
      _
    // Predicated region
    $region102: #{tpu_custom_call.1} parent=1 // pred_check
      _
    $region103: #{tpu_custom_call.1} parent=1 // pred_check_branch
      %219 = sbr.rel (0) target = $region105
    $region104: #{tpu_custom_call.1} parent=1 // pred_region
      %220 = dma.done [#allocation6], 384
    $region105: #{tpu_custom_call.1} parent=1 // pred_fallthru
      _
    // Predicated region
    $region106: #{tpu_custom_call.1} parent=1 // pred_check
      _
    $region107: #{tpu_custom_call.1} parent=1 // pred_check_branch
      %222 = sbr.rel (0) target = $region109
    $region108: #{tpu_custom_call.1} parent=1 // pred_region
      %223 = dma.done [#allocation6], 2048
    $region109: #{tpu_custom_call.1} parent=1 // pred_fallthru
      _
    // Predicated region
    $region110: #{tpu_custom_call.1} parent=1 // pred_check
      _
    $region111: #{tpu_custom_call.1} parent=1 // pred_check_branch
      %225 = sbr.rel (0) target = $region113
    $region112: #{tpu_custom_call.1} parent=1 // pred_region
      %226 = dma.done [#allocation9], 1024
    $region113: #{tpu_custom_call.1} parent=1 // pred_fallthru
      _
    // Predicated region
    $region114: #{tpu_custom_call.1} parent=1 // pred_check
      _
    $region115: #{tpu_custom_call.1} parent=1 // pred_check_branch
      %228 = sbr.rel (0) target = $region117
    $region116: #{tpu_custom_call.1} parent=1 // pred_region
      %229 = dma.done [#allocation9], 1024
    $region117: #{tpu_custom_call.1} parent=1 // pred_fallthru
      _
    // Predicated region
    $region118: #{tpu_custom_call.1} parent=1 // pred_check
      _
    $region119: #{tpu_custom_call.1} parent=1 // pred_check_branch
      %231 = sbr.rel (0) target = $region121
    $region120: #{tpu_custom_call.1} parent=1 // pred_region
      %232 = dma.done [#allocation12], 1024
    $region121: #{tpu_custom_call.1} parent=1 // pred_fallthru
      _
    // Predicated region
    $region122: #{tpu_custom_call.1} parent=1 // pred_check
      _
    $region123: #{tpu_custom_call.1} parent=1 // pred_check_branch
      %234 = sbr.rel (0) target = $region125
    $region124: #{tpu_custom_call.1} parent=1 // pred_region
      %235 = dma.done [#allocation12], 6144
    $region125: #{tpu_custom_call.1} parent=1 // pred_fallthru
      _
    // Predicated region
    $region126: #{tpu_custom_call.1} parent=1 // pred_check
      _
    $region127: #{tpu_custom_call.1} parent=1 // pred_check_branch
      %237 = sbr.rel (0) target = $region129
    $region128: #{tpu_custom_call.1} parent=1 // pred_region
      %238 = dma.done [#allocation15], 2048
    $region129: #{tpu_custom_call.1} parent=1 // pred_fallthru
      _
    // Predicated region
    $region130: #{tpu_custom_call.1} parent=1 // pred_check
      _
    $region131: #{tpu_custom_call.1} parent=1 // pred_check_branch
      %240 = sbr.rel (0) target = $region133
    $region132: #{tpu_custom_call.1} parent=1 // pred_region
      %241 = dma.done [#allocation15], 1024
    $region133: #{tpu_custom_call.1} parent=1 // pred_fallthru
      _
    // Predicated region
    $region134: #{tpu_custom_call.1} parent=1 // pred_check
      _
    $region135: #{tpu_custom_call.1} parent=1 // pred_check_branch
      %243 = sbr.rel (0) target = $region137
    $region136: #{tpu_custom_call.1} parent=1 // pred_region
      %244 = dma.done [#allocation18], 8192
    $region137: #{tpu_custom_call.1} parent=1 // pred_fallthru
      _
    // Predicated region
    $region138: #{tpu_custom_call.1} parent=1 // pred_check
      _
    $region139: #{tpu_custom_call.1} parent=1 // pred_check_branch
      %246 = sbr.rel (0) target = $region141
    $region140: #{tpu_custom_call.1} parent=1 // pred_region
      %247 = dma.done [#allocation18], 32768
    $region141: #{tpu_custom_call.1} parent=1 // pred_fallthru
      _
    // Predicated region
    $region142: #{tpu_custom_call.1} parent=1 // pred_check
      _
    $region143: #{tpu_custom_call.1} parent=1 // pred_check_branch
      %249 = sbr.rel (0) target = $region145
    $region144: #{tpu_custom_call.1} parent=1 // pred_region
      %250 = dma.done [#allocation21], 8192
    $region145: #{tpu_custom_call.1} parent=1 // pred_fallthru
      _
    // Predicated region
    $region146: #{tpu_custom_call.1} parent=1 // pred_check
      _
    $region147: #{tpu_custom_call.1} parent=1 // pred_check_branch
      %252 = sbr.rel (0) target = $region149
    $region148: #{tpu_custom_call.1} parent=1 // pred_region
      %253 = dma.done [#allocation21], 2048
    $region149: #{tpu_custom_call.1} parent=1 // pred_fallthru
      _
    %v255 = vld [vmem:[#allocation2] sm:$0xff]
    %v256 = vld [vmem:[#allocation2 + $0x8] sm:$0xff]
    %v257 = vld [vmem:[#allocation7] sm:$0xf]
    %v258 = vld [vmem:[#allocation7 + $0x4] sm:$0xf]
    %v259 = vld [vmem:[#allocation7 + $0x8] sm:$0xf]
    %v260 = vld [vmem:[#allocation7 + $0xc] sm:$0xf]
    %v261 = vld [vmem:[#allocation7 + $0x10] sm:$0xf]
    %v262 = vld [vmem:[#allocation7 + $0x14] sm:$0xf]
    %v263 = vld [vmem:[#allocation7 + $0x18] sm:$0xf]
    %v264 = vld [vmem:[#allocation7 + $0x1c] sm:$0xf]
    %v265 = vld [vmem:[#allocation7 + $0x20] sm:$0xf]
    %v266 = vld [vmem:[#allocation7 + $0x24] sm:$0xf]
    %v267 = vld [vmem:[#allocation7 + $0x28] sm:$0xf]
    %v268 = vld [vmem:[#allocation7 + $0x2c] sm:$0xf]
    %v269 = vld [vmem:[#allocation7 + $0x30] sm:$0xf]
    %v270 = vld [vmem:[#allocation7 + $0x34] sm:$0xf]
    %v271 = vld [vmem:[#allocation7 + $0x38] sm:$0xf]
    %v272 = vld [vmem:[#allocation7 + $0x3c] sm:$0xf]
    %v273 = vld [vmem:[#allocation7 + $0x40] sm:$0xf]
    %v274 = vld [vmem:[#allocation7 + $0x44] sm:$0xf]
    %v275 = vld [vmem:[#allocation7 + $0x48] sm:$0xf]
    %v276 = vld [vmem:[#allocation7 + $0x4c] sm:$0xf]
    %v277 = vld [vmem:[#allocation7 + $0x50] sm:$0xf]
    %v278 = vld [vmem:[#allocation7 + $0x54] sm:$0xf]
    %v279 = vld [vmem:[#allocation7 + $0x58] sm:$0xf]
    %v280 = vld [vmem:[#allocation7 + $0x5c] sm:$0xf]
    %v281 = vld [vmem:[#allocation7 + $0x60] sm:$0xf]
    %v282 = vld [vmem:[#allocation7 + $0x64] sm:$0xf]
    %v283 = vld [vmem:[#allocation7 + $0x68] sm:$0xf]
    %v284 = vld [vmem:[#allocation7 + $0x6c] sm:$0xf]
    %v285 = vld [vmem:[#allocation7 + $0x70] sm:$0xf]
    %v286 = vld [vmem:[#allocation7 + $0x74] sm:$0xf]
    %v287 = vld [vmem:[#allocation7 + $0x78] sm:$0xf]
    %v288 = vld [vmem:[#allocation7 + $0x7c] sm:$0xf]
    %v289 = vld [vmem:[%s3] sm:$0x1]
    %v291 = vlaneseq
    %v292 = vshrl.u32 %v291, 7
    %v293 = vsub.s32 0, %v292
    %v294 = vrot.slane %v289, %v293
    %v298 = vunpack.c.l.b16 %v255
    %v299 = vunpack.c.h.b16 %v255
    %v300 = vunpack.c.l.b16 %v256
    %v301 = vunpack.c.h.b16 %v256
    %v302 = vpack.c.b16 %v300, %v298
    %v303 = vpack.c.b16 %v301, %v299
    %v338 = vunpack.c.l.b16 %v257
    %v339 = vunpack.c.l.b16 %v258
    %v340 = vunpack.c.l.b16 %v259
    %v341 = vunpack.c.l.b16 %v260
    %v342 = vunpack.c.l.b16 %v261
    %v343 = vunpack.c.l.b16 %v262
    %v344 = vunpack.c.l.b16 %v263
    %v345 = vunpack.c.l.b16 %v264
    %v346 = vunpack.c.l.b16 %v265
    %v347 = vunpack.c.l.b16 %v266
    %v348 = vunpack.c.l.b16 %v267
    %v349 = vunpack.c.l.b16 %v268
    %v350 = vunpack.c.l.b16 %v269
    %v351 = vunpack.c.l.b16 %v270
    %v352 = vunpack.c.l.b16 %v271
    %v353 = vunpack.c.l.b16 %v272
    %v354 = vunpack.c.l.b16 %v273
    %v355 = vunpack.c.l.b16 %v274
    %v356 = vunpack.c.l.b16 %v275
    %v357 = vunpack.c.l.b16 %v276
    %v358 = vunpack.c.l.b16 %v277
    %v359 = vunpack.c.l.b16 %v278
    %v360 = vunpack.c.l.b16 %v279
    %v361 = vunpack.c.l.b16 %v280
    %v362 = vunpack.c.l.b16 %v281
    %v363 = vunpack.c.l.b16 %v282
    %v364 = vunpack.c.l.b16 %v283
    %v365 = vunpack.c.l.b16 %v284
    %v366 = vunpack.c.l.b16 %v285
    %v367 = vunpack.c.l.b16 %v286
    %v368 = vunpack.c.l.b16 %v287
    %v369 = vunpack.c.l.b16 %v288
    %v370 = vpack.c.b16 %v339, %v338
    %v371 = vpack.c.b16 %v341, %v340
    %v372 = vpack.c.b16 %v343, %v342
    %v373 = vpack.c.b16 %v345, %v344
    %v374 = vpack.c.b16 %v347, %v346
    %v375 = vpack.c.b16 %v349, %v348
    %v376 = vpack.c.b16 %v351, %v350
    %v377 = vpack.c.b16 %v353, %v352
    %v378 = vpack.c.b16 %v355, %v354
    %v379 = vpack.c.b16 %v357, %v356
    %v380 = vpack.c.b16 %v359, %v358
    %v381 = vpack.c.b16 %v361, %v360
    %v382 = vpack.c.b16 %v363, %v362
    %v383 = vpack.c.b16 %v365, %v364
    %v384 = vpack.c.b16 %v367, %v366
    %v385 = vpack.c.b16 %v369, %v368
    %402 = vmatprep.subr.bf16.mxu0 0
    %403 = vmatpush1.bf16.msra.mxu0 %v370
    %404 = vmatprep.subr.bf16.mxu0 0
    %405 = vmatpush1.bf16.msra.mxu0 %v371
    %406 = vmatprep.subr.bf16.mxu0 0
    %407 = vmatpush1.bf16.msra.mxu0 %v372
    %408 = vmatprep.subr.bf16.mxu0 0
    %409 = vmatpush1.bf16.msra.mxu0 %v373
    %410 = vmatprep.subr.bf16.mxu0 0
    %411 = vmatpush1.bf16.msra.mxu0 %v374
    %412 = vmatprep.subr.bf16.mxu0 0
    %413 = vmatpush1.bf16.msra.mxu0 %v375
    %414 = vmatprep.subr.bf16.mxu0 0
    %415 = vmatpush1.bf16.msra.mxu0 %v376
    %416 = vmatprep.subr.bf16.mxu0 0
    %417 = vmatpush1.bf16.msra.mxu0 %v377
    %418 = vmatprep.subr.bf16.mxu0 0
    %419 = vmatpush1.bf16.msra.mxu0 %v378
    %420 = vmatprep.subr.bf16.mxu0 0
    %421 = vmatpush1.bf16.msra.mxu0 %v379
    %422 = vmatprep.subr.bf16.mxu0 0
    %423 = vmatpush1.bf16.msra.mxu0 %v380
    %424 = vmatprep.subr.bf16.mxu0 0
    %425 = vmatpush1.bf16.msra.mxu0 %v381
    %426 = vmatprep.subr.bf16.mxu0 0
    %427 = vmatpush1.bf16.msra.mxu0 %v382
    %428 = vmatprep.subr.bf16.mxu0 0
    %429 = vmatpush1.bf16.msra.mxu0 %v383
    %430 = vmatprep.subr.bf16.mxu0 0
    %431 = vmatpush1.bf16.msra.mxu0 %v384
    %432 = vmatprep.subr.bf16.mxu0 0
    %433 = vmatpush1.bf16.msra.mxu0 %v385
    %434 = vmatprep.mubr.bf16.mxu0 %v303
    %435 = vmatmul.mubr.bf16.gmra.mrb[0].mxu0 %v302
    %v436 = vpop.f32.mrb[0].mxu0
    %v437 = vadd.f32 %v294, %v436
    %v438 = vpop.f32.mrb[0].mxu0
    %v439 = vpop.f32.mrb[0].mxu0
    %v440 = vadd.f32 %v294, %v439
    %v441 = vpop.f32.mrb[0].mxu0
    %442 = vdwg.mxu0
    %v443 = vmax.f32 %v437, 0.0
    %v444 = vmax.f32 %v440, 0.0
    %v445 = vpack.c.bf16 %v444, %v443
    %v446 = vld [vmem:[#allocation8] sm:$0xf]
    %v447 = vld [vmem:[#allocation8 + $0x4] sm:$0xf]
    %v448 = vld [vmem:[#allocation8 + $0x8] sm:$0xf]
    %v449 = vld [vmem:[#allocation8 + $0xc] sm:$0xf]
    %v450 = vld [vmem:[#allocation8 + $0x10] sm:$0xf]
    %v451 = vld [vmem:[#allocation8 + $0x14] sm:$0xf]
    %v452 = vld [vmem:[#allocation8 + $0x18] sm:$0xf]
    %v453 = vld [vmem:[#allocation8 + $0x1c] sm:$0xf]
    %v454 = vld [vmem:[#allocation8 + $0x20] sm:$0xf]
    %v455 = vld [vmem:[#allocation8 + $0x24] sm:$0xf]
    %v456 = vld [vmem:[#allocation8 + $0x28] sm:$0xf]
    %v457 = vld [vmem:[#allocation8 + $0x2c] sm:$0xf]
    %v458 = vld [vmem:[#allocation8 + $0x30] sm:$0xf]
    %v459 = vld [vmem:[#allocation8 + $0x34] sm:$0xf]
    %v460 = vld [vmem:[#allocation8 + $0x38] sm:$0xf]
    %v461 = vld [vmem:[#allocation8 + $0x3c] sm:$0xf]
    %v462 = vld [vmem:[%s5] sm:$0x1]
    %v464 = vlaneseq
    %v465 = vshrl.u32 %v464, 7
    %v466 = vsub.s32 0, %v465
    %v467 = vrot.slane %v462, %v466
    %v485 = vunpack.c.l.b16 %v446
    %v486 = vunpack.c.l.b16 %v447
    %v487 = vunpack.c.l.b16 %v448
    %v488 = vunpack.c.l.b16 %v449
    %v489 = vunpack.c.l.b16 %v450
    %v490 = vunpack.c.l.b16 %v451
    %v491 = vunpack.c.l.b16 %v452
    %v492 = vunpack.c.l.b16 %v453
    %v493 = vunpack.c.l.b16 %v454
    %v494 = vunpack.c.l.b16 %v455
    %v495 = vunpack.c.l.b16 %v456
    %v496 = vunpack.c.l.b16 %v457
    %v497 = vunpack.c.l.b16 %v458
    %v498 = vunpack.c.l.b16 %v459
    %v499 = vunpack.c.l.b16 %v460
    %v500 = vunpack.c.l.b16 %v461
    %v501 = vpack.c.b16 %v486, %v485
    %v502 = vpack.c.b16 %v488, %v487
    %v503 = vpack.c.b16 %v490, %v489
    %v504 = vpack.c.b16 %v492, %v491
    %v505 = vpack.c.b16 %v494, %v493
    %v506 = vpack.c.b16 %v496, %v495
    %v507 = vpack.c.b16 %v498, %v497
    %v508 = vpack.c.b16 %v500, %v499
    %517 = vmatprep.subr.bf16.mxu0 0
    %518 = vmatpush1.bf16.msra.mxu0 %v501
    %519 = vmatprep.subr.bf16.mxu0 0
    %520 = vmatpush1.bf16.msra.mxu0 %v502
    %521 = vmatprep.subr.bf16.mxu0 0
    %522 = vmatpush1.bf16.msra.mxu0 %v503
    %523 = vmatprep.subr.bf16.mxu0 0
    %524 = vmatpush1.bf16.msra.mxu0 %v504
    %525 = vmatprep.subr.bf16.mxu0 0
    %526 = vmatpush1.bf16.msra.mxu0 %v505
    %527 = vmatprep.subr.bf16.mxu0 0
    %528 = vmatpush1.bf16.msra.mxu0 %v506
    %529 = vmatprep.subr.bf16.mxu0 0
    %530 = vmatpush1.bf16.msra.mxu0 %v507
    %531 = vmatprep.subr.bf16.mxu0 0
    %532 = vmatpush1.bf16.msra.mxu0 %v508
    %533 = vmatprep.subr.bf16.mxu0 0
    %534 = vmatpush1.bf16.msra.mxu0 0
    %535 = vmatprep.subr.bf16.mxu0 0
    %536 = vmatpush1.bf16.msra.mxu0 0
    %537 = vmatprep.subr.bf16.mxu0 0
    %538 = vmatpush1.bf16.msra.mxu0 0
    %539 = vmatprep.subr.bf16.mxu0 0
    %540 = vmatpush1.bf16.msra.mxu0 0
    %541 = vmatprep.subr.bf16.mxu0 0
    %542 = vmatpush1.bf16.msra.mxu0 0
    %543 = vmatprep.subr.bf16.mxu0 0
    %544 = vmatpush1.bf16.msra.mxu0 0
    %545 = vmatprep.subr.bf16.mxu0 0
    %546 = vmatpush1.bf16.msra.mxu0 0
    %547 = vmatprep.subr.bf16.mxu0 0
    %548 = vmatpush1.bf16.msra.mxu0 0
    %549 = vmatprep.mubr.bf16.mxu0 0
    %550 = vmatmul.mubr.bf16.gmra.mrb[0].mxu0 %v445
    %v551 = vpop.f32.mrb[0].mxu0
    %v552 = vadd.f32 %v467, %v551
    %v553 = vpop.f32.mrb[0].mxu0
    %v554 = vpop.f32.mrb[0].mxu0
    %v555 = vadd.f32 %v467, %v554
    %v556 = vpop.f32.mrb[0].mxu0
    %557 = vdwg.mxu0
    %v558 = vmax.f32 %v552, 0.0
    %v559 = vmax.f32 %v555, 0.0
    %v560 = vpack.c.bf16 %v559, %v558
    %v561 = vld [vmem:[#allocation10] sm:$0xf]
    %v562 = vld [vmem:[#allocation10 + $0x4] sm:$0xf]
    %v563 = vld [vmem:[#allocation10 + $0x8] sm:$0xf]
    %v564 = vld [vmem:[#allocation10 + $0xc] sm:$0xf]
    %v565 = vld [vmem:[#allocation10 + $0x10] sm:$0xf]
    %v566 = vld [vmem:[#allocation10 + $0x14] sm:$0xf]
    %v567 = vld [vmem:[#allocation10 + $0x18] sm:$0xf]
    %v568 = vld [vmem:[#allocation10 + $0x1c] sm:$0xf]
    %v569 = vld [vmem:[#allocation10 + $0x20] sm:$0xf]
    %v570 = vld [vmem:[#allocation10 + $0x24] sm:$0xf]
    %v571 = vld [vmem:[#allocation10 + $0x28] sm:$0xf]
    %v572 = vld [vmem:[#allocation10 + $0x2c] sm:$0xf]
    %v573 = vld [vmem:[#allocation10 + $0x30] sm:$0xf]
    %v574 = vld [vmem:[#allocation10 + $0x34] sm:$0xf]
    %v575 = vld [vmem:[#allocation10 + $0x38] sm:$0xf]
    %v576 = vld [vmem:[#allocation10 + $0x3c] sm:$0xf]
    %v577 = vld [vmem:[%s7] sm:$0x1]
    %v579 = vlaneseq
    %v580 = vshrl.u32 %v579, 7
    %v581 = vsub.s32 0, %v580
    %v582 = vrot.slane %v577, %v581
    %v600 = vunpack.c.l.b16 %v561
    %v601 = vunpack.c.l.b16 %v562
    %v602 = vunpack.c.l.b16 %v563
    %v603 = vunpack.c.l.b16 %v564
    %v604 = vunpack.c.l.b16 %v565
    %v605 = vunpack.c.l.b16 %v566
    %v606 = vunpack.c.l.b16 %v567
    %v607 = vunpack.c.l.b16 %v568
    %v608 = vunpack.c.l.b16 %v569
    %v609 = vunpack.c.l.b16 %v570
    %v610 = vunpack.c.l.b16 %v571
    %v611 = vunpack.c.l.b16 %v572
    %v612 = vunpack.c.l.b16 %v573
    %v613 = vunpack.c.l.b16 %v574
    %v614 = vunpack.c.l.b16 %v575
    %v615 = vunpack.c.l.b16 %v576
    %v616 = vpack.c.b16 %v601, %v600
    %v617 = vpack.c.b16 %v603, %v602
    %v618 = vpack.c.b16 %v605, %v604
    %v619 = vpack.c.b16 %v607, %v606
    %v620 = vpack.c.b16 %v609, %v608
    %v621 = vpack.c.b16 %v611, %v610
    %v622 = vpack.c.b16 %v613, %v612
    %v623 = vpack.c.b16 %v615, %v614
    %632 = vmatprep.subr.bf16.mxu0 0
    %633 = vmatpush1.bf16.msra.mxu0 %v616
    %634 = vmatprep.subr.bf16.mxu0 0
    %635 = vmatpush1.bf16.msra.mxu0 %v617
    %636 = vmatprep.subr.bf16.mxu0 0
    %637 = vmatpush1.bf16.msra.mxu0 %v618
    %638 = vmatprep.subr.bf16.mxu0 0
    %639 = vmatpush1.bf16.msra.mxu0 %v619
    %640 = vmatprep.subr.bf16.mxu0 0
    %641 = vmatpush1.bf16.msra.mxu0 %v620
    %642 = vmatprep.subr.bf16.mxu0 0
    %643 = vmatpush1.bf16.msra.mxu0 %v621
    %644 = vmatprep.subr.bf16.mxu0 0
    %645 = vmatpush1.bf16.msra.mxu0 %v622
    %646 = vmatprep.subr.bf16.mxu0 0
    %647 = vmatpush1.bf16.msra.mxu0 %v623
    %648 = vmatprep.subr.bf16.mxu0 0
    %649 = vmatpush1.bf16.msra.mxu0 0
    %650 = vmatprep.subr.bf16.mxu0 0
    %651 = vmatpush1.bf16.msra.mxu0 0
    %652 = vmatprep.subr.bf16.mxu0 0
    %653 = vmatpush1.bf16.msra.mxu0 0
    %654 = vmatprep.subr.bf16.mxu0 0
    %655 = vmatpush1.bf16.msra.mxu0 0
    %656 = vmatprep.subr.bf16.mxu0 0
    %657 = vmatpush1.bf16.msra.mxu0 0
    %658 = vmatprep.subr.bf16.mxu0 0
    %659 = vmatpush1.bf16.msra.mxu0 0
    %660 = vmatprep.subr.bf16.mxu0 0
    %661 = vmatpush1.bf16.msra.mxu0 0
    %662 = vmatprep.subr.bf16.mxu0 0
    %663 = vmatpush1.bf16.msra.mxu0 0
    %664 = vmatprep.mubr.bf16.mxu0 0
    %665 = vmatmul.mubr.bf16.gmra.mrb[0].mxu0 %v560
    %v666 = vpop.f32.mrb[0].mxu0
    %v667 = vadd.f32 %v582, %v666
    %v668 = vpop.f32.mrb[0].mxu0
    %v669 = vpop.f32.mrb[0].mxu0
    %v670 = vadd.f32 %v582, %v669
    %v671 = vpop.f32.mrb[0].mxu0
    %672 = vdwg.mxu0
    %v673 = vmax.f32 %v667, 0.0
    %v674 = vmax.f32 %v670, 0.0
    %v675 = vpack.c.bf16 %v674, %v673
    %v676 = vld [vmem:[#allocation11] sm:$0xf]
    %v677 = vld [vmem:[#allocation11 + $0x4] sm:$0xf]
    %v678 = vld [vmem:[#allocation11 + $0x8] sm:$0xf]
    %v679 = vld [vmem:[#allocation11 + $0xc] sm:$0xf]
    %v680 = vld [vmem:[#allocation11 + $0x10] sm:$0xf]
    %v681 = vld [vmem:[#allocation11 + $0x14] sm:$0xf]
    %v682 = vld [vmem:[#allocation11 + $0x18] sm:$0xf]
    %v683 = vld [vmem:[#allocation11 + $0x1c] sm:$0xf]
    %v684 = vld [vmem:[#allocation11 + $0x20] sm:$0xf]
    %v685 = vld [vmem:[#allocation11 + $0x24] sm:$0xf]
    %v686 = vld [vmem:[#allocation11 + $0x28] sm:$0xf]
    %v687 = vld [vmem:[#allocation11 + $0x2c] sm:$0xf]
    %v688 = vld [vmem:[#allocation11 + $0x30] sm:$0xf]
    %v689 = vld [vmem:[#allocation11 + $0x34] sm:$0xf]
    %v690 = vld [vmem:[#allocation11 + $0x38] sm:$0xf]
    %v691 = vld [vmem:[#allocation11 + $0x3c] sm:$0xf]
    %v692 = vld [vmem:[%s9] sm:$0x1]
    %v694 = vlaneseq
    %v695 = vshrl.u32 %v694, 7
    %v696 = vsub.s32 0, %v695
    %v697 = vrot.slane %v692, %v696
    %v715 = vunpack.c.l.b16 %v676
    %v716 = vunpack.c.l.b16 %v677
    %v717 = vunpack.c.l.b16 %v678
    %v718 = vunpack.c.l.b16 %v679
    %v719 = vunpack.c.l.b16 %v680
    %v720 = vunpack.c.l.b16 %v681
    %v721 = vunpack.c.l.b16 %v682
    %v722 = vunpack.c.l.b16 %v683
    %v723 = vunpack.c.l.b16 %v684
    %v724 = vunpack.c.l.b16 %v685
    %v725 = vunpack.c.l.b16 %v686
    %v726 = vunpack.c.l.b16 %v687
    %v727 = vunpack.c.l.b16 %v688
    %v728 = vunpack.c.l.b16 %v689
    %v729 = vunpack.c.l.b16 %v690
    %v730 = vunpack.c.l.b16 %v691
    %v731 = vpack.c.b16 %v716, %v715
    %v732 = vpack.c.b16 %v718, %v717
    %v733 = vpack.c.b16 %v720, %v719
    %v734 = vpack.c.b16 %v722, %v721
    %v735 = vpack.c.b16 %v724, %v723
    %v736 = vpack.c.b16 %v726, %v725
    %v737 = vpack.c.b16 %v728, %v727
    %v738 = vpack.c.b16 %v730, %v729
    %747 = vmatprep.subr.bf16.mxu0 0
    %748 = vmatpush1.bf16.msra.mxu0 %v731
    %749 = vmatprep.subr.bf16.mxu0 0
    %750 = vmatpush1.bf16.msra.mxu0 %v732
    %751 = vmatprep.subr.bf16.mxu0 0
    %752 = vmatpush1.bf16.msra.mxu0 %v733
    %753 = vmatprep.subr.bf16.mxu0 0
    %754 = vmatpush1.bf16.msra.mxu0 %v734
    %755 = vmatprep.subr.bf16.mxu0 0
    %756 = vmatpush1.bf16.msra.mxu0 %v735
    %757 = vmatprep.subr.bf16.mxu0 0
    %758 = vmatpush1.bf16.msra.mxu0 %v736
    %759 = vmatprep.subr.bf16.mxu0 0
    %760 = vmatpush1.bf16.msra.mxu0 %v737
    %761 = vmatprep.subr.bf16.mxu0 0
    %762 = vmatpush1.bf16.msra.mxu0 %v738
    %763 = vmatprep.subr.bf16.mxu0 0
    %764 = vmatpush1.bf16.msra.mxu0 0
    %765 = vmatprep.subr.bf16.mxu0 0
    %766 = vmatpush1.bf16.msra.mxu0 0
    %767 = vmatprep.subr.bf16.mxu0 0
    %768 = vmatpush1.bf16.msra.mxu0 0
    %769 = vmatprep.subr.bf16.mxu0 0
    %770 = vmatpush1.bf16.msra.mxu0 0
    %771 = vmatprep.subr.bf16.mxu0 0
    %772 = vmatpush1.bf16.msra.mxu0 0
    %773 = vmatprep.subr.bf16.mxu0 0
    %774 = vmatpush1.bf16.msra.mxu0 0
    %775 = vmatprep.subr.bf16.mxu0 0
    %776 = vmatpush1.bf16.msra.mxu0 0
    %777 = vmatprep.subr.bf16.mxu0 0
    %778 = vmatpush1.bf16.msra.mxu0 0
    %779 = vmatprep.mubr.bf16.mxu0 0
    %780 = vmatmul.mubr.bf16.gmra.mrb[0].mxu0 %v675
    %v781 = vpop.f32.mrb[0].mxu0
    %v782 = vadd.f32 %v697, %v781
    %v783 = vpop.f32.mrb[0].mxu0
    %v784 = vpop.f32.mrb[0].mxu0
    %v785 = vadd.f32 %v697, %v784
    %v786 = vpop.f32.mrb[0].mxu0
    %787 = vdwg.mxu0
    %v788 = vmax.f32 %v782, 0.0
    %v789 = vmax.f32 %v785, 0.0
    %v790 = vld [vmem:[#allocation5] sm:$0xff]
    %v791 = vld [vmem:[#allocation5 + $0x8] sm:$0xf]
    %v792 = vld [vmem:[#allocation5 + $0xc] sm:$0xff]
    %v793 = vld [vmem:[#allocation5 + $0x14] sm:$0xf]
    %v794 = vld [vmem:[#allocation13] sm:$0xff]
    %v795 = vld [vmem:[#allocation13 + $0x8] sm:$0xff]
    %v796 = vld [vmem:[#allocation13 + $0x10] sm:$0xff]
    %v797 = vld [vmem:[#allocation13 + $0x18] sm:$0xff]
    %v798 = vld [vmem:[#allocation13 + $0x20] sm:$0xff]
    %v799 = vld [vmem:[#allocation13 + $0x28] sm:$0xff]
    %v800 = vld [vmem:[#allocation13 + $0x30] sm:$0xff]
    %v801 = vld [vmem:[#allocation13 + $0x38] sm:$0xff]
    %v802 = vld [vmem:[#allocation13 + $0x40] sm:$0xff]
    %v803 = vld [vmem:[#allocation13 + $0x48] sm:$0xff]
    %v804 = vld [vmem:[#allocation13 + $0x50] sm:$0xff]
    %v805 = vld [vmem:[#allocation13 + $0x58] sm:$0xff]
    %v806 = vld [vmem:[#allocation13 + $0x60] sm:$0xff]
    %v807 = vld [vmem:[#allocation13 + $0x68] sm:$0xff]
    %v808 = vld [vmem:[#allocation13 + $0x70] sm:$0xff]
    %v809 = vld [vmem:[#allocation13 + $0x78] sm:$0xff]
    %v810 = vld [vmem:[#allocation13 + $0x80] sm:$0xff]
    %v811 = vld [vmem:[#allocation13 + $0x88] sm:$0xff]
    %v812 = vld [vmem:[#allocation13 + $0x90] sm:$0xff]
    %v813 = vld [vmem:[#allocation13 + $0x98] sm:$0xff]
    %v814 = vld [vmem:[#allocation13 + $0xa0] sm:$0xff]
    %v815 = vld [vmem:[#allocation13 + $0xa8] sm:$0xff]
    %v816 = vld [vmem:[#allocation13 + $0xb0] sm:$0xff]
    %v817 = vld [vmem:[#allocation13 + $0xb8] sm:$0xff]
    %v818 = vld [vmem:[#allocation13 + $0xc0] sm:$0xff]
    %v819 = vld [vmem:[#allocation13 + $0xc8] sm:$0xff]
    %v820 = vld [vmem:[#allocation13 + $0xd0] sm:$0xff]
    %v821 = vld [vmem:[#allocation13 + $0xd8] sm:$0xff]
    %v822 = vld [vmem:[#allocation13 + $0xe0] sm:$0xff]
    %v823 = vld [vmem:[#allocation13 + $0xe8] sm:$0xff]
    %v824 = vld [vmem:[#allocation13 + $0xf0] sm:$0xff]
    %v825 = vld [vmem:[#allocation13 + $0xf8] sm:$0xff]
    %v826 = vld [vmem:[#allocation13 + $0x100] sm:$0xff]
    %v827 = vld [vmem:[#allocation13 + $0x108] sm:$0xff]
    %v828 = vld [vmem:[#allocation13 + $0x110] sm:$0xff]
    %v829 = vld [vmem:[#allocation13 + $0x118] sm:$0xff]
    %v830 = vld [vmem:[#allocation13 + $0x120] sm:$0xff]
    %v831 = vld [vmem:[#allocation13 + $0x128] sm:$0xff]
    %v832 = vld [vmem:[#allocation13 + $0x130] sm:$0xff]
    %v833 = vld [vmem:[#allocation13 + $0x138] sm:$0xff]
    %v834 = vld [vmem:[#allocation13 + $0x140] sm:$0xff]
    %v835 = vld [vmem:[#allocation13 + $0x148] sm:$0xff]
    %v836 = vld [vmem:[#allocation13 + $0x150] sm:$0xff]
    %v837 = vld [vmem:[#allocation13 + $0x158] sm:$0xff]
    %v838 = vld [vmem:[#allocation13 + $0x160] sm:$0xff]
    %v839 = vld [vmem:[#allocation13 + $0x168] sm:$0xff]
    %v840 = vld [vmem:[#allocation13 + $0x170] sm:$0xff]
    %v841 = vld [vmem:[#allocation13 + $0x178] sm:$0xff]
    %v842 = vld [vmem:[%s11] sm:$0x3]
    %v844 = vlaneseq
    %v845 = vshrl.u32 %v844, 7
    %v846 = vsub.s32 0, %v845
    %v847 = vrot.slane %v842, %v846
    %v848 = vlaneseq
    %v849 = vshrl.u32 %v848, 7
    %v850 = vsub.s32 1, %v849
    %v851 = vrot.slane %v842, %v850
    %v858 = vunpack.c.l.b16 %v790
    %v859 = vunpack.c.h.b16 %v790
    %v860 = vunpack.c.l.b16 %v791
    %v861 = vunpack.c.l.b16 %v792
    %v862 = vunpack.c.h.b16 %v792
    %v863 = vunpack.c.l.b16 %v793
    %v864 = vpack.c.b16 %v861, %v858
    %v865 = vpack.c.b16 %v862, %v859
    %v866 = vpack.c.b16 %v863, %v860
    %v918 = vunpack.c.l.b16 %v794
    %v919 = vunpack.c.h.b16 %v794
    %v920 = vunpack.c.l.b16 %v795
    %v921 = vunpack.c.h.b16 %v795
    %v922 = vunpack.c.l.b16 %v796
    %v923 = vunpack.c.h.b16 %v796
    %v924 = vunpack.c.l.b16 %v797
    %v925 = vunpack.c.h.b16 %v797
    %v926 = vunpack.c.l.b16 %v798
    %v927 = vunpack.c.h.b16 %v798
    %v928 = vunpack.c.l.b16 %v799
    %v929 = vunpack.c.h.b16 %v799
    %v930 = vunpack.c.l.b16 %v800
    %v931 = vunpack.c.h.b16 %v800
    %v932 = vunpack.c.l.b16 %v801
    %v933 = vunpack.c.h.b16 %v801
    %v934 = vunpack.c.l.b16 %v802
    %v935 = vunpack.c.h.b16 %v802
    %v936 = vunpack.c.l.b16 %v803
    %v937 = vunpack.c.h.b16 %v803
    %v938 = vunpack.c.l.b16 %v804
    %v939 = vunpack.c.h.b16 %v804
    %v940 = vunpack.c.l.b16 %v805
    %v941 = vunpack.c.h.b16 %v805
    %v942 = vunpack.c.l.b16 %v806
    %v943 = vunpack.c.h.b16 %v806
    %v944 = vunpack.c.l.b16 %v807
    %v945 = vunpack.c.h.b16 %v807
    %v946 = vunpack.c.l.b16 %v808
    %v947 = vunpack.c.h.b16 %v808
    %v948 = vunpack.c.l.b16 %v809
    %v949 = vunpack.c.h.b16 %v809
    %v950 = vunpack.c.l.b16 %v810
    %v951 = vunpack.c.h.b16 %v810
    %v952 = vunpack.c.l.b16 %v811
    %v953 = vunpack.c.h.b16 %v811
    %v954 = vunpack.c.l.b16 %v812
    %v955 = vunpack.c.h.b16 %v812
    %v956 = vunpack.c.l.b16 %v813
    %v957 = vunpack.c.h.b16 %v813
    %v958 = vunpack.c.l.b16 %v814
    %v959 = vunpack.c.h.b16 %v814
    %v960 = vunpack.c.l.b16 %v815
    %v961 = vunpack.c.h.b16 %v815
    %v962 = vunpack.c.l.b16 %v816
    %v963 = vunpack.c.h.b16 %v816
    %v964 = vunpack.c.l.b16 %v817
    %v965 = vunpack.c.h.b16 %v817
    %v966 = vunpack.c.l.b16 %v818
    %v967 = vunpack.c.h.b16 %v818
    %v968 = vunpack.c.l.b16 %v819
    %v969 = vunpack.c.h.b16 %v819
    %v970 = vunpack.c.l.b16 %v820
    %v971 = vunpack.c.h.b16 %v820
    %v972 = vunpack.c.l.b16 %v821
    %v973 = vunpack.c.h.b16 %v821
    %v974 = vunpack.c.l.b16 %v822
    %v975 = vunpack.c.h.b16 %v822
    %v976 = vunpack.c.l.b16 %v823
    %v977 = vunpack.c.h.b16 %v823
    %v978 = vunpack.c.l.b16 %v824
    %v979 = vunpack.c.h.b16 %v824
    %v980 = vunpack.c.l.b16 %v825
    %v981 = vunpack.c.h.b16 %v825
    %v982 = vunpack.c.l.b16 %v826
    %v983 = vunpack.c.h.b16 %v826
    %v984 = vunpack.c.l.b16 %v827
    %v985 = vunpack.c.h.b16 %v827
    %v986 = vunpack.c.l.b16 %v828
    %v987 = vunpack.c.h.b16 %v828
    %v988 = vunpack.c.l.b16 %v829
    %v989 = vunpack.c.h.b16 %v829
    %v990 = vunpack.c.l.b16 %v830
    %v991 = vunpack.c.h.b16 %v830
    %v992 = vunpack.c.l.b16 %v831
    %v993 = vunpack.c.h.b16 %v831
    %v994 = vunpack.c.l.b16 %v832
    %v995 = vunpack.c.h.b16 %v832
    %v996 = vunpack.c.l.b16 %v833
    %v997 = vunpack.c.h.b16 %v833
    %v998 = vunpack.c.l.b16 %v834
    %v999 = vunpack.c.h.b16 %v834
    %v1000 = vunpack.c.l.b16 %v835
    %v1001 = vunpack.c.h.b16 %v835
    %v1002 = vunpack.c.l.b16 %v836
    %v1003 = vunpack.c.h.b16 %v836
    %v1004 = vunpack.c.l.b16 %v837
    %v1005 = vunpack.c.h.b16 %v837
    %v1006 = vunpack.c.l.b16 %v838
    %v1007 = vunpack.c.h.b16 %v838
    %v1008 = vunpack.c.l.b16 %v839
    %v1009 = vunpack.c.h.b16 %v839
    %v1010 = vunpack.c.l.b16 %v840
    %v1011 = vunpack.c.h.b16 %v840
    %v1012 = vunpack.c.l.b16 %v841
    %v1013 = vunpack.c.h.b16 %v841
    %v1014 = vpack.c.b16 %v920, %v918
    %v1015 = vpack.c.b16 %v921, %v919
    %v1016 = vpack.c.b16 %v924, %v922
    %v1017 = vpack.c.b16 %v925, %v923
    %v1018 = vpack.c.b16 %v928, %v926
    %v1019 = vpack.c.b16 %v929, %v927
    %v1020 = vpack.c.b16 %v932, %v930
    %v1021 = vpack.c.b16 %v933, %v931
    %v1022 = vpack.c.b16 %v936, %v934
    %v1023 = vpack.c.b16 %v937, %v935
    %v1024 = vpack.c.b16 %v940, %v938
    %v1025 = vpack.c.b16 %v941, %v939
    %v1026 = vpack.c.b16 %v944, %v942
    %v1027 = vpack.c.b16 %v945, %v943
    %v1028 = vpack.c.b16 %v948, %v946
    %v1029 = vpack.c.b16 %v949, %v947
    %v1030 = vpack.c.b16 %v952, %v950
    %v1031 = vpack.c.b16 %v953, %v951
    %v1032 = vpack.c.b16 %v956, %v954
    %v1033 = vpack.c.b16 %v957, %v955
    %v1034 = vpack.c.b16 %v960, %v958
    %v1035 = vpack.c.b16 %v961, %v959
    %v1036 = vpack.c.b16 %v964, %v962
    %v1037 = vpack.c.b16 %v965, %v963
    %v1038 = vpack.c.b16 %v968, %v966
    %v1039 = vpack.c.b16 %v969, %v967
    %v1040 = vpack.c.b16 %v972, %v970
    %v1041 = vpack.c.b16 %v973, %v971
    %v1042 = vpack.c.b16 %v976, %v974
    %v1043 = vpack.c.b16 %v977, %v975
    %v1044 = vpack.c.b16 %v980, %v978
    %v1045 = vpack.c.b16 %v981, %v979
    %v1046 = vpack.c.b16 %v984, %v982
    %v1047 = vpack.c.b16 %v985, %v983
    %v1048 = vpack.c.b16 %v988, %v986
    %v1049 = vpack.c.b16 %v989, %v987
    %v1050 = vpack.c.b16 %v992, %v990
    %v1051 = vpack.c.b16 %v993, %v991
    %v1052 = vpack.c.b16 %v996, %v994
    %v1053 = vpack.c.b16 %v997, %v995
    %v1054 = vpack.c.b16 %v1000, %v998
    %v1055 = vpack.c.b16 %v1001, %v999
    %v1056 = vpack.c.b16 %v1004, %v1002
    %v1057 = vpack.c.b16 %v1005, %v1003
    %v1058 = vpack.c.b16 %v1008, %v1006
    %v1059 = vpack.c.b16 %v1009, %v1007
    %v1060 = vpack.c.b16 %v1012, %v1010
    %v1061 = vpack.c.b16 %v1013, %v1011
    %1110 = vmatprep.subr.bf16.mxu0 %v1015
    %1111 = vmatpush1.bf16.msra.mxu0 %v1014
    %1112 = vmatprep.subr.bf16.mxu0 %v1017
    %1113 = vmatpush1.bf16.msra.mxu0 %v1016
    %1114 = vmatprep.subr.bf16.mxu0 %v1019
    %1115 = vmatpush1.bf16.msra.mxu0 %v1018
    %1116 = vmatprep.subr.bf16.mxu0 %v1021
    %1117 = vmatpush1.bf16.msra.mxu0 %v1020
    %1118 = vmatprep.subr.bf16.mxu0 %v1023
    %1119 = vmatpush1.bf16.msra.mxu0 %v1022
    %1120 = vmatprep.subr.bf16.mxu0 %v1025
    %1121 = vmatpush1.bf16.msra.mxu0 %v1024
    %1122 = vmatprep.subr.bf16.mxu0 %v1027
    %1123 = vmatpush1.bf16.msra.mxu0 %v1026
    %1124 = vmatprep.subr.bf16.mxu0 %v1029
    %1125 = vmatpush1.bf16.msra.mxu0 %v1028
    %1126 = vmatprep.subr.bf16.mxu0 %v1031
    %1127 = vmatpush1.bf16.msra.mxu0 %v1030
    %1128 = vmatprep.subr.bf16.mxu0 %v1033
    %1129 = vmatpush1.bf16.msra.mxu0 %v1032
    %1130 = vmatprep.subr.bf16.mxu0 %v1035
    %1131 = vmatpush1.bf16.msra.mxu0 %v1034
    %1132 = vmatprep.subr.bf16.mxu0 %v1037
    %1133 = vmatpush1.bf16.msra.mxu0 %v1036
    %1134 = vmatprep.subr.bf16.mxu0 %v1039
    %1135 = vmatpush1.bf16.msra.mxu0 %v1038
    %1136 = vmatprep.subr.bf16.mxu0 %v1041
    %1137 = vmatpush1.bf16.msra.mxu0 %v1040
    %1138 = vmatprep.subr.bf16.mxu0 %v1043
    %1139 = vmatpush1.bf16.msra.mxu0 %v1042
    %1140 = vmatprep.subr.bf16.mxu0 %v1045
    %1141 = vmatpush1.bf16.msra.mxu0 %v1044
    %1142 = vmatprep.mubr.bf16.mxu0 %v865
    %1143 = vmatmul.mubr.bf16.gmra.mrb[0].mxu0 %v864
    %v1144 = vpop.f32.mrb[0].mxu0
    %v1145 = vadd.f32 %v847, %v1144
    %v1146 = vpop.f32.mrb[0].mxu0
    %v1147 = vadd.f32 %v851, %v1146
    %v1148 = vpop.f32.mrb[0].mxu0
    %v1149 = vadd.f32 %v847, %v1148
    %v1150 = vpop.f32.mrb[0].mxu0
    %v1151 = vadd.f32 %v851, %v1150
    %1152 = vdwg.mxu0
    %1153 = vmatprep.subr.bf16.mxu0 %v1047
    %1154 = vmatpush1.bf16.msra.mxu0 %v1046
    %1155 = vmatprep.subr.bf16.mxu0 %v1049
    %1156 = vmatpush1.bf16.msra.mxu0 %v1048
    %1157 = vmatprep.subr.bf16.mxu0 %v1051
    %1158 = vmatpush1.bf16.msra.mxu0 %v1050
    %1159 = vmatprep.subr.bf16.mxu0 %v1053
    %1160 = vmatpush1.bf16.msra.mxu0 %v1052
    %1161 = vmatprep.subr.bf16.mxu0 %v1055
    %1162 = vmatpush1.bf16.msra.mxu0 %v1054
    %1163 = vmatprep.subr.bf16.mxu0 %v1057
    %1164 = vmatpush1.bf16.msra.mxu0 %v1056
    %1165 = vmatprep.subr.bf16.mxu0 %v1059
    %1166 = vmatpush1.bf16.msra.mxu0 %v1058
    %1167 = vmatprep.subr.bf16.mxu0 %v1061
    %1168 = vmatpush1.bf16.msra.mxu0 %v1060
    %1169 = vmatprep.subr.bf16.mxu0 0
    %1170 = vmatpush1.bf16.msra.mxu0 0
    %1171 = vmatprep.subr.bf16.mxu0 0
    %1172 = vmatpush1.bf16.msra.mxu0 0
    %1173 = vmatprep.subr.bf16.mxu0 0
    %1174 = vmatpush1.bf16.msra.mxu0 0
    %1175 = vmatprep.subr.bf16.mxu0 0
    %1176 = vmatpush1.bf16.msra.mxu0 0
    %1177 = vmatprep.subr.bf16.mxu0 0
    %1178 = vmatpush1.bf16.msra.mxu0 0
    %1179 = vmatprep.subr.bf16.mxu0 0
    %1180 = vmatpush1.bf16.msra.mxu0 0
    %1181 = vmatprep.subr.bf16.mxu0 0
    %1182 = vmatpush1.bf16.msra.mxu0 0
    %1183 = vmatprep.subr.bf16.mxu0 0
    %1184 = vmatpush1.bf16.msra.mxu0 0
    %1185 = vmatprep.mubr.bf16.mxu0 0
    %1186 = vmatmul.mubr.bf16.gmra.mrb[0].mxu0 %v866
    %v1187 = vpop.f32.mrb[0].mxu0
    %v1188 = vadd.f32 %v1145, %v1187
    %v1189 = vpop.f32.mrb[0].mxu0
    %v1190 = vadd.f32 %v1147, %v1189
    %v1191 = vpop.f32.mrb[0].mxu0
    %v1192 = vadd.f32 %v1149, %v1191
    %v1193 = vpop.f32.mrb[0].mxu0
    %v1194 = vadd.f32 %v1151, %v1193
    %1195 = vdwg.mxu0
    %v1196 = vmax.f32 %v1188, 0.0
    %v1197 = vmax.f32 %v1190, 0.0
    %v1198 = vmax.f32 %v1192, 0.0
    %v1199 = vmax.f32 %v1194, 0.0
    %v1200 = vpack.c.bf16 %v1198, %v1196
    %v1201 = vpack.c.bf16 %v1199, %v1197
    %v1202 = vld [vmem:[#allocation14] sm:$0xf]
    %v1203 = vld [vmem:[#allocation14 + $0x4] sm:$0xf]
    %v1204 = vld [vmem:[#allocation14 + $0x8] sm:$0xf]
    %v1205 = vld [vmem:[#allocation14 + $0xc] sm:$0xf]
    %v1206 = vld [vmem:[#allocation14 + $0x10] sm:$0xf]
    %v1207 = vld [vmem:[#allocation14 + $0x14] sm:$0xf]
    %v1208 = vld [vmem:[#allocation14 + $0x18] sm:$0xf]
    %v1209 = vld [vmem:[#allocation14 + $0x1c] sm:$0xf]
    %v1210 = vld [vmem:[#allocation14 + $0x20] sm:$0xf]
    %v1211 = vld [vmem:[#allocation14 + $0x24] sm:$0xf]
    %v1212 = vld [vmem:[#allocation14 + $0x28] sm:$0xf]
    %v1213 = vld [vmem:[#allocation14 + $0x2c] sm:$0xf]
    %v1214 = vld [vmem:[#allocation14 + $0x30] sm:$0xf]
    %v1215 = vld [vmem:[#allocation14 + $0x34] sm:$0xf]
    %v1216 = vld [vmem:[#allocation14 + $0x38] sm:$0xf]
    %v1217 = vld [vmem:[#allocation14 + $0x3c] sm:$0xf]
    %v1218 = vld [vmem:[#allocation14 + $0x40] sm:$0xf]
    %v1219 = vld [vmem:[#allocation14 + $0x44] sm:$0xf]
    %v1220 = vld [vmem:[#allocation14 + $0x48] sm:$0xf]
    %v1221 = vld [vmem:[#allocation14 + $0x4c] sm:$0xf]
    %v1222 = vld [vmem:[#allocation14 + $0x50] sm:$0xf]
    %v1223 = vld [vmem:[#allocation14 + $0x54] sm:$0xf]
    %v1224 = vld [vmem:[#allocation14 + $0x58] sm:$0xf]
    %v1225 = vld [vmem:[#allocation14 + $0x5c] sm:$0xf]
    %v1226 = vld [vmem:[#allocation14 + $0x60] sm:$0xf]
    %v1227 = vld [vmem:[#allocation14 + $0x64] sm:$0xf]
    %v1228 = vld [vmem:[#allocation14 + $0x68] sm:$0xf]
    %v1229 = vld [vmem:[#allocation14 + $0x6c] sm:$0xf]
    %v1230 = vld [vmem:[#allocation14 + $0x70] sm:$0xf]
    %v1231 = vld [vmem:[#allocation14 + $0x74] sm:$0xf]
    %v1232 = vld [vmem:[#allocation14 + $0x78] sm:$0xf]
    %v1233 = vld [vmem:[#allocation14 + $0x7c] sm:$0xf]
    %v1234 = vld [vmem:[%s13] sm:$0x1]
    %v1236 = vlaneseq
    %v1237 = vshrl.u32 %v1236, 7
    %v1238 = vsub.s32 0, %v1237
    %v1239 = vrot.slane %v1234, %v1238
    %v1273 = vunpack.c.l.b16 %v1202
    %v1274 = vunpack.c.l.b16 %v1203
    %v1275 = vunpack.c.l.b16 %v1204
    %v1276 = vunpack.c.l.b16 %v1205
    %v1277 = vunpack.c.l.b16 %v1206
    %v1278 = vunpack.c.l.b16 %v1207
    %v1279 = vunpack.c.l.b16 %v1208
    %v1280 = vunpack.c.l.b16 %v1209
    %v1281 = vunpack.c.l.b16 %v1210
    %v1282 = vunpack.c.l.b16 %v1211
    %v1283 = vunpack.c.l.b16 %v1212
    %v1284 = vunpack.c.l.b16 %v1213
    %v1285 = vunpack.c.l.b16 %v1214
    %v1286 = vunpack.c.l.b16 %v1215
    %v1287 = vunpack.c.l.b16 %v1216
    %v1288 = vunpack.c.l.b16 %v1217
    %v1289 = vunpack.c.l.b16 %v1218
    %v1290 = vunpack.c.l.b16 %v1219
    %v1291 = vunpack.c.l.b16 %v1220
    %v1292 = vunpack.c.l.b16 %v1221
    %v1293 = vunpack.c.l.b16 %v1222
    %v1294 = vunpack.c.l.b16 %v1223
    %v1295 = vunpack.c.l.b16 %v1224
    %v1296 = vunpack.c.l.b16 %v1225
    %v1297 = vunpack.c.l.b16 %v1226
    %v1298 = vunpack.c.l.b16 %v1227
    %v1299 = vunpack.c.l.b16 %v1228
    %v1300 = vunpack.c.l.b16 %v1229
    %v1301 = vunpack.c.l.b16 %v1230
    %v1302 = vunpack.c.l.b16 %v1231
    %v1303 = vunpack.c.l.b16 %v1232
    %v1304 = vunpack.c.l.b16 %v1233
    %v1305 = vpack.c.b16 %v1274, %v1273
    %v1306 = vpack.c.b16 %v1276, %v1275
    %v1307 = vpack.c.b16 %v1278, %v1277
    %v1308 = vpack.c.b16 %v1280, %v1279
    %v1309 = vpack.c.b16 %v1282, %v1281
    %v1310 = vpack.c.b16 %v1284, %v1283
    %v1311 = vpack.c.b16 %v1286, %v1285
    %v1312 = vpack.c.b16 %v1288, %v1287
    %v1313 = vpack.c.b16 %v1290, %v1289
    %v1314 = vpack.c.b16 %v1292, %v1291
    %v1315 = vpack.c.b16 %v1294, %v1293
    %v1316 = vpack.c.b16 %v1296, %v1295
    %v1317 = vpack.c.b16 %v1298, %v1297
    %v1318 = vpack.c.b16 %v1300, %v1299
    %v1319 = vpack.c.b16 %v1302, %v1301
    %v1320 = vpack.c.b16 %v1304, %v1303
    %1337 = vmatprep.subr.bf16.mxu0 0
    %1338 = vmatpush1.bf16.msra.mxu0 %v1305
    %1339 = vmatprep.subr.bf16.mxu0 0
    %1340 = vmatpush1.bf16.msra.mxu0 %v1306
    %1341 = vmatprep.subr.bf16.mxu0 0
    %1342 = vmatpush1.bf16.msra.mxu0 %v1307
    %1343 = vmatprep.subr.bf16.mxu0 0
    %1344 = vmatpush1.bf16.msra.mxu0 %v1308
    %1345 = vmatprep.subr.bf16.mxu0 0
    %1346 = vmatpush1.bf16.msra.mxu0 %v1309
    %1347 = vmatprep.subr.bf16.mxu0 0
    %1348 = vmatpush1.bf16.msra.mxu0 %v1310
    %1349 = vmatprep.subr.bf16.mxu0 0
    %1350 = vmatpush1.bf16.msra.mxu0 %v1311
    %1351 = vmatprep.subr.bf16.mxu0 0
    %1352 = vmatpush1.bf16.msra.mxu0 %v1312
    %1353 = vmatprep.subr.bf16.mxu0 0
    %1354 = vmatpush1.bf16.msra.mxu0 %v1313
    %1355 = vmatprep.subr.bf16.mxu0 0
    %1356 = vmatpush1.bf16.msra.mxu0 %v1314
    %1357 = vmatprep.subr.bf16.mxu0 0
    %1358 = vmatpush1.bf16.msra.mxu0 %v1315
    %1359 = vmatprep.subr.bf16.mxu0 0
    %1360 = vmatpush1.bf16.msra.mxu0 %v1316
    %1361 = vmatprep.subr.bf16.mxu0 0
    %1362 = vmatpush1.bf16.msra.mxu0 %v1317
    %1363 = vmatprep.subr.bf16.mxu0 0
    %1364 = vmatpush1.bf16.msra.mxu0 %v1318
    %1365 = vmatprep.subr.bf16.mxu0 0
    %1366 = vmatpush1.bf16.msra.mxu0 %v1319
    %1367 = vmatprep.subr.bf16.mxu0 0
    %1368 = vmatpush1.bf16.msra.mxu0 %v1320
    %1369 = vmatprep.mubr.bf16.mxu0 %v1201
    %1370 = vmatmul.mubr.bf16.gmra.mrb[0].mxu0 %v1200
    %v1371 = vpop.f32.mrb[0].mxu0
    %v1372 = vadd.f32 %v1239, %v1371
    %v1373 = vpop.f32.mrb[0].mxu0
    %v1374 = vpop.f32.mrb[0].mxu0
    %v1375 = vadd.f32 %v1239, %v1374
    %v1376 = vpop.f32.mrb[0].mxu0
    %1377 = vdwg.mxu0
    %v1378 = vmax.f32 %v1372, 0.0
    %v1379 = vmax.f32 %v1375, 0.0
    %v1380 = vpack.c.bf16 %v1379, %v1378
    %v1381 = vld [vmem:[#allocation16] sm:$0xf]
    %v1382 = vld [vmem:[#allocation16 + $0x4] sm:$0xf]
    %v1383 = vld [vmem:[#allocation16 + $0x8] sm:$0xf]
    %v1384 = vld [vmem:[#allocation16 + $0xc] sm:$0xf]
    %v1385 = vld [vmem:[#allocation16 + $0x10] sm:$0xf]
    %v1386 = vld [vmem:[#allocation16 + $0x14] sm:$0xf]
    %v1387 = vld [vmem:[#allocation16 + $0x18] sm:$0xf]
    %v1388 = vld [vmem:[#allocation16 + $0x1c] sm:$0xf]
    %v1389 = vld [vmem:[#allocation16 + $0x20] sm:$0xf]
    %v1390 = vld [vmem:[#allocation16 + $0x24] sm:$0xf]
    %v1391 = vld [vmem:[#allocation16 + $0x28] sm:$0xf]
    %v1392 = vld [vmem:[#allocation16 + $0x2c] sm:$0xf]
    %v1393 = vld [vmem:[#allocation16 + $0x30] sm:$0xf]
    %v1394 = vld [vmem:[#allocation16 + $0x34] sm:$0xf]
    %v1395 = vld [vmem:[#allocation16 + $0x38] sm:$0xf]
    %v1396 = vld [vmem:[#allocation16 + $0x3c] sm:$0xf]
    %v1397 = vld [vmem:[%s15] sm:$0x1]
    %v1399 = vlaneseq
    %v1400 = vshrl.u32 %v1399, 7
    %v1401 = vsub.s32 0, %v1400
    %v1402 = vrot.slane %v1397, %v1401
    %v1420 = vunpack.c.l.b16 %v1381
    %v1421 = vunpack.c.l.b16 %v1382
    %v1422 = vunpack.c.l.b16 %v1383
    %v1423 = vunpack.c.l.b16 %v1384
    %v1424 = vunpack.c.l.b16 %v1385
    %v1425 = vunpack.c.l.b16 %v1386
    %v1426 = vunpack.c.l.b16 %v1387
    %v1427 = vunpack.c.l.b16 %v1388
    %v1428 = vunpack.c.l.b16 %v1389
    %v1429 = vunpack.c.l.b16 %v1390
    %v1430 = vunpack.c.l.b16 %v1391
    %v1431 = vunpack.c.l.b16 %v1392
    %v1432 = vunpack.c.l.b16 %v1393
    %v1433 = vunpack.c.l.b16 %v1394
    %v1434 = vunpack.c.l.b16 %v1395
    %v1435 = vunpack.c.l.b16 %v1396
    %v1436 = vpack.c.b16 %v1421, %v1420
    %v1437 = vpack.c.b16 %v1423, %v1422
    %v1438 = vpack.c.b16 %v1425, %v1424
    %v1439 = vpack.c.b16 %v1427, %v1426
    %v1440 = vpack.c.b16 %v1429, %v1428
    %v1441 = vpack.c.b16 %v1431, %v1430
    %v1442 = vpack.c.b16 %v1433, %v1432
    %v1443 = vpack.c.b16 %v1435, %v1434
    %1452 = vmatprep.subr.bf16.mxu0 0
    %1453 = vmatpush1.bf16.msra.mxu0 %v1436
    %1454 = vmatprep.subr.bf16.mxu0 0
    %1455 = vmatpush1.bf16.msra.mxu0 %v1437
    %1456 = vmatprep.subr.bf16.mxu0 0
    %1457 = vmatpush1.bf16.msra.mxu0 %v1438
    %1458 = vmatprep.subr.bf16.mxu0 0
    %1459 = vmatpush1.bf16.msra.mxu0 %v1439
    %1460 = vmatprep.subr.bf16.mxu0 0
    %1461 = vmatpush1.bf16.msra.mxu0 %v1440
    %1462 = vmatprep.subr.bf16.mxu0 0
    %1463 = vmatpush1.bf16.msra.mxu0 %v1441
    %1464 = vmatprep.subr.bf16.mxu0 0
    %1465 = vmatpush1.bf16.msra.mxu0 %v1442
    %1466 = vmatprep.subr.bf16.mxu0 0
    %1467 = vmatpush1.bf16.msra.mxu0 %v1443
    %1468 = vmatprep.subr.bf16.mxu0 0
    %1469 = vmatpush1.bf16.msra.mxu0 0
    %1470 = vmatprep.subr.bf16.mxu0 0
    %1471 = vmatpush1.bf16.msra.mxu0 0
    %1472 = vmatprep.subr.bf16.mxu0 0
    %1473 = vmatpush1.bf16.msra.mxu0 0
    %1474 = vmatprep.subr.bf16.mxu0 0
    %1475 = vmatpush1.bf16.msra.mxu0 0
    %1476 = vmatprep.subr.bf16.mxu0 0
    %1477 = vmatpush1.bf16.msra.mxu0 0
    %1478 = vmatprep.subr.bf16.mxu0 0
    %1479 = vmatpush1.bf16.msra.mxu0 0
    %1480 = vmatprep.subr.bf16.mxu0 0
    %1481 = vmatpush1.bf16.msra.mxu0 0
    %1482 = vmatprep.subr.bf16.mxu0 0
    %1483 = vmatpush1.bf16.msra.mxu0 0
    %1484 = vmatprep.mubr.bf16.mxu0 0
    %1485 = vmatmul.mubr.bf16.gmra.mrb[0].mxu0 %v1380
    %v1486 = vpop.f32.mrb[0].mxu0
    %v1487 = vadd.f32 %v1402, %v1486
    %v1488 = vpop.f32.mrb[0].mxu0
    %v1489 = vpop.f32.mrb[0].mxu0
    %v1490 = vadd.f32 %v1402, %v1489
    %v1491 = vpop.f32.mrb[0].mxu0
    %1492 = vdwg.mxu0
    %v1493 = vmax.f32 %v1487, 0.0
    %v1494 = vmax.f32 %v1490, 0.0
    %v1495 = vadd.f32 %v788, %v1493
    %v1496 = vadd.f32 %v789, %v1494
    %v1497 = vpack.c.bf16 %v1496, %v1495
    %v1498 = vld [vmem:[#allocation17] sm:$0xff]
    %v1499 = vld [vmem:[#allocation17 + $0x8] sm:$0xff]
    %v1500 = vld [vmem:[#allocation17 + $0x10] sm:$0xff]
    %v1501 = vld [vmem:[#allocation17 + $0x18] sm:$0xff]
    %v1502 = vld [vmem:[#allocation17 + $0x20] sm:$0xff]
    %v1503 = vld [vmem:[#allocation17 + $0x28] sm:$0xff]
    %v1504 = vld [vmem:[#allocation17 + $0x30] sm:$0xff]
    %v1505 = vld [vmem:[#allocation17 + $0x38] sm:$0xff]
    %v1506 = vld [vmem:[#allocation17 + $0x40] sm:$0xff]
    %v1507 = vld [vmem:[#allocation17 + $0x48] sm:$0xff]
    %v1508 = vld [vmem:[#allocation17 + $0x50] sm:$0xff]
    %v1509 = vld [vmem:[#allocation17 + $0x58] sm:$0xff]
    %v1510 = vld [vmem:[#allocation17 + $0x60] sm:$0xff]
    %v1511 = vld [vmem:[#allocation17 + $0x68] sm:$0xff]
    %v1512 = vld [vmem:[#allocation17 + $0x70] sm:$0xff]
    %v1513 = vld [vmem:[#allocation17 + $0x78] sm:$0xff]
    %v1514 = vld [vmem:[#allocation17 + $0x80] sm:$0xff]
    %v1515 = vld [vmem:[#allocation17 + $0x88] sm:$0xff]
    %v1516 = vld [vmem:[#allocation17 + $0x90] sm:$0xff]
    %v1517 = vld [vmem:[#allocation17 + $0x98] sm:$0xff]
    %v1518 = vld [vmem:[#allocation17 + $0xa0] sm:$0xff]
    %v1519 = vld [vmem:[#allocation17 + $0xa8] sm:$0xff]
    %v1520 = vld [vmem:[#allocation17 + $0xb0] sm:$0xff]
    %v1521 = vld [vmem:[#allocation17 + $0xb8] sm:$0xff]
    %v1522 = vld [vmem:[#allocation17 + $0xc0] sm:$0xff]
    %v1523 = vld [vmem:[#allocation17 + $0xc8] sm:$0xff]
    %v1524 = vld [vmem:[#allocation17 + $0xd0] sm:$0xff]
    %v1525 = vld [vmem:[#allocation17 + $0xd8] sm:$0xff]
    %v1526 = vld [vmem:[#allocation17 + $0xe0] sm:$0xff]
    %v1527 = vld [vmem:[#allocation17 + $0xe8] sm:$0xff]
    %v1528 = vld [vmem:[#allocation17 + $0xf0] sm:$0xff]
    %v1529 = vld [vmem:[#allocation17 + $0xf8] sm:$0xff]
    %v1530 = vld [vmem:[#allocation17 + $0x100] sm:$0xff]
    %v1531 = vld [vmem:[#allocation17 + $0x108] sm:$0xff]
    %v1532 = vld [vmem:[#allocation17 + $0x110] sm:$0xff]
    %v1533 = vld [vmem:[#allocation17 + $0x118] sm:$0xff]
    %v1534 = vld [vmem:[#allocation17 + $0x120] sm:$0xff]
    %v1535 = vld [vmem:[#allocation17 + $0x128] sm:$0xff]
    %v1536 = vld [vmem:[#allocation17 + $0x130] sm:$0xff]
    %v1537 = vld [vmem:[#allocation17 + $0x138] sm:$0xff]
    %v1538 = vld [vmem:[#allocation17 + $0x140] sm:$0xff]
    %v1539 = vld [vmem:[#allocation17 + $0x148] sm:$0xff]
    %v1540 = vld [vmem:[#allocation17 + $0x150] sm:$0xff]
    %v1541 = vld [vmem:[#allocation17 + $0x158] sm:$0xff]
    %v1542 = vld [vmem:[#allocation17 + $0x160] sm:$0xff]
    %v1543 = vld [vmem:[#allocation17 + $0x168] sm:$0xff]
    %v1544 = vld [vmem:[#allocation17 + $0x170] sm:$0xff]
    %v1545 = vld [vmem:[#allocation17 + $0x178] sm:$0xff]
    %v1546 = vld [vmem:[#allocation17 + $0x180] sm:$0xff]
    %v1547 = vld [vmem:[#allocation17 + $0x188] sm:$0xff]
    %v1548 = vld [vmem:[#allocation17 + $0x190] sm:$0xff]
    %v1549 = vld [vmem:[#allocation17 + $0x198] sm:$0xff]
    %v1550 = vld [vmem:[#allocation17 + $0x1a0] sm:$0xff]
    %v1551 = vld [vmem:[#allocation17 + $0x1a8] sm:$0xff]
    %v1552 = vld [vmem:[#allocation17 + $0x1b0] sm:$0xff]
    %v1553 = vld [vmem:[#allocation17 + $0x1b8] sm:$0xff]
    %v1554 = vld [vmem:[#allocation17 + $0x1c0] sm:$0xff]
    %v1555 = vld [vmem:[#allocation17 + $0x1c8] sm:$0xff]
    %v1556 = vld [vmem:[#allocation17 + $0x1d0] sm:$0xff]
    %v1557 = vld [vmem:[#allocation17 + $0x1d8] sm:$0xff]
    %v1558 = vld [vmem:[#allocation17 + $0x1e0] sm:$0xff]
    %v1559 = vld [vmem:[#allocation17 + $0x1e8] sm:$0xff]
    %v1560 = vld [vmem:[#allocation17 + $0x1f0] sm:$0xff]
    %v1561 = vld [vmem:[#allocation17 + $0x1f8] sm:$0xff]
    %v1562 = vld [vmem:[%s17] sm:$0xff]
    %v1564 = vlaneseq
    %v1565 = vshrl.u32 %v1564, 7
    %v1566 = vsub.s32 0, %v1565
    %v1567 = vrot.slane %v1562, %v1566
    %v1568 = vlaneseq
    %v1569 = vshrl.u32 %v1568, 7
    %v1570 = vsub.s32 1, %v1569
    %v1571 = vrot.slane %v1562, %v1570
    %v1572 = vlaneseq
    %v1573 = vshrl.u32 %v1572, 7
    %v1574 = vsub.s32 2, %v1573
    %v1575 = vrot.slane %v1562, %v1574
    %v1576 = vlaneseq
    %v1577 = vshrl.u32 %v1576, 7
    %v1578 = vsub.s32 3, %v1577
    %v1579 = vrot.slane %v1562, %v1578
    %v1580 = vlaneseq
    %v1581 = vshrl.u32 %v1580, 7
    %v1582 = vsub.s32 4, %v1581
    %v1583 = vrot.slane %v1562, %v1582
    %v1584 = vlaneseq
    %v1585 = vshrl.u32 %v1584, 7
    %v1586 = vsub.s32 5, %v1585
    %v1587 = vrot.slane %v1562, %v1586
    %v1588 = vlaneseq
    %v1589 = vshrl.u32 %v1588, 7
    %v1590 = vsub.s32 6, %v1589
    %v1591 = vrot.slane %v1562, %v1590
    %v1592 = vlaneseq
    %v1593 = vshrl.u32 %v1592, 7
    %v1594 = vsub.s32 7, %v1593
    %v1595 = vrot.slane %v1562, %v1594
    %v1668 = vunpack.c.l.b16 %v1498
    %v1669 = vunpack.c.h.b16 %v1498
    %v1670 = vunpack.c.l.b16 %v1499
    %v1671 = vunpack.c.h.b16 %v1499
    %v1672 = vunpack.c.l.b16 %v1500
    %v1673 = vunpack.c.h.b16 %v1500
    %v1674 = vunpack.c.l.b16 %v1501
    %v1675 = vunpack.c.h.b16 %v1501
    %v1676 = vunpack.c.l.b16 %v1502
    %v1677 = vunpack.c.h.b16 %v1502
    %v1678 = vunpack.c.l.b16 %v1503
    %v1679 = vunpack.c.h.b16 %v1503
    %v1680 = vunpack.c.l.b16 %v1504
    %v1681 = vunpack.c.h.b16 %v1504
    %v1682 = vunpack.c.l.b16 %v1505
    %v1683 = vunpack.c.h.b16 %v1505
    %v1684 = vunpack.c.l.b16 %v1506
    %v1685 = vunpack.c.h.b16 %v1506
    %v1686 = vunpack.c.l.b16 %v1507
    %v1687 = vunpack.c.h.b16 %v1507
    %v1688 = vunpack.c.l.b16 %v1508
    %v1689 = vunpack.c.h.b16 %v1508
    %v1690 = vunpack.c.l.b16 %v1509
    %v1691 = vunpack.c.h.b16 %v1509
    %v1692 = vunpack.c.l.b16 %v1510
    %v1693 = vunpack.c.h.b16 %v1510
    %v1694 = vunpack.c.l.b16 %v1511
    %v1695 = vunpack.c.h.b16 %v1511
    %v1696 = vunpack.c.l.b16 %v1512
    %v1697 = vunpack.c.h.b16 %v1512
    %v1698 = vunpack.c.l.b16 %v1513
    %v1699 = vunpack.c.h.b16 %v1513
    %v1700 = vunpack.c.l.b16 %v1514
    %v1701 = vunpack.c.h.b16 %v1514
    %v1702 = vunpack.c.l.b16 %v1515
    %v1703 = vunpack.c.h.b16 %v1515
    %v1704 = vunpack.c.l.b16 %v1516
    %v1705 = vunpack.c.h.b16 %v1516
    %v1706 = vunpack.c.l.b16 %v1517
    %v1707 = vunpack.c.h.b16 %v1517
    %v1708 = vunpack.c.l.b16 %v1518
    %v1709 = vunpack.c.h.b16 %v1518
    %v1710 = vunpack.c.l.b16 %v1519
    %v1711 = vunpack.c.h.b16 %v1519
    %v1712 = vunpack.c.l.b16 %v1520
    %v1713 = vunpack.c.h.b16 %v1520
    %v1714 = vunpack.c.l.b16 %v1521
    %v1715 = vunpack.c.h.b16 %v1521
    %v1716 = vunpack.c.l.b16 %v1522
    %v1717 = vunpack.c.h.b16 %v1522
    %v1718 = vunpack.c.l.b16 %v1523
    %v1719 = vunpack.c.h.b16 %v1523
    %v1720 = vunpack.c.l.b16 %v1524
    %v1721 = vunpack.c.h.b16 %v1524
    %v1722 = vunpack.c.l.b16 %v1525
    %v1723 = vunpack.c.h.b16 %v1525
    %v1724 = vunpack.c.l.b16 %v1526
    %v1725 = vunpack.c.h.b16 %v1526
    %v1726 = vunpack.c.l.b16 %v1527
    %v1727 = vunpack.c.h.b16 %v1527
    %v1728 = vunpack.c.l.b16 %v1528
    %v1729 = vunpack.c.h.b16 %v1528
    %v1730 = vunpack.c.l.b16 %v1529
    %v1731 = vunpack.c.h.b16 %v1529
    %v1732 = vunpack.c.l.b16 %v1530
    %v1733 = vunpack.c.h.b16 %v1530
    %v1734 = vunpack.c.l.b16 %v1531
    %v1735 = vunpack.c.h.b16 %v1531
    %v1736 = vunpack.c.l.b16 %v1532
    %v1737 = vunpack.c.h.b16 %v1532
    %v1738 = vunpack.c.l.b16 %v1533
    %v1739 = vunpack.c.h.b16 %v1533
    %v1740 = vunpack.c.l.b16 %v1534
    %v1741 = vunpack.c.h.b16 %v1534
    %v1742 = vunpack.c.l.b16 %v1535
    %v1743 = vunpack.c.h.b16 %v1535
    %v1744 = vunpack.c.l.b16 %v1536
    %v1745 = vunpack.c.h.b16 %v1536
    %v1746 = vunpack.c.l.b16 %v1537
    %v1747 = vunpack.c.h.b16 %v1537
    %v1748 = vunpack.c.l.b16 %v1538
    %v1749 = vunpack.c.h.b16 %v1538
    %v1750 = vunpack.c.l.b16 %v1539
    %v1751 = vunpack.c.h.b16 %v1539
    %v1752 = vunpack.c.l.b16 %v1540
    %v1753 = vunpack.c.h.b16 %v1540
    %v1754 = vunpack.c.l.b16 %v1541
    %v1755 = vunpack.c.h.b16 %v1541
    %v1756 = vunpack.c.l.b16 %v1542
    %v1757 = vunpack.c.h.b16 %v1542
    %v1758 = vunpack.c.l.b16 %v1543
    %v1759 = vunpack.c.h.b16 %v1543
    %v1760 = vunpack.c.l.b16 %v1544
    %v1761 = vunpack.c.h.b16 %v1544
    %v1762 = vunpack.c.l.b16 %v1545
    %v1763 = vunpack.c.h.b16 %v1545
    %v1764 = vunpack.c.l.b16 %v1546
    %v1765 = vunpack.c.h.b16 %v1546
    %v1766 = vunpack.c.l.b16 %v1547
    %v1767 = vunpack.c.h.b16 %v1547
    %v1768 = vunpack.c.l.b16 %v1548
    %v1769 = vunpack.c.h.b16 %v1548
    %v1770 = vunpack.c.l.b16 %v1549
    %v1771 = vunpack.c.h.b16 %v1549
    %v1772 = vunpack.c.l.b16 %v1550
    %v1773 = vunpack.c.h.b16 %v1550
    %v1774 = vunpack.c.l.b16 %v1551
    %v1775 = vunpack.c.h.b16 %v1551
    %v1776 = vunpack.c.l.b16 %v1552
    %v1777 = vunpack.c.h.b16 %v1552
    %v1778 = vunpack.c.l.b16 %v1553
    %v1779 = vunpack.c.h.b16 %v1553
    %v1780 = vunpack.c.l.b16 %v1554
    %v1781 = vunpack.c.h.b16 %v1554
    %v1782 = vunpack.c.l.b16 %v1555
    %v1783 = vunpack.c.h.b16 %v1555
    %v1784 = vunpack.c.l.b16 %v1556
    %v1785 = vunpack.c.h.b16 %v1556
    %v1786 = vunpack.c.l.b16 %v1557
    %v1787 = vunpack.c.h.b16 %v1557
    %v1788 = vunpack.c.l.b16 %v1558
    %v1789 = vunpack.c.h.b16 %v1558
    %v1790 = vunpack.c.l.b16 %v1559
    %v1791 = vunpack.c.h.b16 %v1559
    %v1792 = vunpack.c.l.b16 %v1560
    %v1793 = vunpack.c.h.b16 %v1560
    %v1794 = vunpack.c.l.b16 %v1561
    %v1795 = vunpack.c.h.b16 %v1561
    %v1796 = vpack.c.b16 %v1676, %v1668
    %v1797 = vpack.c.b16 %v1677, %v1669
    %v1798 = vpack.c.b16 %v1678, %v1670
    %v1799 = vpack.c.b16 %v1679, %v1671
    %v1800 = vpack.c.b16 %v1680, %v1672
    %v1801 = vpack.c.b16 %v1681, %v1673
    %v1802 = vpack.c.b16 %v1682, %v1674
    %v1803 = vpack.c.b16 %v1683, %v1675
    %v1804 = vpack.c.b16 %v1692, %v1684
    %v1805 = vpack.c.b16 %v1693, %v1685
    %v1806 = vpack.c.b16 %v1694, %v1686
    %v1807 = vpack.c.b16 %v1695, %v1687
    %v1808 = vpack.c.b16 %v1696, %v1688
    %v1809 = vpack.c.b16 %v1697, %v1689
    %v1810 = vpack.c.b16 %v1698, %v1690
    %v1811 = vpack.c.b16 %v1699, %v1691
    %v1812 = vpack.c.b16 %v1708, %v1700
    %v1813 = vpack.c.b16 %v1709, %v1701
    %v1814 = vpack.c.b16 %v1710, %v1702
    %v1815 = vpack.c.b16 %v1711, %v1703
    %v1816 = vpack.c.b16 %v1712, %v1704
    %v1817 = vpack.c.b16 %v1713, %v1705
    %v1818 = vpack.c.b16 %v1714, %v1706
    %v1819 = vpack.c.b16 %v1715, %v1707
    %v1820 = vpack.c.b16 %v1724, %v1716
    %v1821 = vpack.c.b16 %v1725, %v1717
    %v1822 = vpack.c.b16 %v1726, %v1718
    %v1823 = vpack.c.b16 %v1727, %v1719
    %v1824 = vpack.c.b16 %v1728, %v1720
    %v1825 = vpack.c.b16 %v1729, %v1721
    %v1826 = vpack.c.b16 %v1730, %v1722
    %v1827 = vpack.c.b16 %v1731, %v1723
    %v1828 = vpack.c.b16 %v1740, %v1732
    %v1829 = vpack.c.b16 %v1741, %v1733
    %v1830 = vpack.c.b16 %v1742, %v1734
    %v1831 = vpack.c.b16 %v1743, %v1735
    %v1832 = vpack.c.b16 %v1744, %v1736
    %v1833 = vpack.c.b16 %v1745, %v1737
    %v1834 = vpack.c.b16 %v1746, %v1738
    %v1835 = vpack.c.b16 %v1747, %v1739
    %v1836 = vpack.c.b16 %v1756, %v1748
    %v1837 = vpack.c.b16 %v1757, %v1749
    %v1838 = vpack.c.b16 %v1758, %v1750
    %v1839 = vpack.c.b16 %v1759, %v1751
    %v1840 = vpack.c.b16 %v1760, %v1752
    %v1841 = vpack.c.b16 %v1761, %v1753
    %v1842 = vpack.c.b16 %v1762, %v1754
    %v1843 = vpack.c.b16 %v1763, %v1755
    %v1844 = vpack.c.b16 %v1772, %v1764
    %v1845 = vpack.c.b16 %v1773, %v1765
    %v1846 = vpack.c.b16 %v1774, %v1766
    %v1847 = vpack.c.b16 %v1775, %v1767
    %v1848 = vpack.c.b16 %v1776, %v1768
    %v1849 = vpack.c.b16 %v1777, %v1769
    %v1850 = vpack.c.b16 %v1778, %v1770
    %v1851 = vpack.c.b16 %v1779, %v1771
    %v1852 = vpack.c.b16 %v1788, %v1780
    %v1853 = vpack.c.b16 %v1789, %v1781
    %v1854 = vpack.c.b16 %v1790, %v1782
    %v1855 = vpack.c.b16 %v1791, %v1783
    %v1856 = vpack.c.b16 %v1792, %v1784
    %v1857 = vpack.c.b16 %v1793, %v1785
    %v1858 = vpack.c.b16 %v1794, %v1786
    %v1859 = vpack.c.b16 %v1795, %v1787
    %1924 = vmatprep.subr.bf16.mxu0 %v1797
    %1925 = vmatpush1.bf16.msra.mxu0 %v1796
    %1926 = vmatprep.subr.bf16.mxu0 %v1805
    %1927 = vmatpush1.bf16.msra.mxu0 %v1804
    %1928 = vmatprep.subr.bf16.mxu0 %v1813
    %1929 = vmatpush1.bf16.msra.mxu0 %v1812
    %1930 = vmatprep.subr.bf16.mxu0 %v1821
    %1931 = vmatpush1.bf16.msra.mxu0 %v1820
    %1932 = vmatprep.subr.bf16.mxu0 %v1829
    %1933 = vmatpush1.bf16.msra.mxu0 %v1828
    %1934 = vmatprep.subr.bf16.mxu0 %v1837
    %1935 = vmatpush1.bf16.msra.mxu0 %v1836
    %1936 = vmatprep.subr.bf16.mxu0 %v1845
    %1937 = vmatpush1.bf16.msra.mxu0 %v1844
    %1938 = vmatprep.subr.bf16.mxu0 %v1853
    %1939 = vmatpush1.bf16.msra.mxu0 %v1852
    %1940 = vmatprep.subr.bf16.mxu0 0
    %1941 = vmatpush1.bf16.msra.mxu0 0
    %1942 = vmatprep.subr.bf16.mxu0 0
    %1943 = vmatpush1.bf16.msra.mxu0 0
    %1944 = vmatprep.subr.bf16.mxu0 0
    %1945 = vmatpush1.bf16.msra.mxu0 0
    %1946 = vmatprep.subr.bf16.mxu0 0
    %1947 = vmatpush1.bf16.msra.mxu0 0
    %1948 = vmatprep.subr.bf16.mxu0 0
    %1949 = vmatpush1.bf16.msra.mxu0 0
    %1950 = vmatprep.subr.bf16.mxu0 0
    %1951 = vmatpush1.bf16.msra.mxu0 0
    %1952 = vmatprep.subr.bf16.mxu0 0
    %1953 = vmatpush1.bf16.msra.mxu0 0
    %1954 = vmatprep.subr.bf16.mxu0 0
    %1955 = vmatpush1.bf16.msra.mxu0 0
    %1956 = vmatprep.mubr.bf16.mxu0 0
    %1957 = vmatmul.mubr.bf16.gmra.mrb[0].mxu0 %v1497
    %v1958 = vpop.f32.mrb[0].mxu0
    %v1959 = vadd.f32 %v1567, %v1958
    %v1960 = vpop.f32.mrb[0].mxu0
    %v1961 = vadd.f32 %v1571, %v1960
    %v1962 = vpop.f32.mrb[0].mxu0
    %v1963 = vadd.f32 %v1567, %v1962
    %v1964 = vpop.f32.mrb[0].mxu0
    %v1965 = vadd.f32 %v1571, %v1964
    %1966 = vdwg.mxu0
    %1967 = vmatprep.subr.bf16.mxu0 %v1799
    %1968 = vmatpush1.bf16.msra.mxu0 %v1798
    %1969 = vmatprep.subr.bf16.mxu0 %v1807
    %1970 = vmatpush1.bf16.msra.mxu0 %v1806
    %1971 = vmatprep.subr.bf16.mxu0 %v1815
    %1972 = vmatpush1.bf16.msra.mxu0 %v1814
    %1973 = vmatprep.subr.bf16.mxu0 %v1823
    %1974 = vmatpush1.bf16.msra.mxu0 %v1822
    %1975 = vmatprep.subr.bf16.mxu0 %v1831
    %1976 = vmatpush1.bf16.msra.mxu0 %v1830
    %1977 = vmatprep.subr.bf16.mxu0 %v1839
    %1978 = vmatpush1.bf16.msra.mxu0 %v1838
    %1979 = vmatprep.subr.bf16.mxu0 %v1847
    %1980 = vmatpush1.bf16.msra.mxu0 %v1846
    %1981 = vmatprep.subr.bf16.mxu0 %v1855
    %1982 = vmatpush1.bf16.msra.mxu0 %v1854
    %1983 = vmatprep.subr.bf16.mxu0 0
    %1984 = vmatpush1.bf16.msra.mxu0 0
    %1985 = vmatprep.subr.bf16.mxu0 0
    %1986 = vmatpush1.bf16.msra.mxu0 0
    %1987 = vmatprep.subr.bf16.mxu0 0
    %1988 = vmatpush1.bf16.msra.mxu0 0
    %1989 = vmatprep.subr.bf16.mxu0 0
    %1990 = vmatpush1.bf16.msra.mxu0 0
    %1991 = vmatprep.subr.bf16.mxu0 0
    %1992 = vmatpush1.bf16.msra.mxu0 0
    %1993 = vmatprep.subr.bf16.mxu0 0
    %1994 = vmatpush1.bf16.msra.mxu0 0
    %1995 = vmatprep.subr.bf16.mxu0 0
    %1996 = vmatpush1.bf16.msra.mxu0 0
    %1997 = vmatprep.subr.bf16.mxu0 0
    %1998 = vmatpush1.bf16.msra.mxu0 0
    %1999 = vmatprep.mubr.bf16.mxu0 0
    %2000 = vmatmul.mubr.bf16.gmra.mrb[0].mxu0 %v1497
    %v2001 = vpop.f32.mrb[0].mxu0
    %v2002 = vadd.f32 %v1575, %v2001
    %v2003 = vpop.f32.mrb[0].mxu0
    %v2004 = vadd.f32 %v1579, %v2003
    %v2005 = vpop.f32.mrb[0].mxu0
    %v2006 = vadd.f32 %v1575, %v2005
    %v2007 = vpop.f32.mrb[0].mxu0
    %v2008 = vadd.f32 %v1579, %v2007
    %2009 = vdwg.mxu0
    %2010 = vmatprep.subr.bf16.mxu0 %v1801
    %2011 = vmatpush1.bf16.msra.mxu0 %v1800
    %2012 = vmatprep.subr.bf16.mxu0 %v1809
    %2013 = vmatpush1.bf16.msra.mxu0 %v1808
    %2014 = vmatprep.subr.bf16.mxu0 %v1817
    %2015 = vmatpush1.bf16.msra.mxu0 %v1816
    %2016 = vmatprep.subr.bf16.mxu0 %v1825
    %2017 = vmatpush1.bf16.msra.mxu0 %v1824
    %2018 = vmatprep.subr.bf16.mxu0 %v1833
    %2019 = vmatpush1.bf16.msra.mxu0 %v1832
    %2020 = vmatprep.subr.bf16.mxu0 %v1841
    %2021 = vmatpush1.bf16.msra.mxu0 %v1840
    %2022 = vmatprep.subr.bf16.mxu0 %v1849
    %2023 = vmatpush1.bf16.msra.mxu0 %v1848
    %2024 = vmatprep.subr.bf16.mxu0 %v1857
    %2025 = vmatpush1.bf16.msra.mxu0 %v1856
    %2026 = vmatprep.subr.bf16.mxu0 0
    %2027 = vmatpush1.bf16.msra.mxu0 0
    %2028 = vmatprep.subr.bf16.mxu0 0
    %2029 = vmatpush1.bf16.msra.mxu0 0
    %2030 = vmatprep.subr.bf16.mxu0 0
    %2031 = vmatpush1.bf16.msra.mxu0 0
    %2032 = vmatprep.subr.bf16.mxu0 0
    %2033 = vmatpush1.bf16.msra.mxu0 0
    %2034 = vmatprep.subr.bf16.mxu0 0
    %2035 = vmatpush1.bf16.msra.mxu0 0
    %2036 = vmatprep.subr.bf16.mxu0 0
    %2037 = vmatpush1.bf16.msra.mxu0 0
    %2038 = vmatprep.subr.bf16.mxu0 0
    %2039 = vmatpush1.bf16.msra.mxu0 0
    %2040 = vmatprep.subr.bf16.mxu0 0
    %2041 = vmatpush1.bf16.msra.mxu0 0
    %2042 = vmatprep.mubr.bf16.mxu0 0
    %2043 = vmatmul.mubr.bf16.gmra.mrb[0].mxu0 %v1497
    %v2044 = vpop.f32.mrb[0].mxu0
    %v2045 = vadd.f32 %v1583, %v2044
    %v2046 = vpop.f32.mrb[0].mxu0
    %v2047 = vadd.f32 %v1587, %v2046
    %v2048 = vpop.f32.mrb[0].mxu0
    %v2049 = vadd.f32 %v1583, %v2048
    %v2050 = vpop.f32.mrb[0].mxu0
    %v2051 = vadd.f32 %v1587, %v2050
    %2052 = vdwg.mxu0
    %2053 = vmatprep.subr.bf16.mxu0 %v1803
    %2054 = vmatpush1.bf16.msra.mxu0 %v1802
    %2055 = vmatprep.subr.bf16.mxu0 %v1811
    %2056 = vmatpush1.bf16.msra.mxu0 %v1810
    %2057 = vmatprep.subr.bf16.mxu0 %v1819
    %2058 = vmatpush1.bf16.msra.mxu0 %v1818
    %2059 = vmatprep.subr.bf16.mxu0 %v1827
    %2060 = vmatpush1.bf16.msra.mxu0 %v1826
    %2061 = vmatprep.subr.bf16.mxu0 %v1835
    %2062 = vmatpush1.bf16.msra.mxu0 %v1834
    %2063 = vmatprep.subr.bf16.mxu0 %v1843
    %2064 = vmatpush1.bf16.msra.mxu0 %v1842
    %2065 = vmatprep.subr.bf16.mxu0 %v1851
    %2066 = vmatpush1.bf16.msra.mxu0 %v1850
    %2067 = vmatprep.subr.bf16.mxu0 %v1859
    %2068 = vmatpush1.bf16.msra.mxu0 %v1858
    %2069 = vmatprep.subr.bf16.mxu0 0
    %2070 = vmatpush1.bf16.msra.mxu0 0
    %2071 = vmatprep.subr.bf16.mxu0 0
    %2072 = vmatpush1.bf16.msra.mxu0 0
    %2073 = vmatprep.subr.bf16.mxu0 0
    %2074 = vmatpush1.bf16.msra.mxu0 0
    %2075 = vmatprep.subr.bf16.mxu0 0
    %2076 = vmatpush1.bf16.msra.mxu0 0
    %2077 = vmatprep.subr.bf16.mxu0 0
    %2078 = vmatpush1.bf16.msra.mxu0 0
    %2079 = vmatprep.subr.bf16.mxu0 0
    %2080 = vmatpush1.bf16.msra.mxu0 0
    %2081 = vmatprep.subr.bf16.mxu0 0
    %2082 = vmatpush1.bf16.msra.mxu0 0
    %2083 = vmatprep.subr.bf16.mxu0 0
    %2084 = vmatpush1.bf16.msra.mxu0 0
    %2085 = vmatprep.mubr.bf16.mxu0 0
    %2086 = vmatmul.mubr.bf16.gmra.mrb[0].mxu0 %v1497
    %v2087 = vpop.f32.mrb[0].mxu0
    %v2088 = vadd.f32 %v1591, %v2087
    %v2089 = vpop.f32.mrb[0].mxu0
    %v2090 = vadd.f32 %v1595, %v2089
    %v2091 = vpop.f32.mrb[0].mxu0
    %v2092 = vadd.f32 %v1591, %v2091
    %v2093 = vpop.f32.mrb[0].mxu0
    %v2094 = vadd.f32 %v1595, %v2093
    %2095 = vdwg.mxu0
    %v2096 = vmax.f32 %v1959, 0.0
    %v2097 = vmax.f32 %v1961, 0.0
    %v2098 = vmax.f32 %v2002, 0.0
    %v2099 = vmax.f32 %v2004, 0.0
    %v2100 = vmax.f32 %v2045, 0.0
    %v2101 = vmax.f32 %v2047, 0.0
    %v2102 = vmax.f32 %v2088, 0.0
    %v2103 = vmax.f32 %v2090, 0.0
    %v2104 = vmax.f32 %v1963, 0.0
    %v2105 = vmax.f32 %v1965, 0.0
    %v2106 = vmax.f32 %v2006, 0.0
    %v2107 = vmax.f32 %v2008, 0.0
    %v2108 = vmax.f32 %v2049, 0.0
    %v2109 = vmax.f32 %v2051, 0.0
    %v2110 = vmax.f32 %v2092, 0.0
    %v2111 = vmax.f32 %v2094, 0.0
    %v2112 = vpack.c.bf16 %v2104, %v2096
    %v2113 = vpack.c.bf16 %v2105, %v2097
    %v2114 = vpack.c.bf16 %v2106, %v2098
    %v2115 = vpack.c.bf16 %v2107, %v2099
    %v2116 = vpack.c.bf16 %v2108, %v2100
    %v2117 = vpack.c.bf16 %v2109, %v2101
    %v2118 = vpack.c.bf16 %v2110, %v2102
    %v2119 = vpack.c.bf16 %v2111, %v2103
    %v2120 = vld [vmem:[#allocation19] sm:$0xff]
    %v2121 = vld [vmem:[#allocation19 + $0x8] sm:$0xff]
    %v2122 = vld [vmem:[#allocation19 + $0x10] sm:$0xff]
    %v2123 = vld [vmem:[#allocation19 + $0x18] sm:$0xff]
    %v2124 = vld [vmem:[#allocation19 + $0x20] sm:$0xff]
    %v2125 = vld [vmem:[#allocation19 + $0x28] sm:$0xff]
    %v2126 = vld [vmem:[#allocation19 + $0x30] sm:$0xff]
    %v2127 = vld [vmem:[#allocation19 + $0x38] sm:$0xff]
    %v2128 = vld [vmem:[#allocation19 + $0x40] sm:$0xff]
    %v2129 = vld [vmem:[#allocation19 + $0x48] sm:$0xff]
    %v2130 = vld [vmem:[#allocation19 + $0x50] sm:$0xff]
    %v2131 = vld [vmem:[#allocation19 + $0x58] sm:$0xff]
    %v2132 = vld [vmem:[#allocation19 + $0x60] sm:$0xff]
    %v2133 = vld [vmem:[#allocation19 + $0x68] sm:$0xff]
    %v2134 = vld [vmem:[#allocation19 + $0x70] sm:$0xff]
    %v2135 = vld [vmem:[#allocation19 + $0x78] sm:$0xff]
    %v2136 = vld [vmem:[#allocation19 + $0x80] sm:$0xff]
    %v2137 = vld [vmem:[#allocation19 + $0x88] sm:$0xff]
    %v2138 = vld [vmem:[#allocation19 + $0x90] sm:$0xff]
    %v2139 = vld [vmem:[#allocation19 + $0x98] sm:$0xff]
    %v2140 = vld [vmem:[#allocation19 + $0xa0] sm:$0xff]
    %v2141 = vld [vmem:[#allocation19 + $0xa8] sm:$0xff]
    %v2142 = vld [vmem:[#allocation19 + $0xb0] sm:$0xff]
    %v2143 = vld [vmem:[#allocation19 + $0xb8] sm:$0xff]
    %v2144 = vld [vmem:[#allocation19 + $0xc0] sm:$0xff]
    %v2145 = vld [vmem:[#allocation19 + $0xc8] sm:$0xff]
    %v2146 = vld [vmem:[#allocation19 + $0xd0] sm:$0xff]
    %v2147 = vld [vmem:[#allocation19 + $0xd8] sm:$0xff]
    %v2148 = vld [vmem:[#allocation19 + $0xe0] sm:$0xff]
    %v2149 = vld [vmem:[#allocation19 + $0xe8] sm:$0xff]
    %v2150 = vld [vmem:[#allocation19 + $0xf0] sm:$0xff]
    %v2151 = vld [vmem:[#allocation19 + $0xf8] sm:$0xff]
    %v2152 = vld [vmem:[#allocation19 + $0x100] sm:$0xff]
    %v2153 = vld [vmem:[#allocation19 + $0x108] sm:$0xff]
    %v2154 = vld [vmem:[#allocation19 + $0x110] sm:$0xff]
    %v2155 = vld [vmem:[#allocation19 + $0x118] sm:$0xff]
    %v2156 = vld [vmem:[#allocation19 + $0x120] sm:$0xff]
    %v2157 = vld [vmem:[#allocation19 + $0x128] sm:$0xff]
    %v2158 = vld [vmem:[#allocation19 + $0x130] sm:$0xff]
    %v2159 = vld [vmem:[#allocation19 + $0x138] sm:$0xff]
    %v2160 = vld [vmem:[#allocation19 + $0x140] sm:$0xff]
    %v2161 = vld [vmem:[#allocation19 + $0x148] sm:$0xff]
    %v2162 = vld [vmem:[#allocation19 + $0x150] sm:$0xff]
    %v2163 = vld [vmem:[#allocation19 + $0x158] sm:$0xff]
    %v2164 = vld [vmem:[#allocation19 + $0x160] sm:$0xff]
    %v2165 = vld [vmem:[#allocation19 + $0x168] sm:$0xff]
    %v2166 = vld [vmem:[#allocation19 + $0x170] sm:$0xff]
    %v2167 = vld [vmem:[#allocation19 + $0x178] sm:$0xff]
    %v2168 = vld [vmem:[#allocation19 + $0x180] sm:$0xff]
    %v2169 = vld [vmem:[#allocation19 + $0x188] sm:$0xff]
    %v2170 = vld [vmem:[#allocation19 + $0x190] sm:$0xff]
    %v2171 = vld [vmem:[#allocation19 + $0x198] sm:$0xff]
    %v2172 = vld [vmem:[#allocation19 + $0x1a0] sm:$0xff]
    %v2173 = vld [vmem:[#allocation19 + $0x1a8] sm:$0xff]
    %v2174 = vld [vmem:[#allocation19 + $0x1b0] sm:$0xff]
    %v2175 = vld [vmem:[#allocation19 + $0x1b8] sm:$0xff]
    %v2176 = vld [vmem:[#allocation19 + $0x1c0] sm:$0xff]
    %v2177 = vld [vmem:[#allocation19 + $0x1c8] sm:$0xff]
    %v2178 = vld [vmem:[#allocation19 + $0x1d0] sm:$0xff]
    %v2179 = vld [vmem:[#allocation19 + $0x1d8] sm:$0xff]
    %v2180 = vld [vmem:[#allocation19 + $0x1e0] sm:$0xff]
    %v2181 = vld [vmem:[#allocation19 + $0x1e8] sm:$0xff]
    %v2182 = vld [vmem:[#allocation19 + $0x1f0] sm:$0xff]
    %v2183 = vld [vmem:[#allocation19 + $0x1f8] sm:$0xff]
    %v2184 = vld [vmem:[#allocation19 + $0x200] sm:$0xff]
    %v2185 = vld [vmem:[#allocation19 + $0x208] sm:$0xff]
    %v2186 = vld [vmem:[#allocation19 + $0x210] sm:$0xff]
    %v2187 = vld [vmem:[#allocation19 + $0x218] sm:$0xff]
    %v2188 = vld [vmem:[#allocation19 + $0x220] sm:$0xff]
    %v2189 = vld [vmem:[#allocation19 + $0x228] sm:$0xff]
    %v2190 = vld [vmem:[#allocation19 + $0x230] sm:$0xff]
    %v2191 = vld [vmem:[#allocation19 + $0x238] sm:$0xff]
    %v2192 = vld [vmem:[#allocation19 + $0x240] sm:$0xff]
    %v2193 = vld [vmem:[#allocation19 + $0x248] sm:$0xff]
    %v2194 = vld [vmem:[#allocation19 + $0x250] sm:$0xff]
    %v2195 = vld [vmem:[#allocation19 + $0x258] sm:$0xff]
    %v2196 = vld [vmem:[#allocation19 + $0x260] sm:$0xff]
    %v2197 = vld [vmem:[#allocation19 + $0x268] sm:$0xff]
    %v2198 = vld [vmem:[#allocation19 + $0x270] sm:$0xff]
    %v2199 = vld [vmem:[#allocation19 + $0x278] sm:$0xff]
    %v2200 = vld [vmem:[#allocation19 + $0x280] sm:$0xff]
    %v2201 = vld [vmem:[#allocation19 + $0x288] sm:$0xff]
    %v2202 = vld [vmem:[#allocation19 + $0x290] sm:$0xff]
    %v2203 = vld [vmem:[#allocation19 + $0x298] sm:$0xff]
    %v2204 = vld [vmem:[#allocation19 + $0x2a0] sm:$0xff]
    %v2205 = vld [vmem:[#allocation19 + $0x2a8] sm:$0xff]
    %v2206 = vld [vmem:[#allocation19 + $0x2b0] sm:$0xff]
    %v2207 = vld [vmem:[#allocation19 + $0x2b8] sm:$0xff]
    %v2208 = vld [vmem:[#allocation19 + $0x2c0] sm:$0xff]
    %v2209 = vld [vmem:[#allocation19 + $0x2c8] sm:$0xff]
    %v2210 = vld [vmem:[#allocation19 + $0x2d0] sm:$0xff]
    %v2211 = vld [vmem:[#allocation19 + $0x2d8] sm:$0xff]
    %v2212 = vld [vmem:[#allocation19 + $0x2e0] sm:$0xff]
    %v2213 = vld [vmem:[#allocation19 + $0x2e8] sm:$0xff]
    %v2214 = vld [vmem:[#allocation19 + $0x2f0] sm:$0xff]
    %v2215 = vld [vmem:[#allocation19 + $0x2f8] sm:$0xff]
    %v2216 = vld [vmem:[#allocation19 + $0x300] sm:$0xff]
    %v2217 = vld [vmem:[#allocation19 + $0x308] sm:$0xff]
    %v2218 = vld [vmem:[#allocation19 + $0x310] sm:$0xff]
    %v2219 = vld [vmem:[#allocation19 + $0x318] sm:$0xff]
    %v2220 = vld [vmem:[#allocation19 + $0x320] sm:$0xff]
    %v2221 = vld [vmem:[#allocation19 + $0x328] sm:$0xff]
    %v2222 = vld [vmem:[#allocation19 + $0x330] sm:$0xff]
    %v2223 = vld [vmem:[#allocation19 + $0x338] sm:$0xff]
    %v2224 = vld [vmem:[#allocation19 + $0x340] sm:$0xff]
    %v2225 = vld [vmem:[#allocation19 + $0x348] sm:$0xff]
    %v2226 = vld [vmem:[#allocation19 + $0x350] sm:$0xff]
    %v2227 = vld [vmem:[#allocation19 + $0x358] sm:$0xff]
    %v2228 = vld [vmem:[#allocation19 + $0x360] sm:$0xff]
    %v2229 = vld [vmem:[#allocation19 + $0x368] sm:$0xff]
    %v2230 = vld [vmem:[#allocation19 + $0x370] sm:$0xff]
    %v2231 = vld [vmem:[#allocation19 + $0x378] sm:$0xff]
    %v2232 = vld [vmem:[#allocation19 + $0x380] sm:$0xff]
    %v2233 = vld [vmem:[#allocation19 + $0x388] sm:$0xff]
    %v2234 = vld [vmem:[#allocation19 + $0x390] sm:$0xff]
    %v2235 = vld [vmem:[#allocation19 + $0x398] sm:$0xff]
    %v2236 = vld [vmem:[#allocation19 + $0x3a0] sm:$0xff]
    %v2237 = vld [vmem:[#allocation19 + $0x3a8] sm:$0xff]
    %v2238 = vld [vmem:[#allocation19 + $0x3b0] sm:$0xff]
    %v2239 = vld [vmem:[#allocation19 + $0x3b8] sm:$0xff]
    %v2240 = vld [vmem:[#allocation19 + $0x3c0] sm:$0xff]
    %v2241 = vld [vmem:[#allocation19 + $0x3c8] sm:$0xff]
    %v2242 = vld [vmem:[#allocation19 + $0x3d0] sm:$0xff]
    %v2243 = vld [vmem:[#allocation19 + $0x3d8] sm:$0xff]
    %v2244 = vld [vmem:[#allocation19 + $0x3e0] sm:$0xff]
    %v2245 = vld [vmem:[#allocation19 + $0x3e8] sm:$0xff]
    %v2246 = vld [vmem:[#allocation19 + $0x3f0] sm:$0xff]
    %v2247 = vld [vmem:[#allocation19 + $0x3f8] sm:$0xff]
    %v2248 = vld [vmem:[#allocation19 + $0x400] sm:$0xff]
    %v2249 = vld [vmem:[#allocation19 + $0x408] sm:$0xff]
    %v2250 = vld [vmem:[#allocation19 + $0x410] sm:$0xff]
    %v2251 = vld [vmem:[#allocation19 + $0x418] sm:$0xff]
    %v2252 = vld [vmem:[#allocation19 + $0x420] sm:$0xff]
    %v2253 = vld [vmem:[#allocation19 + $0x428] sm:$0xff]
    %v2254 = vld [vmem:[#allocation19 + $0x430] sm:$0xff]
    %v2255 = vld [vmem:[#allocation19 + $0x438] sm:$0xff]
    %v2256 = vld [vmem:[#allocation19 + $0x440] sm:$0xff]
    %v2257 = vld [vmem:[#allocation19 + $0x448] sm:$0xff]
    %v2258 = vld [vmem:[#allocation19 + $0x450] sm:$0xff]
    %v2259 = vld [vmem:[#allocation19 + $0x458] sm:$0xff]
    %v2260 = vld [vmem:[#allocation19 + $0x460] sm:$0xff]
    %v2261 = vld [vmem:[#allocation19 + $0x468] sm:$0xff]
    %v2262 = vld [vmem:[#allocation19 + $0x470] sm:$0xff]
    %v2263 = vld [vmem:[#allocation19 + $0x478] sm:$0xff]
    %v2264 = vld [vmem:[#allocation19 + $0x480] sm:$0xff]
    %v2265 = vld [vmem:[#allocation19 + $0x488] sm:$0xff]
    %v2266 = vld [vmem:[#allocation19 + $0x490] sm:$0xff]
    %v2267 = vld [vmem:[#allocation19 + $0x498] sm:$0xff]
    %v2268 = vld [vmem:[#allocation19 + $0x4a0] sm:$0xff]
    %v2269 = vld [vmem:[#allocation19 + $0x4a8] sm:$0xff]
    %v2270 = vld [vmem:[#allocation19 + $0x4b0] sm:$0xff]
    %v2271 = vld [vmem:[#allocation19 + $0x4b8] sm:$0xff]
    %v2272 = vld [vmem:[#allocation19 + $0x4c0] sm:$0xff]
    %v2273 = vld [vmem:[#allocation19 + $0x4c8] sm:$0xff]
    %v2274 = vld [vmem:[#allocation19 + $0x4d0] sm:$0xff]
    %v2275 = vld [vmem:[#allocation19 + $0x4d8] sm:$0xff]
    %v2276 = vld [vmem:[#allocation19 + $0x4e0] sm:$0xff]
    %v2277 = vld [vmem:[#allocation19 + $0x4e8] sm:$0xff]
    %v2278 = vld [vmem:[#allocation19 + $0x4f0] sm:$0xff]
    %v2279 = vld [vmem:[#allocation19 + $0x4f8] sm:$0xff]
    %v2280 = vld [vmem:[#allocation19 + $0x500] sm:$0xff]
    %v2281 = vld [vmem:[#allocation19 + $0x508] sm:$0xff]
    %v2282 = vld [vmem:[#allocation19 + $0x510] sm:$0xff]
    %v2283 = vld [vmem:[#allocation19 + $0x518] sm:$0xff]
    %v2284 = vld [vmem:[#allocation19 + $0x520] sm:$0xff]
    %v2285 = vld [vmem:[#allocation19 + $0x528] sm:$0xff]
    %v2286 = vld [vmem:[#allocation19 + $0x530] sm:$0xff]
    %v2287 = vld [vmem:[#allocation19 + $0x538] sm:$0xff]
    %v2288 = vld [vmem:[#allocation19 + $0x540] sm:$0xff]
    %v2289 = vld [vmem:[#allocation19 + $0x548] sm:$0xff]
    %v2290 = vld [vmem:[#allocation19 + $0x550] sm:$0xff]
    %v2291 = vld [vmem:[#allocation19 + $0x558] sm:$0xff]
    %v2292 = vld [vmem:[#allocation19 + $0x560] sm:$0xff]
    %v2293 = vld [vmem:[#allocation19 + $0x568] sm:$0xff]
    %v2294 = vld [vmem:[#allocation19 + $0x570] sm:$0xff]
    %v2295 = vld [vmem:[#allocation19 + $0x578] sm:$0xff]
    %v2296 = vld [vmem:[#allocation19 + $0x580] sm:$0xff]
    %v2297 = vld [vmem:[#allocation19 + $0x588] sm:$0xff]
    %v2298 = vld [vmem:[#allocation19 + $0x590] sm:$0xff]
    %v2299 = vld [vmem:[#allocation19 + $0x598] sm:$0xff]
    %v2300 = vld [vmem:[#allocation19 + $0x5a0] sm:$0xff]
    %v2301 = vld [vmem:[#allocation19 + $0x5a8] sm:$0xff]
    %v2302 = vld [vmem:[#allocation19 + $0x5b0] sm:$0xff]
    %v2303 = vld [vmem:[#allocation19 + $0x5b8] sm:$0xff]
    %v2304 = vld [vmem:[#allocation19 + $0x5c0] sm:$0xff]
    %v2305 = vld [vmem:[#allocation19 + $0x5c8] sm:$0xff]
    %v2306 = vld [vmem:[#allocation19 + $0x5d0] sm:$0xff]
    %v2307 = vld [vmem:[#allocation19 + $0x5d8] sm:$0xff]
    %v2308 = vld [vmem:[#allocation19 + $0x5e0] sm:$0xff]
    %v2309 = vld [vmem:[#allocation19 + $0x5e8] sm:$0xff]
    %v2310 = vld [vmem:[#allocation19 + $0x5f0] sm:$0xff]
    %v2311 = vld [vmem:[#allocation19 + $0x5f8] sm:$0xff]
    %v2312 = vld [vmem:[#allocation19 + $0x600] sm:$0xff]
    %v2313 = vld [vmem:[#allocation19 + $0x608] sm:$0xff]
    %v2314 = vld [vmem:[#allocation19 + $0x610] sm:$0xff]
    %v2315 = vld [vmem:[#allocation19 + $0x618] sm:$0xff]
    %v2316 = vld [vmem:[#allocation19 + $0x620] sm:$0xff]
    %v2317 = vld [vmem:[#allocation19 + $0x628] sm:$0xff]
    %v2318 = vld [vmem:[#allocation19 + $0x630] sm:$0xff]
    %v2319 = vld [vmem:[#allocation19 + $0x638] sm:$0xff]
    %v2320 = vld [vmem:[#allocation19 + $0x640] sm:$0xff]
    %v2321 = vld [vmem:[#allocation19 + $0x648] sm:$0xff]
    %v2322 = vld [vmem:[#allocation19 + $0x650] sm:$0xff]
    %v2323 = vld [vmem:[#allocation19 + $0x658] sm:$0xff]
    %v2324 = vld [vmem:[#allocation19 + $0x660] sm:$0xff]
    %v2325 = vld [vmem:[#allocation19 + $0x668] sm:$0xff]
    %v2326 = vld [vmem:[#allocation19 + $0x670] sm:$0xff]
    %v2327 = vld [vmem:[#allocation19 + $0x678] sm:$0xff]
    %v2328 = vld [vmem:[#allocation19 + $0x680] sm:$0xff]
    %v2329 = vld [vmem:[#allocation19 + $0x688] sm:$0xff]
    %v2330 = vld [vmem:[#allocation19 + $0x690] sm:$0xff]
    %v2331 = vld [vmem:[#allocation19 + $0x698] sm:$0xff]
    %v2332 = vld [vmem:[#allocation19 + $0x6a0] sm:$0xff]
    %v2333 = vld [vmem:[#allocation19 + $0x6a8] sm:$0xff]
    %v2334 = vld [vmem:[#allocation19 + $0x6b0] sm:$0xff]
    %v2335 = vld [vmem:[#allocation19 + $0x6b8] sm:$0xff]
    %v2336 = vld [vmem:[#allocation19 + $0x6c0] sm:$0xff]
    %v2337 = vld [vmem:[#allocation19 + $0x6c8] sm:$0xff]
    %v2338 = vld [vmem:[#allocation19 + $0x6d0] sm:$0xff]
    %v2339 = vld [vmem:[#allocation19 + $0x6d8] sm:$0xff]
    %v2340 = vld [vmem:[#allocation19 + $0x6e0] sm:$0xff]
    %v2341 = vld [vmem:[#allocation19 + $0x6e8] sm:$0xff]
    %v2342 = vld [vmem:[#allocation19 + $0x6f0] sm:$0xff]
    %v2343 = vld [vmem:[#allocation19 + $0x6f8] sm:$0xff]
    %v2344 = vld [vmem:[#allocation19 + $0x700] sm:$0xff]
    %v2345 = vld [vmem:[#allocation19 + $0x708] sm:$0xff]
    %v2346 = vld [vmem:[#allocation19 + $0x710] sm:$0xff]
    %v2347 = vld [vmem:[#allocation19 + $0x718] sm:$0xff]
    %v2348 = vld [vmem:[#allocation19 + $0x720] sm:$0xff]
    %v2349 = vld [vmem:[#allocation19 + $0x728] sm:$0xff]
    %v2350 = vld [vmem:[#allocation19 + $0x730] sm:$0xff]
    %v2351 = vld [vmem:[#allocation19 + $0x738] sm:$0xff]
    %v2352 = vld [vmem:[#allocation19 + $0x740] sm:$0xff]
    %v2353 = vld [vmem:[#allocation19 + $0x748] sm:$0xff]
    %v2354 = vld [vmem:[#allocation19 + $0x750] sm:$0xff]
    %v2355 = vld [vmem:[#allocation19 + $0x758] sm:$0xff]
    %v2356 = vld [vmem:[#allocation19 + $0x760] sm:$0xff]
    %v2357 = vld [vmem:[#allocation19 + $0x768] sm:$0xff]
    %v2358 = vld [vmem:[#allocation19 + $0x770] sm:$0xff]
    %v2359 = vld [vmem:[#allocation19 + $0x778] sm:$0xff]
    %v2360 = vld [vmem:[#allocation19 + $0x780] sm:$0xff]
    %v2361 = vld [vmem:[#allocation19 + $0x788] sm:$0xff]
    %v2362 = vld [vmem:[#allocation19 + $0x790] sm:$0xff]
    %v2363 = vld [vmem:[#allocation19 + $0x798] sm:$0xff]
    %v2364 = vld [vmem:[#allocation19 + $0x7a0] sm:$0xff]
    %v2365 = vld [vmem:[#allocation19 + $0x7a8] sm:$0xff]
    %v2366 = vld [vmem:[#allocation19 + $0x7b0] sm:$0xff]
    %v2367 = vld [vmem:[#allocation19 + $0x7b8] sm:$0xff]
    %v2368 = vld [vmem:[#allocation19 + $0x7c0] sm:$0xff]
    %v2369 = vld [vmem:[#allocation19 + $0x7c8] sm:$0xff]
    %v2370 = vld [vmem:[#allocation19 + $0x7d0] sm:$0xff]
    %v2371 = vld [vmem:[#allocation19 + $0x7d8] sm:$0xff]
    %v2372 = vld [vmem:[#allocation19 + $0x7e0] sm:$0xff]
    %v2373 = vld [vmem:[#allocation19 + $0x7e8] sm:$0xff]
    %v2374 = vld [vmem:[#allocation19 + $0x7f0] sm:$0xff]
    %v2375 = vld [vmem:[#allocation19 + $0x7f8] sm:$0xff]
    %v2376 = vld [vmem:[%s19] sm:$0xf]
    %v2378 = vlaneseq
    %v2379 = vshrl.u32 %v2378, 7
    %v2380 = vsub.s32 0, %v2379
    %v2381 = vrot.slane %v2376, %v2380
    %v2382 = vlaneseq
    %v2383 = vshrl.u32 %v2382, 7
    %v2384 = vsub.s32 1, %v2383
    %v2385 = vrot.slane %v2376, %v2384
    %v2386 = vlaneseq
    %v2387 = vshrl.u32 %v2386, 7
    %v2388 = vsub.s32 2, %v2387
    %v2389 = vrot.slane %v2376, %v2388
    %v2390 = vlaneseq
    %v2391 = vshrl.u32 %v2390, 7
    %v2392 = vsub.s32 3, %v2391
    %v2393 = vrot.slane %v2376, %v2392
    %v2654 = vunpack.c.l.b16 %v2120
    %v2655 = vunpack.c.h.b16 %v2120
    %v2656 = vunpack.c.l.b16 %v2121
    %v2657 = vunpack.c.h.b16 %v2121
    %v2658 = vunpack.c.l.b16 %v2122
    %v2659 = vunpack.c.h.b16 %v2122
    %v2660 = vunpack.c.l.b16 %v2123
    %v2661 = vunpack.c.h.b16 %v2123
    %v2662 = vunpack.c.l.b16 %v2124
    %v2663 = vunpack.c.h.b16 %v2124
    %v2664 = vunpack.c.l.b16 %v2125
    %v2665 = vunpack.c.h.b16 %v2125
    %v2666 = vunpack.c.l.b16 %v2126
    %v2667 = vunpack.c.h.b16 %v2126
    %v2668 = vunpack.c.l.b16 %v2127
    %v2669 = vunpack.c.h.b16 %v2127
    %v2670 = vunpack.c.l.b16 %v2128
    %v2671 = vunpack.c.h.b16 %v2128
    %v2672 = vunpack.c.l.b16 %v2129
    %v2673 = vunpack.c.h.b16 %v2129
    %v2674 = vunpack.c.l.b16 %v2130
    %v2675 = vunpack.c.h.b16 %v2130
    %v2676 = vunpack.c.l.b16 %v2131
    %v2677 = vunpack.c.h.b16 %v2131
    %v2678 = vunpack.c.l.b16 %v2132
    %v2679 = vunpack.c.h.b16 %v2132
    %v2680 = vunpack.c.l.b16 %v2133
    %v2681 = vunpack.c.h.b16 %v2133
    %v2682 = vunpack.c.l.b16 %v2134
    %v2683 = vunpack.c.h.b16 %v2134
    %v2684 = vunpack.c.l.b16 %v2135
    %v2685 = vunpack.c.h.b16 %v2135
    %v2686 = vunpack.c.l.b16 %v2136
    %v2687 = vunpack.c.h.b16 %v2136
    %v2688 = vunpack.c.l.b16 %v2137
    %v2689 = vunpack.c.h.b16 %v2137
    %v2690 = vunpack.c.l.b16 %v2138
    %v2691 = vunpack.c.h.b16 %v2138
    %v2692 = vunpack.c.l.b16 %v2139
    %v2693 = vunpack.c.h.b16 %v2139
    %v2694 = vunpack.c.l.b16 %v2140
    %v2695 = vunpack.c.h.b16 %v2140
    %v2696 = vunpack.c.l.b16 %v2141
    %v2697 = vunpack.c.h.b16 %v2141
    %v2698 = vunpack.c.l.b16 %v2142
    %v2699 = vunpack.c.h.b16 %v2142
    %v2700 = vunpack.c.l.b16 %v2143
    %v2701 = vunpack.c.h.b16 %v2143
    %v2702 = vunpack.c.l.b16 %v2144
    %v2703 = vunpack.c.h.b16 %v2144
    %v2704 = vunpack.c.l.b16 %v2145
    %v2705 = vunpack.c.h.b16 %v2145
    %v2706 = vunpack.c.l.b16 %v2146
    %v2707 = vunpack.c.h.b16 %v2146
    %v2708 = vunpack.c.l.b16 %v2147
    %v2709 = vunpack.c.h.b16 %v2147
    %v2710 = vunpack.c.l.b16 %v2148
    %v2711 = vunpack.c.h.b16 %v2148
    %v2712 = vunpack.c.l.b16 %v2149
    %v2713 = vunpack.c.h.b16 %v2149
    %v2714 = vunpack.c.l.b16 %v2150
    %v2715 = vunpack.c.h.b16 %v2150
    %v2716 = vunpack.c.l.b16 %v2151
    %v2717 = vunpack.c.h.b16 %v2151
    %v2718 = vunpack.c.l.b16 %v2152
    %v2719 = vunpack.c.h.b16 %v2152
    %v2720 = vunpack.c.l.b16 %v2153
    %v2721 = vunpack.c.h.b16 %v2153
    %v2722 = vunpack.c.l.b16 %v2154
    %v2723 = vunpack.c.h.b16 %v2154
    %v2724 = vunpack.c.l.b16 %v2155
    %v2725 = vunpack.c.h.b16 %v2155
    %v2726 = vunpack.c.l.b16 %v2156
    %v2727 = vunpack.c.h.b16 %v2156
    %v2728 = vunpack.c.l.b16 %v2157
    %v2729 = vunpack.c.h.b16 %v2157
    %v2730 = vunpack.c.l.b16 %v2158
    %v2731 = vunpack.c.h.b16 %v2158
    %v2732 = vunpack.c.l.b16 %v2159
    %v2733 = vunpack.c.h.b16 %v2159
    %v2734 = vunpack.c.l.b16 %v2160
    %v2735 = vunpack.c.h.b16 %v2160
    %v2736 = vunpack.c.l.b16 %v2161
    %v2737 = vunpack.c.h.b16 %v2161
    %v2738 = vunpack.c.l.b16 %v2162
    %v2739 = vunpack.c.h.b16 %v2162
    %v2740 = vunpack.c.l.b16 %v2163
    %v2741 = vunpack.c.h.b16 %v2163
    %v2742 = vunpack.c.l.b16 %v2164
    %v2743 = vunpack.c.h.b16 %v2164
    %v2744 = vunpack.c.l.b16 %v2165
    %v2745 = vunpack.c.h.b16 %v2165
    %v2746 = vunpack.c.l.b16 %v2166
    %v2747 = vunpack.c.h.b16 %v2166
    %v2748 = vunpack.c.l.b16 %v2167
    %v2749 = vunpack.c.h.b16 %v2167
    %v2750 = vunpack.c.l.b16 %v2168
    %v2751 = vunpack.c.h.b16 %v2168
    %v2752 = vunpack.c.l.b16 %v2169
    %v2753 = vunpack.c.h.b16 %v2169
    %v2754 = vunpack.c.l.b16 %v2170
    %v2755 = vunpack.c.h.b16 %v2170
    %v2756 = vunpack.c.l.b16 %v2171
    %v2757 = vunpack.c.h.b16 %v2171
    %v2758 = vunpack.c.l.b16 %v2172
    %v2759 = vunpack.c.h.b16 %v2172
    %v2760 = vunpack.c.l.b16 %v2173
    %v2761 = vunpack.c.h.b16 %v2173
    %v2762 = vunpack.c.l.b16 %v2174
    %v2763 = vunpack.c.h.b16 %v2174
    %v2764 = vunpack.c.l.b16 %v2175
    %v2765 = vunpack.c.h.b16 %v2175
    %v2766 = vunpack.c.l.b16 %v2176
    %v2767 = vunpack.c.h.b16 %v2176
    %v2768 = vunpack.c.l.b16 %v2177
    %v2769 = vunpack.c.h.b16 %v2177
    %v2770 = vunpack.c.l.b16 %v2178
    %v2771 = vunpack.c.h.b16 %v2178
    %v2772 = vunpack.c.l.b16 %v2179
    %v2773 = vunpack.c.h.b16 %v2179
    %v2774 = vunpack.c.l.b16 %v2180
    %v2775 = vunpack.c.h.b16 %v2180
    %v2776 = vunpack.c.l.b16 %v2181
    %v2777 = vunpack.c.h.b16 %v2181
    %v2778 = vunpack.c.l.b16 %v2182
    %v2779 = vunpack.c.h.b16 %v2182
    %v2780 = vunpack.c.l.b16 %v2183
    %v2781 = vunpack.c.h.b16 %v2183
    %v2782 = vunpack.c.l.b16 %v2184
    %v2783 = vunpack.c.h.b16 %v2184
    %v2784 = vunpack.c.l.b16 %v2185
    %v2785 = vunpack.c.h.b16 %v2185
    %v2786 = vunpack.c.l.b16 %v2186
    %v2787 = vunpack.c.h.b16 %v2186
    %v2788 = vunpack.c.l.b16 %v2187
    %v2789 = vunpack.c.h.b16 %v2187
    %v2790 = vunpack.c.l.b16 %v2188
    %v2791 = vunpack.c.h.b16 %v2188
    %v2792 = vunpack.c.l.b16 %v2189
    %v2793 = vunpack.c.h.b16 %v2189
    %v2794 = vunpack.c.l.b16 %v2190
    %v2795 = vunpack.c.h.b16 %v2190
    %v2796 = vunpack.c.l.b16 %v2191
    %v2797 = vunpack.c.h.b16 %v2191
    %v2798 = vunpack.c.l.b16 %v2192
    %v2799 = vunpack.c.h.b16 %v2192
    %v2800 = vunpack.c.l.b16 %v2193
    %v2801 = vunpack.c.h.b16 %v2193
    %v2802 = vunpack.c.l.b16 %v2194
    %v2803 = vunpack.c.h.b16 %v2194
    %v2804 = vunpack.c.l.b16 %v2195
    %v2805 = vunpack.c.h.b16 %v2195
    %v2806 = vunpack.c.l.b16 %v2196
    %v2807 = vunpack.c.h.b16 %v2196
    %v2808 = vunpack.c.l.b16 %v2197
    %v2809 = vunpack.c.h.b16 %v2197
    %v2810 = vunpack.c.l.b16 %v2198
    %v2811 = vunpack.c.h.b16 %v2198
    %v2812 = vunpack.c.l.b16 %v2199
    %v2813 = vunpack.c.h.b16 %v2199
    %v2814 = vunpack.c.l.b16 %v2200
    %v2815 = vunpack.c.h.b16 %v2200
    %v2816 = vunpack.c.l.b16 %v2201
    %v2817 = vunpack.c.h.b16 %v2201
    %v2818 = vunpack.c.l.b16 %v2202
    %v2819 = vunpack.c.h.b16 %v2202
    %v2820 = vunpack.c.l.b16 %v2203
    %v2821 = vunpack.c.h.b16 %v2203
    %v2822 = vunpack.c.l.b16 %v2204
    %v2823 = vunpack.c.h.b16 %v2204
    %v2824 = vunpack.c.l.b16 %v2205
    %v2825 = vunpack.c.h.b16 %v2205
    %v2826 = vunpack.c.l.b16 %v2206
    %v2827 = vunpack.c.h.b16 %v2206
    %v2828 = vunpack.c.l.b16 %v2207
    %v2829 = vunpack.c.h.b16 %v2207
    %v2830 = vunpack.c.l.b16 %v2208
    %v2831 = vunpack.c.h.b16 %v2208
    %v2832 = vunpack.c.l.b16 %v2209
    %v2833 = vunpack.c.h.b16 %v2209
    %v2834 = vunpack.c.l.b16 %v2210
    %v2835 = vunpack.c.h.b16 %v2210
    %v2836 = vunpack.c.l.b16 %v2211
    %v2837 = vunpack.c.h.b16 %v2211
    %v2838 = vunpack.c.l.b16 %v2212
    %v2839 = vunpack.c.h.b16 %v2212
    %v2840 = vunpack.c.l.b16 %v2213
    %v2841 = vunpack.c.h.b16 %v2213
    %v2842 = vunpack.c.l.b16 %v2214
    %v2843 = vunpack.c.h.b16 %v2214
    %v2844 = vunpack.c.l.b16 %v2215
    %v2845 = vunpack.c.h.b16 %v2215
    %v2846 = vunpack.c.l.b16 %v2216
    %v2847 = vunpack.c.h.b16 %v2216
    %v2848 = vunpack.c.l.b16 %v2217
    %v2849 = vunpack.c.h.b16 %v2217
    %v2850 = vunpack.c.l.b16 %v2218
    %v2851 = vunpack.c.h.b16 %v2218
    %v2852 = vunpack.c.l.b16 %v2219
    %v2853 = vunpack.c.h.b16 %v2219
    %v2854 = vunpack.c.l.b16 %v2220
    %v2855 = vunpack.c.h.b16 %v2220
    %v2856 = vunpack.c.l.b16 %v2221
    %v2857 = vunpack.c.h.b16 %v2221
    %v2858 = vunpack.c.l.b16 %v2222
    %v2859 = vunpack.c.h.b16 %v2222
    %v2860 = vunpack.c.l.b16 %v2223
    %v2861 = vunpack.c.h.b16 %v2223
    %v2862 = vunpack.c.l.b16 %v2224
    %v2863 = vunpack.c.h.b16 %v2224
    %v2864 = vunpack.c.l.b16 %v2225
    %v2865 = vunpack.c.h.b16 %v2225
    %v2866 = vunpack.c.l.b16 %v2226
    %v2867 = vunpack.c.h.b16 %v2226
    %v2868 = vunpack.c.l.b16 %v2227
    %v2869 = vunpack.c.h.b16 %v2227
    %v2870 = vunpack.c.l.b16 %v2228
    %v2871 = vunpack.c.h.b16 %v2228
    %v2872 = vunpack.c.l.b16 %v2229
    %v2873 = vunpack.c.h.b16 %v2229
    %v2874 = vunpack.c.l.b16 %v2230
    %v2875 = vunpack.c.h.b16 %v2230
    %v2876 = vunpack.c.l.b16 %v2231
    %v2877 = vunpack.c.h.b16 %v2231
    %v2878 = vunpack.c.l.b16 %v2232
    %v2879 = vunpack.c.h.b16 %v2232
    %v2880 = vunpack.c.l.b16 %v2233
    %v2881 = vunpack.c.h.b16 %v2233
    %v2882 = vunpack.c.l.b16 %v2234
    %v2883 = vunpack.c.h.b16 %v2234
    %v2884 = vunpack.c.l.b16 %v2235
    %v2885 = vunpack.c.h.b16 %v2235
    %v2886 = vunpack.c.l.b16 %v2236
    %v2887 = vunpack.c.h.b16 %v2236
    %v2888 = vunpack.c.l.b16 %v2237
    %v2889 = vunpack.c.h.b16 %v2237
    %v2890 = vunpack.c.l.b16 %v2238
    %v2891 = vunpack.c.h.b16 %v2238
    %v2892 = vunpack.c.l.b16 %v2239
    %v2893 = vunpack.c.h.b16 %v2239
    %v2894 = vunpack.c.l.b16 %v2240
    %v2895 = vunpack.c.h.b16 %v2240
    %v2896 = vunpack.c.l.b16 %v2241
    %v2897 = vunpack.c.h.b16 %v2241
    %v2898 = vunpack.c.l.b16 %v2242
    %v2899 = vunpack.c.h.b16 %v2242
    %v2900 = vunpack.c.l.b16 %v2243
    %v2901 = vunpack.c.h.b16 %v2243
    %v2902 = vunpack.c.l.b16 %v2244
    %v2903 = vunpack.c.h.b16 %v2244
    %v2904 = vunpack.c.l.b16 %v2245
    %v2905 = vunpack.c.h.b16 %v2245
    %v2906 = vunpack.c.l.b16 %v2246
    %v2907 = vunpack.c.h.b16 %v2246
    %v2908 = vunpack.c.l.b16 %v2247
    %v2909 = vunpack.c.h.b16 %v2247
    %v2910 = vunpack.c.l.b16 %v2248
    %v2911 = vunpack.c.h.b16 %v2248
    %v2912 = vunpack.c.l.b16 %v2249
    %v2913 = vunpack.c.h.b16 %v2249
    %v2914 = vunpack.c.l.b16 %v2250
    %v2915 = vunpack.c.h.b16 %v2250
    %v2916 = vunpack.c.l.b16 %v2251
    %v2917 = vunpack.c.h.b16 %v2251
    %v2918 = vunpack.c.l.b16 %v2252
    %v2919 = vunpack.c.h.b16 %v2252
    %v2920 = vunpack.c.l.b16 %v2253
    %v2921 = vunpack.c.h.b16 %v2253
    %v2922 = vunpack.c.l.b16 %v2254
    %v2923 = vunpack.c.h.b16 %v2254
    %v2924 = vunpack.c.l.b16 %v2255
    %v2925 = vunpack.c.h.b16 %v2255
    %v2926 = vunpack.c.l.b16 %v2256
    %v2927 = vunpack.c.h.b16 %v2256
    %v2928 = vunpack.c.l.b16 %v2257
    %v2929 = vunpack.c.h.b16 %v2257
    %v2930 = vunpack.c.l.b16 %v2258
    %v2931 = vunpack.c.h.b16 %v2258
    %v2932 = vunpack.c.l.b16 %v2259
    %v2933 = vunpack.c.h.b16 %v2259
    %v2934 = vunpack.c.l.b16 %v2260
    %v2935 = vunpack.c.h.b16 %v2260
    %v2936 = vunpack.c.l.b16 %v2261
    %v2937 = vunpack.c.h.b16 %v2261
    %v2938 = vunpack.c.l.b16 %v2262
    %v2939 = vunpack.c.h.b16 %v2262
    %v2940 = vunpack.c.l.b16 %v2263
    %v2941 = vunpack.c.h.b16 %v2263
    %v2942 = vunpack.c.l.b16 %v2264
    %v2943 = vunpack.c.h.b16 %v2264
    %v2944 = vunpack.c.l.b16 %v2265
    %v2945 = vunpack.c.h.b16 %v2265
    %v2946 = vunpack.c.l.b16 %v2266
    %v2947 = vunpack.c.h.b16 %v2266
    %v2948 = vunpack.c.l.b16 %v2267
    %v2949 = vunpack.c.h.b16 %v2267
    %v2950 = vunpack.c.l.b16 %v2268
    %v2951 = vunpack.c.h.b16 %v2268
    %v2952 = vunpack.c.l.b16 %v2269
    %v2953 = vunpack.c.h.b16 %v2269
    %v2954 = vunpack.c.l.b16 %v2270
    %v2955 = vunpack.c.h.b16 %v2270
    %v2956 = vunpack.c.l.b16 %v2271
    %v2957 = vunpack.c.h.b16 %v2271
    %v2958 = vunpack.c.l.b16 %v2272
    %v2959 = vunpack.c.h.b16 %v2272
    %v2960 = vunpack.c.l.b16 %v2273
    %v2961 = vunpack.c.h.b16 %v2273
    %v2962 = vunpack.c.l.b16 %v2274
    %v2963 = vunpack.c.h.b16 %v2274
    %v2964 = vunpack.c.l.b16 %v2275
    %v2965 = vunpack.c.h.b16 %v2275
    %v2966 = vunpack.c.l.b16 %v2276
    %v2967 = vunpack.c.h.b16 %v2276
    %v2968 = vunpack.c.l.b16 %v2277
    %v2969 = vunpack.c.h.b16 %v2277
    %v2970 = vunpack.c.l.b16 %v2278
    %v2971 = vunpack.c.h.b16 %v2278
    %v2972 = vunpack.c.l.b16 %v2279
    %v2973 = vunpack.c.h.b16 %v2279
    %v2974 = vunpack.c.l.b16 %v2280
    %v2975 = vunpack.c.h.b16 %v2280
    %v2976 = vunpack.c.l.b16 %v2281
    %v2977 = vunpack.c.h.b16 %v2281
    %v2978 = vunpack.c.l.b16 %v2282
    %v2979 = vunpack.c.h.b16 %v2282
    %v2980 = vunpack.c.l.b16 %v2283
    %v2981 = vunpack.c.h.b16 %v2283
    %v2982 = vunpack.c.l.b16 %v2284
    %v2983 = vunpack.c.h.b16 %v2284
    %v2984 = vunpack.c.l.b16 %v2285
    %v2985 = vunpack.c.h.b16 %v2285
    %v2986 = vunpack.c.l.b16 %v2286
    %v2987 = vunpack.c.h.b16 %v2286
    %v2988 = vunpack.c.l.b16 %v2287
    %v2989 = vunpack.c.h.b16 %v2287
    %v2990 = vunpack.c.l.b16 %v2288
    %v2991 = vunpack.c.h.b16 %v2288
    %v2992 = vunpack.c.l.b16 %v2289
    %v2993 = vunpack.c.h.b16 %v2289
    %v2994 = vunpack.c.l.b16 %v2290
    %v2995 = vunpack.c.h.b16 %v2290
    %v2996 = vunpack.c.l.b16 %v2291
    %v2997 = vunpack.c.h.b16 %v2291
    %v2998 = vunpack.c.l.b16 %v2292
    %v2999 = vunpack.c.h.b16 %v2292
    %v3000 = vunpack.c.l.b16 %v2293
    %v3001 = vunpack.c.h.b16 %v2293
    %v3002 = vunpack.c.l.b16 %v2294
    %v3003 = vunpack.c.h.b16 %v2294
    %v3004 = vunpack.c.l.b16 %v2295
    %v3005 = vunpack.c.h.b16 %v2295
    %v3006 = vunpack.c.l.b16 %v2296
    %v3007 = vunpack.c.h.b16 %v2296
    %v3008 = vunpack.c.l.b16 %v2297
    %v3009 = vunpack.c.h.b16 %v2297
    %v3010 = vunpack.c.l.b16 %v2298
    %v3011 = vunpack.c.h.b16 %v2298
    %v3012 = vunpack.c.l.b16 %v2299
    %v3013 = vunpack.c.h.b16 %v2299
    %v3014 = vunpack.c.l.b16 %v2300
    %v3015 = vunpack.c.h.b16 %v2300
    %v3016 = vunpack.c.l.b16 %v2301
    %v3017 = vunpack.c.h.b16 %v2301
    %v3018 = vunpack.c.l.b16 %v2302
    %v3019 = vunpack.c.h.b16 %v2302
    %v3020 = vunpack.c.l.b16 %v2303
    %v3021 = vunpack.c.h.b16 %v2303
    %v3022 = vunpack.c.l.b16 %v2304
    %v3023 = vunpack.c.h.b16 %v2304
    %v3024 = vunpack.c.l.b16 %v2305
    %v3025 = vunpack.c.h.b16 %v2305
    %v3026 = vunpack.c.l.b16 %v2306
    %v3027 = vunpack.c.h.b16 %v2306
    %v3028 = vunpack.c.l.b16 %v2307
    %v3029 = vunpack.c.h.b16 %v2307
    %v3030 = vunpack.c.l.b16 %v2308
    %v3031 = vunpack.c.h.b16 %v2308
    %v3032 = vunpack.c.l.b16 %v2309
    %v3033 = vunpack.c.h.b16 %v2309
    %v3034 = vunpack.c.l.b16 %v2310
    %v3035 = vunpack.c.h.b16 %v2310
    %v3036 = vunpack.c.l.b16 %v2311
    %v3037 = vunpack.c.h.b16 %v2311
    %v3038 = vunpack.c.l.b16 %v2312
    %v3039 = vunpack.c.h.b16 %v2312
    %v3040 = vunpack.c.l.b16 %v2313
    %v3041 = vunpack.c.h.b16 %v2313
    %v3042 = vunpack.c.l.b16 %v2314
    %v3043 = vunpack.c.h.b16 %v2314
    %v3044 = vunpack.c.l.b16 %v2315
    %v3045 = vunpack.c.h.b16 %v2315
    %v3046 = vunpack.c.l.b16 %v2316
    %v3047 = vunpack.c.h.b16 %v2316
    %v3048 = vunpack.c.l.b16 %v2317
    %v3049 = vunpack.c.h.b16 %v2317
    %v3050 = vunpack.c.l.b16 %v2318
    %v3051 = vunpack.c.h.b16 %v2318
    %v3052 = vunpack.c.l.b16 %v2319
    %v3053 = vunpack.c.h.b16 %v2319
    %v3054 = vunpack.c.l.b16 %v2320
    %v3055 = vunpack.c.h.b16 %v2320
    %v3056 = vunpack.c.l.b16 %v2321
    %v3057 = vunpack.c.h.b16 %v2321
    %v3058 = vunpack.c.l.b16 %v2322
    %v3059 = vunpack.c.h.b16 %v2322
    %v3060 = vunpack.c.l.b16 %v2323
    %v3061 = vunpack.c.h.b16 %v2323
    %v3062 = vunpack.c.l.b16 %v2324
    %v3063 = vunpack.c.h.b16 %v2324
    %v3064 = vunpack.c.l.b16 %v2325
    %v3065 = vunpack.c.h.b16 %v2325
    %v3066 = vunpack.c.l.b16 %v2326
    %v3067 = vunpack.c.h.b16 %v2326
    %v3068 = vunpack.c.l.b16 %v2327
    %v3069 = vunpack.c.h.b16 %v2327
    %v3070 = vunpack.c.l.b16 %v2328
    %v3071 = vunpack.c.h.b16 %v2328
    %v3072 = vunpack.c.l.b16 %v2329
    %v3073 = vunpack.c.h.b16 %v2329
    %v3074 = vunpack.c.l.b16 %v2330
    %v3075 = vunpack.c.h.b16 %v2330
    %v3076 = vunpack.c.l.b16 %v2331
    %v3077 = vunpack.c.h.b16 %v2331
    %v3078 = vunpack.c.l.b16 %v2332
    %v3079 = vunpack.c.h.b16 %v2332
    %v3080 = vunpack.c.l.b16 %v2333
    %v3081 = vunpack.c.h.b16 %v2333
    %v3082 = vunpack.c.l.b16 %v2334
    %v3083 = vunpack.c.h.b16 %v2334
    %v3084 = vunpack.c.l.b16 %v2335
    %v3085 = vunpack.c.h.b16 %v2335
    %v3086 = vunpack.c.l.b16 %v2336
    %v3087 = vunpack.c.h.b16 %v2336
    %v3088 = vunpack.c.l.b16 %v2337
    %v3089 = vunpack.c.h.b16 %v2337
    %v3090 = vunpack.c.l.b16 %v2338
    %v3091 = vunpack.c.h.b16 %v2338
    %v3092 = vunpack.c.l.b16 %v2339
    %v3093 = vunpack.c.h.b16 %v2339
    %v3094 = vunpack.c.l.b16 %v2340
    %v3095 = vunpack.c.h.b16 %v2340
    %v3096 = vunpack.c.l.b16 %v2341
    %v3097 = vunpack.c.h.b16 %v2341
    %v3098 = vunpack.c.l.b16 %v2342
    %v3099 = vunpack.c.h.b16 %v2342
    %v3100 = vunpack.c.l.b16 %v2343
    %v3101 = vunpack.c.h.b16 %v2343
    %v3102 = vunpack.c.l.b16 %v2344
    %v3103 = vunpack.c.h.b16 %v2344
    %v3104 = vunpack.c.l.b16 %v2345
    %v3105 = vunpack.c.h.b16 %v2345
    %v3106 = vunpack.c.l.b16 %v2346
    %v3107 = vunpack.c.h.b16 %v2346
    %v3108 = vunpack.c.l.b16 %v2347
    %v3109 = vunpack.c.h.b16 %v2347
    %v3110 = vunpack.c.l.b16 %v2348
    %v3111 = vunpack.c.h.b16 %v2348
    %v3112 = vunpack.c.l.b16 %v2349
    %v3113 = vunpack.c.h.b16 %v2349
    %v3114 = vunpack.c.l.b16 %v2350
    %v3115 = vunpack.c.h.b16 %v2350
    %v3116 = vunpack.c.l.b16 %v2351
    %v3117 = vunpack.c.h.b16 %v2351
    %v3118 = vunpack.c.l.b16 %v2352
    %v3119 = vunpack.c.h.b16 %v2352
    %v3120 = vunpack.c.l.b16 %v2353
    %v3121 = vunpack.c.h.b16 %v2353
    %v3122 = vunpack.c.l.b16 %v2354
    %v3123 = vunpack.c.h.b16 %v2354
    %v3124 = vunpack.c.l.b16 %v2355
    %v3125 = vunpack.c.h.b16 %v2355
    %v3126 = vunpack.c.l.b16 %v2356
    %v3127 = vunpack.c.h.b16 %v2356
    %v3128 = vunpack.c.l.b16 %v2357
    %v3129 = vunpack.c.h.b16 %v2357
    %v3130 = vunpack.c.l.b16 %v2358
    %v3131 = vunpack.c.h.b16 %v2358
    %v3132 = vunpack.c.l.b16 %v2359
    %v3133 = vunpack.c.h.b16 %v2359
    %v3134 = vunpack.c.l.b16 %v2360
    %v3135 = vunpack.c.h.b16 %v2360
    %v3136 = vunpack.c.l.b16 %v2361
    %v3137 = vunpack.c.h.b16 %v2361
    %v3138 = vunpack.c.l.b16 %v2362
    %v3139 = vunpack.c.h.b16 %v2362
    %v3140 = vunpack.c.l.b16 %v2363
    %v3141 = vunpack.c.h.b16 %v2363
    %v3142 = vunpack.c.l.b16 %v2364
    %v3143 = vunpack.c.h.b16 %v2364
    %v3144 = vunpack.c.l.b16 %v2365
    %v3145 = vunpack.c.h.b16 %v2365
    %v3146 = vunpack.c.l.b16 %v2366
    %v3147 = vunpack.c.h.b16 %v2366
    %v3148 = vunpack.c.l.b16 %v2367
    %v3149 = vunpack.c.h.b16 %v2367
    %v3150 = vunpack.c.l.b16 %v2368
    %v3151 = vunpack.c.h.b16 %v2368
    %v3152 = vunpack.c.l.b16 %v2369
    %v3153 = vunpack.c.h.b16 %v2369
    %v3154 = vunpack.c.l.b16 %v2370
    %v3155 = vunpack.c.h.b16 %v2370
    %v3156 = vunpack.c.l.b16 %v2371
    %v3157 = vunpack.c.h.b16 %v2371
    %v3158 = vunpack.c.l.b16 %v2372
    %v3159 = vunpack.c.h.b16 %v2372
    %v3160 = vunpack.c.l.b16 %v2373
    %v3161 = vunpack.c.h.b16 %v2373
    %v3162 = vunpack.c.l.b16 %v2374
    %v3163 = vunpack.c.h.b16 %v2374
    %v3164 = vunpack.c.l.b16 %v2375
    %v3165 = vunpack.c.h.b16 %v2375
    %v3166 = vpack.c.b16 %v2658, %v2654
    %v3167 = vpack.c.b16 %v2659, %v2655
    %v3168 = vpack.c.b16 %v2660, %v2656
    %v3169 = vpack.c.b16 %v2661, %v2657
    %v3170 = vpack.c.b16 %v2666, %v2662
    %v3171 = vpack.c.b16 %v2667, %v2663
    %v3172 = vpack.c.b16 %v2668, %v2664
    %v3173 = vpack.c.b16 %v2669, %v2665
    %v3174 = vpack.c.b16 %v2674, %v2670
    %v3175 = vpack.c.b16 %v2675, %v2671
    %v3176 = vpack.c.b16 %v2676, %v2672
    %v3177 = vpack.c.b16 %v2677, %v2673
    %v3178 = vpack.c.b16 %v2682, %v2678
    %v3179 = vpack.c.b16 %v2683, %v2679
    %v3180 = vpack.c.b16 %v2684, %v2680
    %v3181 = vpack.c.b16 %v2685, %v2681
    %v3182 = vpack.c.b16 %v2690, %v2686
    %v3183 = vpack.c.b16 %v2691, %v2687
    %v3184 = vpack.c.b16 %v2692, %v2688
    %v3185 = vpack.c.b16 %v2693, %v2689
    %v3186 = vpack.c.b16 %v2698, %v2694
    %v3187 = vpack.c.b16 %v2699, %v2695
    %v3188 = vpack.c.b16 %v2700, %v2696
    %v3189 = vpack.c.b16 %v2701, %v2697
    %v3190 = vpack.c.b16 %v2706, %v2702
    %v3191 = vpack.c.b16 %v2707, %v2703
    %v3192 = vpack.c.b16 %v2708, %v2704
    %v3193 = vpack.c.b16 %v2709, %v2705
    %v3194 = vpack.c.b16 %v2714, %v2710
    %v3195 = vpack.c.b16 %v2715, %v2711
    %v3196 = vpack.c.b16 %v2716, %v2712
    %v3197 = vpack.c.b16 %v2717, %v2713
    %v3198 = vpack.c.b16 %v2722, %v2718
    %v3199 = vpack.c.b16 %v2723, %v2719
    %v3200 = vpack.c.b16 %v2724, %v2720
    %v3201 = vpack.c.b16 %v2725, %v2721
    %v3202 = vpack.c.b16 %v2730, %v2726
    %v3203 = vpack.c.b16 %v2731, %v2727
    %v3204 = vpack.c.b16 %v2732, %v2728
    %v3205 = vpack.c.b16 %v2733, %v2729
    %v3206 = vpack.c.b16 %v2738, %v2734
    %v3207 = vpack.c.b16 %v2739, %v2735
    %v3208 = vpack.c.b16 %v2740, %v2736
    %v3209 = vpack.c.b16 %v2741, %v2737
    %v3210 = vpack.c.b16 %v2746, %v2742
    %v3211 = vpack.c.b16 %v2747, %v2743
    %v3212 = vpack.c.b16 %v2748, %v2744
    %v3213 = vpack.c.b16 %v2749, %v2745
    %v3214 = vpack.c.b16 %v2754, %v2750
    %v3215 = vpack.c.b16 %v2755, %v2751
    %v3216 = vpack.c.b16 %v2756, %v2752
    %v3217 = vpack.c.b16 %v2757, %v2753
    %v3218 = vpack.c.b16 %v2762, %v2758
    %v3219 = vpack.c.b16 %v2763, %v2759
    %v3220 = vpack.c.b16 %v2764, %v2760
    %v3221 = vpack.c.b16 %v2765, %v2761
    %v3222 = vpack.c.b16 %v2770, %v2766
    %v3223 = vpack.c.b16 %v2771, %v2767
    %v3224 = vpack.c.b16 %v2772, %v2768
    %v3225 = vpack.c.b16 %v2773, %v2769
    %v3226 = vpack.c.b16 %v2778, %v2774
    %v3227 = vpack.c.b16 %v2779, %v2775
    %v3228 = vpack.c.b16 %v2780, %v2776
    %v3229 = vpack.c.b16 %v2781, %v2777
    %v3230 = vpack.c.b16 %v2786, %v2782
    %v3231 = vpack.c.b16 %v2787, %v2783
    %v3232 = vpack.c.b16 %v2788, %v2784
    %v3233 = vpack.c.b16 %v2789, %v2785
    %v3234 = vpack.c.b16 %v2794, %v2790
    %v3235 = vpack.c.b16 %v2795, %v2791
    %v3236 = vpack.c.b16 %v2796, %v2792
    %v3237 = vpack.c.b16 %v2797, %v2793
    %v3238 = vpack.c.b16 %v2802, %v2798
    %v3239 = vpack.c.b16 %v2803, %v2799
    %v3240 = vpack.c.b16 %v2804, %v2800
    %v3241 = vpack.c.b16 %v2805, %v2801
    %v3242 = vpack.c.b16 %v2810, %v2806
    %v3243 = vpack.c.b16 %v2811, %v2807
    %v3244 = vpack.c.b16 %v2812, %v2808
    %v3245 = vpack.c.b16 %v2813, %v2809
    %v3246 = vpack.c.b16 %v2818, %v2814
    %v3247 = vpack.c.b16 %v2819, %v2815
    %v3248 = vpack.c.b16 %v2820, %v2816
    %v3249 = vpack.c.b16 %v2821, %v2817
    %v3250 = vpack.c.b16 %v2826, %v2822
    %v3251 = vpack.c.b16 %v2827, %v2823
    %v3252 = vpack.c.b16 %v2828, %v2824
    %v3253 = vpack.c.b16 %v2829, %v2825
    %v3254 = vpack.c.b16 %v2834, %v2830
    %v3255 = vpack.c.b16 %v2835, %v2831
    %v3256 = vpack.c.b16 %v2836, %v2832
    %v3257 = vpack.c.b16 %v2837, %v2833
    %v3258 = vpack.c.b16 %v2842, %v2838
    %v3259 = vpack.c.b16 %v2843, %v2839
    %v3260 = vpack.c.b16 %v2844, %v2840
    %v3261 = vpack.c.b16 %v2845, %v2841
    %v3262 = vpack.c.b16 %v2850, %v2846
    %v3263 = vpack.c.b16 %v2851, %v2847
    %v3264 = vpack.c.b16 %v2852, %v2848
    %v3265 = vpack.c.b16 %v2853, %v2849
    %v3266 = vpack.c.b16 %v2858, %v2854
    %v3267 = vpack.c.b16 %v2859, %v2855
    %v3268 = vpack.c.b16 %v2860, %v2856
    %v3269 = vpack.c.b16 %v2861, %v2857
    %v3270 = vpack.c.b16 %v2866, %v2862
    %v3271 = vpack.c.b16 %v2867, %v2863
    %v3272 = vpack.c.b16 %v2868, %v2864
    %v3273 = vpack.c.b16 %v2869, %v2865
    %v3274 = vpack.c.b16 %v2874, %v2870
    %v3275 = vpack.c.b16 %v2875, %v2871
    %v3276 = vpack.c.b16 %v2876, %v2872
    %v3277 = vpack.c.b16 %v2877, %v2873
    %v3278 = vpack.c.b16 %v2882, %v2878
    %v3279 = vpack.c.b16 %v2883, %v2879
    %v3280 = vpack.c.b16 %v2884, %v2880
    %v3281 = vpack.c.b16 %v2885, %v2881
    %v3282 = vpack.c.b16 %v2890, %v2886
    %v3283 = vpack.c.b16 %v2891, %v2887
    %v3284 = vpack.c.b16 %v2892, %v2888
    %v3285 = vpack.c.b16 %v2893, %v2889
    %v3286 = vpack.c.b16 %v2898, %v2894
    %v3287 = vpack.c.b16 %v2899, %v2895
    %v3288 = vpack.c.b16 %v2900, %v2896
    %v3289 = vpack.c.b16 %v2901, %v2897
    %v3290 = vpack.c.b16 %v2906, %v2902
    %v3291 = vpack.c.b16 %v2907, %v2903
    %v3292 = vpack.c.b16 %v2908, %v2904
    %v3293 = vpack.c.b16 %v2909, %v2905
    %v3294 = vpack.c.b16 %v2914, %v2910
    %v3295 = vpack.c.b16 %v2915, %v2911
    %v3296 = vpack.c.b16 %v2916, %v2912
    %v3297 = vpack.c.b16 %v2917, %v2913
    %v3298 = vpack.c.b16 %v2922, %v2918
    %v3299 = vpack.c.b16 %v2923, %v2919
    %v3300 = vpack.c.b16 %v2924, %v2920
    %v3301 = vpack.c.b16 %v2925, %v2921
    %v3302 = vpack.c.b16 %v2930, %v2926
    %v3303 = vpack.c.b16 %v2931, %v2927
    %v3304 = vpack.c.b16 %v2932, %v2928
    %v3305 = vpack.c.b16 %v2933, %v2929
    %v3306 = vpack.c.b16 %v2938, %v2934
    %v3307 = vpack.c.b16 %v2939, %v2935
    %v3308 = vpack.c.b16 %v2940, %v2936
    %v3309 = vpack.c.b16 %v2941, %v2937
    %v3310 = vpack.c.b16 %v2946, %v2942
    %v3311 = vpack.c.b16 %v2947, %v2943
    %v3312 = vpack.c.b16 %v2948, %v2944
    %v3313 = vpack.c.b16 %v2949, %v2945
    %v3314 = vpack.c.b16 %v2954, %v2950
    %v3315 = vpack.c.b16 %v2955, %v2951
    %v3316 = vpack.c.b16 %v2956, %v2952
    %v3317 = vpack.c.b16 %v2957, %v2953
    %v3318 = vpack.c.b16 %v2962, %v2958
    %v3319 = vpack.c.b16 %v2963, %v2959
    %v3320 = vpack.c.b16 %v2964, %v2960
    %v3321 = vpack.c.b16 %v2965, %v2961
    %v3322 = vpack.c.b16 %v2970, %v2966
    %v3323 = vpack.c.b16 %v2971, %v2967
    %v3324 = vpack.c.b16 %v2972, %v2968
    %v3325 = vpack.c.b16 %v2973, %v2969
    %v3326 = vpack.c.b16 %v2978, %v2974
    %v3327 = vpack.c.b16 %v2979, %v2975
    %v3328 = vpack.c.b16 %v2980, %v2976
    %v3329 = vpack.c.b16 %v2981, %v2977
    %v3330 = vpack.c.b16 %v2986, %v2982
    %v3331 = vpack.c.b16 %v2987, %v2983
    %v3332 = vpack.c.b16 %v2988, %v2984
    %v3333 = vpack.c.b16 %v2989, %v2985
    %v3334 = vpack.c.b16 %v2994, %v2990
    %v3335 = vpack.c.b16 %v2995, %v2991
    %v3336 = vpack.c.b16 %v2996, %v2992
    %v3337 = vpack.c.b16 %v2997, %v2993
    %v3338 = vpack.c.b16 %v3002, %v2998
    %v3339 = vpack.c.b16 %v3003, %v2999
    %v3340 = vpack.c.b16 %v3004, %v3000
    %v3341 = vpack.c.b16 %v3005, %v3001
    %v3342 = vpack.c.b16 %v3010, %v3006
    %v3343 = vpack.c.b16 %v3011, %v3007
    %v3344 = vpack.c.b16 %v3012, %v3008
    %v3345 = vpack.c.b16 %v3013, %v3009
    %v3346 = vpack.c.b16 %v3018, %v3014
    %v3347 = vpack.c.b16 %v3019, %v3015
    %v3348 = vpack.c.b16 %v3020, %v3016
    %v3349 = vpack.c.b16 %v3021, %v3017
    %v3350 = vpack.c.b16 %v3026, %v3022
    %v3351 = vpack.c.b16 %v3027, %v3023
    %v3352 = vpack.c.b16 %v3028, %v3024
    %v3353 = vpack.c.b16 %v3029, %v3025
    %v3354 = vpack.c.b16 %v3034, %v3030
    %v3355 = vpack.c.b16 %v3035, %v3031
    %v3356 = vpack.c.b16 %v3036, %v3032
    %v3357 = vpack.c.b16 %v3037, %v3033
    %v3358 = vpack.c.b16 %v3042, %v3038
    %v3359 = vpack.c.b16 %v3043, %v3039
    %v3360 = vpack.c.b16 %v3044, %v3040
    %v3361 = vpack.c.b16 %v3045, %v3041
    %v3362 = vpack.c.b16 %v3050, %v3046
    %v3363 = vpack.c.b16 %v3051, %v3047
    %v3364 = vpack.c.b16 %v3052, %v3048
    %v3365 = vpack.c.b16 %v3053, %v3049
    %v3366 = vpack.c.b16 %v3058, %v3054
    %v3367 = vpack.c.b16 %v3059, %v3055
    %v3368 = vpack.c.b16 %v3060, %v3056
    %v3369 = vpack.c.b16 %v3061, %v3057
    %v3370 = vpack.c.b16 %v3066, %v3062
    %v3371 = vpack.c.b16 %v3067, %v3063
    %v3372 = vpack.c.b16 %v3068, %v3064
    %v3373 = vpack.c.b16 %v3069, %v3065
    %v3374 = vpack.c.b16 %v3074, %v3070
    %v3375 = vpack.c.b16 %v3075, %v3071
    %v3376 = vpack.c.b16 %v3076, %v3072
    %v3377 = vpack.c.b16 %v3077, %v3073
    %v3378 = vpack.c.b16 %v3082, %v3078
    %v3379 = vpack.c.b16 %v3083, %v3079
    %v3380 = vpack.c.b16 %v3084, %v3080
    %v3381 = vpack.c.b16 %v3085, %v3081
    %v3382 = vpack.c.b16 %v3090, %v3086
    %v3383 = vpack.c.b16 %v3091, %v3087
    %v3384 = vpack.c.b16 %v3092, %v3088
    %v3385 = vpack.c.b16 %v3093, %v3089
    %v3386 = vpack.c.b16 %v3098, %v3094
    %v3387 = vpack.c.b16 %v3099, %v3095
    %v3388 = vpack.c.b16 %v3100, %v3096
    %v3389 = vpack.c.b16 %v3101, %v3097
    %v3390 = vpack.c.b16 %v3106, %v3102
    %v3391 = vpack.c.b16 %v3107, %v3103
    %v3392 = vpack.c.b16 %v3108, %v3104
    %v3393 = vpack.c.b16 %v3109, %v3105
    %v3394 = vpack.c.b16 %v3114, %v3110
    %v3395 = vpack.c.b16 %v3115, %v3111
    %v3396 = vpack.c.b16 %v3116, %v3112
    %v3397 = vpack.c.b16 %v3117, %v3113
    %v3398 = vpack.c.b16 %v3122, %v3118
    %v3399 = vpack.c.b16 %v3123, %v3119
    %v3400 = vpack.c.b16 %v3124, %v3120
    %v3401 = vpack.c.b16 %v3125, %v3121
    %v3402 = vpack.c.b16 %v3130, %v3126
    %v3403 = vpack.c.b16 %v3131, %v3127
    %v3404 = vpack.c.b16 %v3132, %v3128
    %v3405 = vpack.c.b16 %v3133, %v3129
    %v3406 = vpack.c.b16 %v3138, %v3134
    %v3407 = vpack.c.b16 %v3139, %v3135
    %v3408 = vpack.c.b16 %v3140, %v3136
    %v3409 = vpack.c.b16 %v3141, %v3137
    %v3410 = vpack.c.b16 %v3146, %v3142
    %v3411 = vpack.c.b16 %v3147, %v3143
    %v3412 = vpack.c.b16 %v3148, %v3144
    %v3413 = vpack.c.b16 %v3149, %v3145
    %v3414 = vpack.c.b16 %v3154, %v3150
    %v3415 = vpack.c.b16 %v3155, %v3151
    %v3416 = vpack.c.b16 %v3156, %v3152
    %v3417 = vpack.c.b16 %v3157, %v3153
    %v3418 = vpack.c.b16 %v3162, %v3158
    %v3419 = vpack.c.b16 %v3163, %v3159
    %v3420 = vpack.c.b16 %v3164, %v3160
    %v3421 = vpack.c.b16 %v3165, %v3161
    %3678 = vmatprep.subr.bf16.mxu0 %v3167
    %3679 = vmatpush1.bf16.msra.mxu0 %v3166
    %3680 = vmatprep.subr.bf16.mxu0 %v3171
    %3681 = vmatpush1.bf16.msra.mxu0 %v3170
    %3682 = vmatprep.subr.bf16.mxu0 %v3175
    %3683 = vmatpush1.bf16.msra.mxu0 %v3174
    %3684 = vmatprep.subr.bf16.mxu0 %v3179
    %3685 = vmatpush1.bf16.msra.mxu0 %v3178
    %3686 = vmatprep.subr.bf16.mxu0 %v3183
    %3687 = vmatpush1.bf16.msra.mxu0 %v3182
    %3688 = vmatprep.subr.bf16.mxu0 %v3187
    %3689 = vmatpush1.bf16.msra.mxu0 %v3186
    %3690 = vmatprep.subr.bf16.mxu0 %v3191
    %3691 = vmatpush1.bf16.msra.mxu0 %v3190
    %3692 = vmatprep.subr.bf16.mxu0 %v3195
    %3693 = vmatpush1.bf16.msra.mxu0 %v3194
    %3694 = vmatprep.subr.bf16.mxu0 %v3199
    %3695 = vmatpush1.bf16.msra.mxu0 %v3198
    %3696 = vmatprep.subr.bf16.mxu0 %v3203
    %3697 = vmatpush1.bf16.msra.mxu0 %v3202
    %3698 = vmatprep.subr.bf16.mxu0 %v3207
    %3699 = vmatpush1.bf16.msra.mxu0 %v3206
    %3700 = vmatprep.subr.bf16.mxu0 %v3211
    %3701 = vmatpush1.bf16.msra.mxu0 %v3210
    %3702 = vmatprep.subr.bf16.mxu0 %v3215
    %3703 = vmatpush1.bf16.msra.mxu0 %v3214
    %3704 = vmatprep.subr.bf16.mxu0 %v3219
    %3705 = vmatpush1.bf16.msra.mxu0 %v3218
    %3706 = vmatprep.subr.bf16.mxu0 %v3223
    %3707 = vmatpush1.bf16.msra.mxu0 %v3222
    %3708 = vmatprep.subr.bf16.mxu0 %v3227
    %3709 = vmatpush1.bf16.msra.mxu0 %v3226
    %3710 = vmatprep.mubr.bf16.mxu0 %v2113
    %3711 = vmatmul.mubr.bf16.gmra.mrb[0].mxu0 %v2112
    %v3712 = vpop.f32.mrb[0].mxu0
    %v3713 = vadd.f32 %v2381, %v3712
    %v3714 = vpop.f32.mrb[0].mxu0
    %v3715 = vadd.f32 %v2385, %v3714
    %v3716 = vpop.f32.mrb[0].mxu0
    %v3717 = vadd.f32 %v2381, %v3716
    %v3718 = vpop.f32.mrb[0].mxu0
    %v3719 = vadd.f32 %v2385, %v3718
    %3720 = vdwg.mxu0
    %3721 = vmatprep.subr.bf16.mxu0 %v3231
    %3722 = vmatpush1.bf16.msra.mxu0 %v3230
    %3723 = vmatprep.subr.bf16.mxu0 %v3235
    %3724 = vmatpush1.bf16.msra.mxu0 %v3234
    %3725 = vmatprep.subr.bf16.mxu0 %v3239
    %3726 = vmatpush1.bf16.msra.mxu0 %v3238
    %3727 = vmatprep.subr.bf16.mxu0 %v3243
    %3728 = vmatpush1.bf16.msra.mxu0 %v3242
    %3729 = vmatprep.subr.bf16.mxu0 %v3247
    %3730 = vmatpush1.bf16.msra.mxu0 %v3246
    %3731 = vmatprep.subr.bf16.mxu0 %v3251
    %3732 = vmatpush1.bf16.msra.mxu0 %v3250
    %3733 = vmatprep.subr.bf16.mxu0 %v3255
    %3734 = vmatpush1.bf16.msra.mxu0 %v3254
    %3735 = vmatprep.subr.bf16.mxu0 %v3259
    %3736 = vmatpush1.bf16.msra.mxu0 %v3258
    %3737 = vmatprep.subr.bf16.mxu0 %v3263
    %3738 = vmatpush1.bf16.msra.mxu0 %v3262
    %3739 = vmatprep.subr.bf16.mxu0 %v3267
    %3740 = vmatpush1.bf16.msra.mxu0 %v3266
    %3741 = vmatprep.subr.bf16.mxu0 %v3271
    %3742 = vmatpush1.bf16.msra.mxu0 %v3270
    %3743 = vmatprep.subr.bf16.mxu0 %v3275
    %3744 = vmatpush1.bf16.msra.mxu0 %v3274
    %3745 = vmatprep.subr.bf16.mxu0 %v3279
    %3746 = vmatpush1.bf16.msra.mxu0 %v3278
    %3747 = vmatprep.subr.bf16.mxu0 %v3283
    %3748 = vmatpush1.bf16.msra.mxu0 %v3282
    %3749 = vmatprep.subr.bf16.mxu0 %v3287
    %3750 = vmatpush1.bf16.msra.mxu0 %v3286
    %3751 = vmatprep.subr.bf16.mxu0 %v3291
    %3752 = vmatpush1.bf16.msra.mxu0 %v3290
    %3753 = vmatprep.mubr.bf16.mxu0 %v2115
    %3754 = vmatmul.mubr.bf16.gmra.mrb[0].mxu0 %v2114
    %v3755 = vpop.f32.mrb[0].mxu0
    %v3756 = vadd.f32 %v3713, %v3755
    %v3757 = vpop.f32.mrb[0].mxu0
    %v3758 = vadd.f32 %v3715, %v3757
    %v3759 = vpop.f32.mrb[0].mxu0
    %v3760 = vadd.f32 %v3717, %v3759
    %v3761 = vpop.f32.mrb[0].mxu0
    %v3762 = vadd.f32 %v3719, %v3761
    %3763 = vdwg.mxu0
    %3764 = vmatprep.subr.bf16.mxu0 %v3295
    %3765 = vmatpush1.bf16.msra.mxu0 %v3294
    %3766 = vmatprep.subr.bf16.mxu0 %v3299
    %3767 = vmatpush1.bf16.msra.mxu0 %v3298
    %3768 = vmatprep.subr.bf16.mxu0 %v3303
    %3769 = vmatpush1.bf16.msra.mxu0 %v3302
    %3770 = vmatprep.subr.bf16.mxu0 %v3307
    %3771 = vmatpush1.bf16.msra.mxu0 %v3306
    %3772 = vmatprep.subr.bf16.mxu0 %v3311
    %3773 = vmatpush1.bf16.msra.mxu0 %v3310
    %3774 = vmatprep.subr.bf16.mxu0 %v3315
    %3775 = vmatpush1.bf16.msra.mxu0 %v3314
    %3776 = vmatprep.subr.bf16.mxu0 %v3319
    %3777 = vmatpush1.bf16.msra.mxu0 %v3318
    %3778 = vmatprep.subr.bf16.mxu0 %v3323
    %3779 = vmatpush1.bf16.msra.mxu0 %v3322
    %3780 = vmatprep.subr.bf16.mxu0 %v3327
    %3781 = vmatpush1.bf16.msra.mxu0 %v3326
    %3782 = vmatprep.subr.bf16.mxu0 %v3331
    %3783 = vmatpush1.bf16.msra.mxu0 %v3330
    %3784 = vmatprep.subr.bf16.mxu0 %v3335
    %3785 = vmatpush1.bf16.msra.mxu0 %v3334
    %3786 = vmatprep.subr.bf16.mxu0 %v3339
    %3787 = vmatpush1.bf16.msra.mxu0 %v3338
    %3788 = vmatprep.subr.bf16.mxu0 %v3343
    %3789 = vmatpush1.bf16.msra.mxu0 %v3342
    %3790 = vmatprep.subr.bf16.mxu0 %v3347
    %3791 = vmatpush1.bf16.msra.mxu0 %v3346
    %3792 = vmatprep.subr.bf16.mxu0 %v3351
    %3793 = vmatpush1.bf16.msra.mxu0 %v3350
    %3794 = vmatprep.subr.bf16.mxu0 %v3355
    %3795 = vmatpush1.bf16.msra.mxu0 %v3354
    %3796 = vmatprep.mubr.bf16.mxu0 %v2117
    %3797 = vmatmul.mubr.bf16.gmra.mrb[0].mxu0 %v2116
    %v3798 = vpop.f32.mrb[0].mxu0
    %v3799 = vadd.f32 %v3756, %v3798
    %v3800 = vpop.f32.mrb[0].mxu0
    %v3801 = vadd.f32 %v3758, %v3800
    %v3802 = vpop.f32.mrb[0].mxu0
    %v3803 = vadd.f32 %v3760, %v3802
    %v3804 = vpop.f32.mrb[0].mxu0
    %v3805 = vadd.f32 %v3762, %v3804
    %3806 = vdwg.mxu0
    %3807 = vmatprep.subr.bf16.mxu0 %v3359
    %3808 = vmatpush1.bf16.msra.mxu0 %v3358
    %3809 = vmatprep.subr.bf16.mxu0 %v3363
    %3810 = vmatpush1.bf16.msra.mxu0 %v3362
    %3811 = vmatprep.subr.bf16.mxu0 %v3367
    %3812 = vmatpush1.bf16.msra.mxu0 %v3366
    %3813 = vmatprep.subr.bf16.mxu0 %v3371
    %3814 = vmatpush1.bf16.msra.mxu0 %v3370
    %3815 = vmatprep.subr.bf16.mxu0 %v3375
    %3816 = vmatpush1.bf16.msra.mxu0 %v3374
    %3817 = vmatprep.subr.bf16.mxu0 %v3379
    %3818 = vmatpush1.bf16.msra.mxu0 %v3378
    %3819 = vmatprep.subr.bf16.mxu0 %v3383
    %3820 = vmatpush1.bf16.msra.mxu0 %v3382
    %3821 = vmatprep.subr.bf16.mxu0 %v3387
    %3822 = vmatpush1.bf16.msra.mxu0 %v3386
    %3823 = vmatprep.subr.bf16.mxu0 %v3391
    %3824 = vmatpush1.bf16.msra.mxu0 %v3390
    %3825 = vmatprep.subr.bf16.mxu0 %v3395
    %3826 = vmatpush1.bf16.msra.mxu0 %v3394
    %3827 = vmatprep.subr.bf16.mxu0 %v3399
    %3828 = vmatpush1.bf16.msra.mxu0 %v3398
    %3829 = vmatprep.subr.bf16.mxu0 %v3403
    %3830 = vmatpush1.bf16.msra.mxu0 %v3402
    %3831 = vmatprep.subr.bf16.mxu0 %v3407
    %3832 = vmatpush1.bf16.msra.mxu0 %v3406
    %3833 = vmatprep.subr.bf16.mxu0 %v3411
    %3834 = vmatpush1.bf16.msra.mxu0 %v3410
    %3835 = vmatprep.subr.bf16.mxu0 %v3415
    %3836 = vmatpush1.bf16.msra.mxu0 %v3414
    %3837 = vmatprep.subr.bf16.mxu0 %v3419
    %3838 = vmatpush1.bf16.msra.mxu0 %v3418
    %3839 = vmatprep.mubr.bf16.mxu0 %v2119
    %3840 = vmatmul.mubr.bf16.gmra.mrb[0].mxu0 %v2118
    %v3841 = vpop.f32.mrb[0].mxu0
    %v3842 = vadd.f32 %v3799, %v3841
    %v3843 = vpop.f32.mrb[0].mxu0
    %v3844 = vadd.f32 %v3801, %v3843
    %v3845 = vpop.f32.mrb[0].mxu0
    %v3846 = vadd.f32 %v3803, %v3845
    %v3847 = vpop.f32.mrb[0].mxu0
    %v3848 = vadd.f32 %v3805, %v3847
    %3849 = vdwg.mxu0
    %3850 = vmatprep.subr.bf16.mxu0 %v3169
    %3851 = vmatpush1.bf16.msra.mxu0 %v3168
    %3852 = vmatprep.subr.bf16.mxu0 %v3173
    %3853 = vmatpush1.bf16.msra.mxu0 %v3172
    %3854 = vmatprep.subr.bf16.mxu0 %v3177
    %3855 = vmatpush1.bf16.msra.mxu0 %v3176
    %3856 = vmatprep.subr.bf16.mxu0 %v3181
    %3857 = vmatpush1.bf16.msra.mxu0 %v3180
    %3858 = vmatprep.subr.bf16.mxu0 %v3185
    %3859 = vmatpush1.bf16.msra.mxu0 %v3184
    %3860 = vmatprep.subr.bf16.mxu0 %v3189
    %3861 = vmatpush1.bf16.msra.mxu0 %v3188
    %3862 = vmatprep.subr.bf16.mxu0 %v3193
    %3863 = vmatpush1.bf16.msra.mxu0 %v3192
    %3864 = vmatprep.subr.bf16.mxu0 %v3197
    %3865 = vmatpush1.bf16.msra.mxu0 %v3196
    %3866 = vmatprep.subr.bf16.mxu0 %v3201
    %3867 = vmatpush1.bf16.msra.mxu0 %v3200
    %3868 = vmatprep.subr.bf16.mxu0 %v3205
    %3869 = vmatpush1.bf16.msra.mxu0 %v3204
    %3870 = vmatprep.subr.bf16.mxu0 %v3209
    %3871 = vmatpush1.bf16.msra.mxu0 %v3208
    %3872 = vmatprep.subr.bf16.mxu0 %v3213
    %3873 = vmatpush1.bf16.msra.mxu0 %v3212
    %3874 = vmatprep.subr.bf16.mxu0 %v3217
    %3875 = vmatpush1.bf16.msra.mxu0 %v3216
    %3876 = vmatprep.subr.bf16.mxu0 %v3221
    %3877 = vmatpush1.bf16.msra.mxu0 %v3220
    %3878 = vmatprep.subr.bf16.mxu0 %v3225
    %3879 = vmatpush1.bf16.msra.mxu0 %v3224
    %3880 = vmatprep.subr.bf16.mxu0 %v3229
    %3881 = vmatpush1.bf16.msra.mxu0 %v3228
    %3882 = vmatprep.mubr.bf16.mxu0 %v2113
    %3883 = vmatmul.mubr.bf16.gmra.mrb[0].mxu0 %v2112
    %v3884 = vpop.f32.mrb[0].mxu0
    %v3885 = vadd.f32 %v2389, %v3884
    %v3886 = vpop.f32.mrb[0].mxu0
    %v3887 = vadd.f32 %v2393, %v3886
    %v3888 = vpop.f32.mrb[0].mxu0
    %v3889 = vadd.f32 %v2389, %v3888
    %v3890 = vpop.f32.mrb[0].mxu0
    %v3891 = vadd.f32 %v2393, %v3890
    %3892 = vdwg.mxu0
    %3893 = vmatprep.subr.bf16.mxu0 %v3233
    %3894 = vmatpush1.bf16.msra.mxu0 %v3232
    %3895 = vmatprep.subr.bf16.mxu0 %v3237
    %3896 = vmatpush1.bf16.msra.mxu0 %v3236
    %3897 = vmatprep.subr.bf16.mxu0 %v3241
    %3898 = vmatpush1.bf16.msra.mxu0 %v3240
    %3899 = vmatprep.subr.bf16.mxu0 %v3245
    %3900 = vmatpush1.bf16.msra.mxu0 %v3244
    %3901 = vmatprep.subr.bf16.mxu0 %v3249
    %3902 = vmatpush1.bf16.msra.mxu0 %v3248
    %3903 = vmatprep.subr.bf16.mxu0 %v3253
    %3904 = vmatpush1.bf16.msra.mxu0 %v3252
    %3905 = vmatprep.subr.bf16.mxu0 %v3257
    %3906 = vmatpush1.bf16.msra.mxu0 %v3256
    %3907 = vmatprep.subr.bf16.mxu0 %v3261
    %3908 = vmatpush1.bf16.msra.mxu0 %v3260
    %3909 = vmatprep.subr.bf16.mxu0 %v3265
    %3910 = vmatpush1.bf16.msra.mxu0 %v3264
    %3911 = vmatprep.subr.bf16.mxu0 %v3269
    %3912 = vmatpush1.bf16.msra.mxu0 %v3268
    %3913 = vmatprep.subr.bf16.mxu0 %v3273
    %3914 = vmatpush1.bf16.msra.mxu0 %v3272
    %3915 = vmatprep.subr.bf16.mxu0 %v3277
    %3916 = vmatpush1.bf16.msra.mxu0 %v3276
    %3917 = vmatprep.subr.bf16.mxu0 %v3281
    %3918 = vmatpush1.bf16.msra.mxu0 %v3280
    %3919 = vmatprep.subr.bf16.mxu0 %v3285
    %3920 = vmatpush1.bf16.msra.mxu0 %v3284
    %3921 = vmatprep.subr.bf16.mxu0 %v3289
    %3922 = vmatpush1.bf16.msra.mxu0 %v3288
    %3923 = vmatprep.subr.bf16.mxu0 %v3293
    %3924 = vmatpush1.bf16.msra.mxu0 %v3292
    %3925 = vmatprep.mubr.bf16.mxu0 %v2115
    %3926 = vmatmul.mubr.bf16.gmra.mrb[0].mxu0 %v2114
    %v3927 = vpop.f32.mrb[0].mxu0
    %v3928 = vadd.f32 %v3885, %v3927
    %v3929 = vpop.f32.mrb[0].mxu0
    %v3930 = vadd.f32 %v3887, %v3929
    %v3931 = vpop.f32.mrb[0].mxu0
    %v3932 = vadd.f32 %v3889, %v3931
    %v3933 = vpop.f32.mrb[0].mxu0
    %v3934 = vadd.f32 %v3891, %v3933
    %3935 = vdwg.mxu0
    %3936 = vmatprep.subr.bf16.mxu0 %v3297
    %3937 = vmatpush1.bf16.msra.mxu0 %v3296
    %3938 = vmatprep.subr.bf16.mxu0 %v3301
    %3939 = vmatpush1.bf16.msra.mxu0 %v3300
    %3940 = vmatprep.subr.bf16.mxu0 %v3305
    %3941 = vmatpush1.bf16.msra.mxu0 %v3304
    %3942 = vmatprep.subr.bf16.mxu0 %v3309
    %3943 = vmatpush1.bf16.msra.mxu0 %v3308
    %3944 = vmatprep.subr.bf16.mxu0 %v3313
    %3945 = vmatpush1.bf16.msra.mxu0 %v3312
    %3946 = vmatprep.subr.bf16.mxu0 %v3317
    %3947 = vmatpush1.bf16.msra.mxu0 %v3316
    %3948 = vmatprep.subr.bf16.mxu0 %v3321
    %3949 = vmatpush1.bf16.msra.mxu0 %v3320
    %3950 = vmatprep.subr.bf16.mxu0 %v3325
    %3951 = vmatpush1.bf16.msra.mxu0 %v3324
    %3952 = vmatprep.subr.bf16.mxu0 %v3329
    %3953 = vmatpush1.bf16.msra.mxu0 %v3328
    %3954 = vmatprep.subr.bf16.mxu0 %v3333
    %3955 = vmatpush1.bf16.msra.mxu0 %v3332
    %3956 = vmatprep.subr.bf16.mxu0 %v3337
    %3957 = vmatpush1.bf16.msra.mxu0 %v3336
    %3958 = vmatprep.subr.bf16.mxu0 %v3341
    %3959 = vmatpush1.bf16.msra.mxu0 %v3340
    %3960 = vmatprep.subr.bf16.mxu0 %v3345
    %3961 = vmatpush1.bf16.msra.mxu0 %v3344
    %3962 = vmatprep.subr.bf16.mxu0 %v3349
    %3963 = vmatpush1.bf16.msra.mxu0 %v3348
    %3964 = vmatprep.subr.bf16.mxu0 %v3353
    %3965 = vmatpush1.bf16.msra.mxu0 %v3352
    %3966 = vmatprep.subr.bf16.mxu0 %v3357
    %3967 = vmatpush1.bf16.msra.mxu0 %v3356
    %3968 = vmatprep.mubr.bf16.mxu0 %v2117
    %3969 = vmatmul.mubr.bf16.gmra.mrb[0].mxu0 %v2116
    %v3970 = vpop.f32.mrb[0].mxu0
    %v3971 = vadd.f32 %v3928, %v3970
    %v3972 = vpop.f32.mrb[0].mxu0
    %v3973 = vadd.f32 %v3930, %v3972
    %v3974 = vpop.f32.mrb[0].mxu0
    %v3975 = vadd.f32 %v3932, %v3974
    %v3976 = vpop.f32.mrb[0].mxu0
    %v3977 = vadd.f32 %v3934, %v3976
    %3978 = vdwg.mxu0
    %3979 = vmatprep.subr.bf16.mxu0 %v3361
    %3980 = vmatpush1.bf16.msra.mxu0 %v3360
    %3981 = vmatprep.subr.bf16.mxu0 %v3365
    %3982 = vmatpush1.bf16.msra.mxu0 %v3364
    %3983 = vmatprep.subr.bf16.mxu0 %v3369
    %3984 = vmatpush1.bf16.msra.mxu0 %v3368
    %3985 = vmatprep.subr.bf16.mxu0 %v3373
    %3986 = vmatpush1.bf16.msra.mxu0 %v3372
    %3987 = vmatprep.subr.bf16.mxu0 %v3377
    %3988 = vmatpush1.bf16.msra.mxu0 %v3376
    %3989 = vmatprep.subr.bf16.mxu0 %v3381
    %3990 = vmatpush1.bf16.msra.mxu0 %v3380
    %3991 = vmatprep.subr.bf16.mxu0 %v3385
    %3992 = vmatpush1.bf16.msra.mxu0 %v3384
    %3993 = vmatprep.subr.bf16.mxu0 %v3389
    %3994 = vmatpush1.bf16.msra.mxu0 %v3388
    %3995 = vmatprep.subr.bf16.mxu0 %v3393
    %3996 = vmatpush1.bf16.msra.mxu0 %v3392
    %3997 = vmatprep.subr.bf16.mxu0 %v3397
    %3998 = vmatpush1.bf16.msra.mxu0 %v3396
    %3999 = vmatprep.subr.bf16.mxu0 %v3401
    %4000 = vmatpush1.bf16.msra.mxu0 %v3400
    %4001 = vmatprep.subr.bf16.mxu0 %v3405
    %4002 = vmatpush1.bf16.msra.mxu0 %v3404
    %4003 = vmatprep.subr.bf16.mxu0 %v3409
    %4004 = vmatpush1.bf16.msra.mxu0 %v3408
    %4005 = vmatprep.subr.bf16.mxu0 %v3413
    %4006 = vmatpush1.bf16.msra.mxu0 %v3412
    %4007 = vmatprep.subr.bf16.mxu0 %v3417
    %4008 = vmatpush1.bf16.msra.mxu0 %v3416
    %4009 = vmatprep.subr.bf16.mxu0 %v3421
    %4010 = vmatpush1.bf16.msra.mxu0 %v3420
    %4011 = vmatprep.mubr.bf16.mxu0 %v2119
    %4012 = vmatmul.mubr.bf16.gmra.mrb[0].mxu0 %v2118
    %v4013 = vpop.f32.mrb[0].mxu0
    %v4014 = vadd.f32 %v3971, %v4013
    %v4015 = vpop.f32.mrb[0].mxu0
    %v4016 = vadd.f32 %v3973, %v4015
    %v4017 = vpop.f32.mrb[0].mxu0
    %v4018 = vadd.f32 %v3975, %v4017
    %v4019 = vpop.f32.mrb[0].mxu0
    %v4020 = vadd.f32 %v3977, %v4019
    %4021 = vdwg.mxu0
    %v4022 = vmax.f32 %v3842, 0.0
    %v4023 = vmax.f32 %v3844, 0.0
    %v4024 = vmax.f32 %v4014, 0.0
    %v4025 = vmax.f32 %v4016, 0.0
    %v4026 = vmax.f32 %v3846, 0.0
    %v4027 = vmax.f32 %v3848, 0.0
    %v4028 = vmax.f32 %v4018, 0.0
    %v4029 = vmax.f32 %v4020, 0.0
    %v4030 = vpack.c.bf16 %v4026, %v4022
    %v4031 = vpack.c.bf16 %v4027, %v4023
    %v4032 = vpack.c.bf16 %v4028, %v4024
    %v4033 = vpack.c.bf16 %v4029, %v4025
    %v4034 = vld [vmem:[#allocation20] sm:$0xff]
    %v4035 = vld [vmem:[#allocation20 + $0x8] sm:$0xff]
    %v4036 = vld [vmem:[#allocation20 + $0x10] sm:$0xff]
    %v4037 = vld [vmem:[#allocation20 + $0x18] sm:$0xff]
    %v4038 = vld [vmem:[#allocation20 + $0x20] sm:$0xff]
    %v4039 = vld [vmem:[#allocation20 + $0x28] sm:$0xff]
    %v4040 = vld [vmem:[#allocation20 + $0x30] sm:$0xff]
    %v4041 = vld [vmem:[#allocation20 + $0x38] sm:$0xff]
    %v4042 = vld [vmem:[#allocation20 + $0x40] sm:$0xff]
    %v4043 = vld [vmem:[#allocation20 + $0x48] sm:$0xff]
    %v4044 = vld [vmem:[#allocation20 + $0x50] sm:$0xff]
    %v4045 = vld [vmem:[#allocation20 + $0x58] sm:$0xff]
    %v4046 = vld [vmem:[#allocation20 + $0x60] sm:$0xff]
    %v4047 = vld [vmem:[#allocation20 + $0x68] sm:$0xff]
    %v4048 = vld [vmem:[#allocation20 + $0x70] sm:$0xff]
    %v4049 = vld [vmem:[#allocation20 + $0x78] sm:$0xff]
    %v4050 = vld [vmem:[#allocation20 + $0x80] sm:$0xff]
    %v4051 = vld [vmem:[#allocation20 + $0x88] sm:$0xff]
    %v4052 = vld [vmem:[#allocation20 + $0x90] sm:$0xff]
    %v4053 = vld [vmem:[#allocation20 + $0x98] sm:$0xff]
    %v4054 = vld [vmem:[#allocation20 + $0xa0] sm:$0xff]
    %v4055 = vld [vmem:[#allocation20 + $0xa8] sm:$0xff]
    %v4056 = vld [vmem:[#allocation20 + $0xb0] sm:$0xff]
    %v4057 = vld [vmem:[#allocation20 + $0xb8] sm:$0xff]
    %v4058 = vld [vmem:[#allocation20 + $0xc0] sm:$0xff]
    %v4059 = vld [vmem:[#allocation20 + $0xc8] sm:$0xff]
    %v4060 = vld [vmem:[#allocation20 + $0xd0] sm:$0xff]
    %v4061 = vld [vmem:[#allocation20 + $0xd8] sm:$0xff]
    %v4062 = vld [vmem:[#allocation20 + $0xe0] sm:$0xff]
    %v4063 = vld [vmem:[#allocation20 + $0xe8] sm:$0xff]
    %v4064 = vld [vmem:[#allocation20 + $0xf0] sm:$0xff]
    %v4065 = vld [vmem:[#allocation20 + $0xf8] sm:$0xff]
    %v4066 = vld [vmem:[#allocation20 + $0x100] sm:$0xff]
    %v4067 = vld [vmem:[#allocation20 + $0x108] sm:$0xff]
    %v4068 = vld [vmem:[#allocation20 + $0x110] sm:$0xff]
    %v4069 = vld [vmem:[#allocation20 + $0x118] sm:$0xff]
    %v4070 = vld [vmem:[#allocation20 + $0x120] sm:$0xff]
    %v4071 = vld [vmem:[#allocation20 + $0x128] sm:$0xff]
    %v4072 = vld [vmem:[#allocation20 + $0x130] sm:$0xff]
    %v4073 = vld [vmem:[#allocation20 + $0x138] sm:$0xff]
    %v4074 = vld [vmem:[#allocation20 + $0x140] sm:$0xff]
    %v4075 = vld [vmem:[#allocation20 + $0x148] sm:$0xff]
    %v4076 = vld [vmem:[#allocation20 + $0x150] sm:$0xff]
    %v4077 = vld [vmem:[#allocation20 + $0x158] sm:$0xff]
    %v4078 = vld [vmem:[#allocation20 + $0x160] sm:$0xff]
    %v4079 = vld [vmem:[#allocation20 + $0x168] sm:$0xff]
    %v4080 = vld [vmem:[#allocation20 + $0x170] sm:$0xff]
    %v4081 = vld [vmem:[#allocation20 + $0x178] sm:$0xff]
    %v4082 = vld [vmem:[#allocation20 + $0x180] sm:$0xff]
    %v4083 = vld [vmem:[#allocation20 + $0x188] sm:$0xff]
    %v4084 = vld [vmem:[#allocation20 + $0x190] sm:$0xff]
    %v4085 = vld [vmem:[#allocation20 + $0x198] sm:$0xff]
    %v4086 = vld [vmem:[#allocation20 + $0x1a0] sm:$0xff]
    %v4087 = vld [vmem:[#allocation20 + $0x1a8] sm:$0xff]
    %v4088 = vld [vmem:[#allocation20 + $0x1b0] sm:$0xff]
    %v4089 = vld [vmem:[#allocation20 + $0x1b8] sm:$0xff]
    %v4090 = vld [vmem:[#allocation20 + $0x1c0] sm:$0xff]
    %v4091 = vld [vmem:[#allocation20 + $0x1c8] sm:$0xff]
    %v4092 = vld [vmem:[#allocation20 + $0x1d0] sm:$0xff]
    %v4093 = vld [vmem:[#allocation20 + $0x1d8] sm:$0xff]
    %v4094 = vld [vmem:[#allocation20 + $0x1e0] sm:$0xff]
    %v4095 = vld [vmem:[#allocation20 + $0x1e8] sm:$0xff]
    %v4096 = vld [vmem:[#allocation20 + $0x1f0] sm:$0xff]
    %v4097 = vld [vmem:[#allocation20 + $0x1f8] sm:$0xff]
    %v4098 = vld [vmem:[%s21] sm:$0x3]
    %v4100 = vlaneseq
    %v4101 = vshrl.u32 %v4100, 7
    %v4102 = vsub.s32 0, %v4101
    %v4103 = vrot.slane %v4098, %v4102
    %v4104 = vlaneseq
    %v4105 = vshrl.u32 %v4104, 7
    %v4106 = vsub.s32 1, %v4105
    %v4107 = vrot.slane %v4098, %v4106
    %v4174 = vunpack.c.l.b16 %v4034
    %v4175 = vunpack.c.h.b16 %v4034
    %v4176 = vunpack.c.l.b16 %v4035
    %v4177 = vunpack.c.h.b16 %v4035
    %v4178 = vunpack.c.l.b16 %v4036
    %v4179 = vunpack.c.h.b16 %v4036
    %v4180 = vunpack.c.l.b16 %v4037
    %v4181 = vunpack.c.h.b16 %v4037
    %v4182 = vunpack.c.l.b16 %v4038
    %v4183 = vunpack.c.h.b16 %v4038
    %v4184 = vunpack.c.l.b16 %v4039
    %v4185 = vunpack.c.h.b16 %v4039
    %v4186 = vunpack.c.l.b16 %v4040
    %v4187 = vunpack.c.h.b16 %v4040
    %v4188 = vunpack.c.l.b16 %v4041
    %v4189 = vunpack.c.h.b16 %v4041
    %v4190 = vunpack.c.l.b16 %v4042
    %v4191 = vunpack.c.h.b16 %v4042
    %v4192 = vunpack.c.l.b16 %v4043
    %v4193 = vunpack.c.h.b16 %v4043
    %v4194 = vunpack.c.l.b16 %v4044
    %v4195 = vunpack.c.h.b16 %v4044
    %v4196 = vunpack.c.l.b16 %v4045
    %v4197 = vunpack.c.h.b16 %v4045
    %v4198 = vunpack.c.l.b16 %v4046
    %v4199 = vunpack.c.h.b16 %v4046
    %v4200 = vunpack.c.l.b16 %v4047
    %v4201 = vunpack.c.h.b16 %v4047
    %v4202 = vunpack.c.l.b16 %v4048
    %v4203 = vunpack.c.h.b16 %v4048
    %v4204 = vunpack.c.l.b16 %v4049
    %v4205 = vunpack.c.h.b16 %v4049
    %v4206 = vunpack.c.l.b16 %v4050
    %v4207 = vunpack.c.h.b16 %v4050
    %v4208 = vunpack.c.l.b16 %v4051
    %v4209 = vunpack.c.h.b16 %v4051
    %v4210 = vunpack.c.l.b16 %v4052
    %v4211 = vunpack.c.h.b16 %v4052
    %v4212 = vunpack.c.l.b16 %v4053
    %v4213 = vunpack.c.h.b16 %v4053
    %v4214 = vunpack.c.l.b16 %v4054
    %v4215 = vunpack.c.h.b16 %v4054
    %v4216 = vunpack.c.l.b16 %v4055
    %v4217 = vunpack.c.h.b16 %v4055
    %v4218 = vunpack.c.l.b16 %v4056
    %v4219 = vunpack.c.h.b16 %v4056
    %v4220 = vunpack.c.l.b16 %v4057
    %v4221 = vunpack.c.h.b16 %v4057
    %v4222 = vunpack.c.l.b16 %v4058
    %v4223 = vunpack.c.h.b16 %v4058
    %v4224 = vunpack.c.l.b16 %v4059
    %v4225 = vunpack.c.h.b16 %v4059
    %v4226 = vunpack.c.l.b16 %v4060
    %v4227 = vunpack.c.h.b16 %v4060
    %v4228 = vunpack.c.l.b16 %v4061
    %v4229 = vunpack.c.h.b16 %v4061
    %v4230 = vunpack.c.l.b16 %v4062
    %v4231 = vunpack.c.h.b16 %v4062
    %v4232 = vunpack.c.l.b16 %v4063
    %v4233 = vunpack.c.h.b16 %v4063
    %v4234 = vunpack.c.l.b16 %v4064
    %v4235 = vunpack.c.h.b16 %v4064
    %v4236 = vunpack.c.l.b16 %v4065
    %v4237 = vunpack.c.h.b16 %v4065
    %v4238 = vunpack.c.l.b16 %v4066
    %v4239 = vunpack.c.h.b16 %v4066
    %v4240 = vunpack.c.l.b16 %v4067
    %v4241 = vunpack.c.h.b16 %v4067
    %v4242 = vunpack.c.l.b16 %v4068
    %v4243 = vunpack.c.h.b16 %v4068
    %v4244 = vunpack.c.l.b16 %v4069
    %v4245 = vunpack.c.h.b16 %v4069
    %v4246 = vunpack.c.l.b16 %v4070
    %v4247 = vunpack.c.h.b16 %v4070
    %v4248 = vunpack.c.l.b16 %v4071
    %v4249 = vunpack.c.h.b16 %v4071
    %v4250 = vunpack.c.l.b16 %v4072
    %v4251 = vunpack.c.h.b16 %v4072
    %v4252 = vunpack.c.l.b16 %v4073
    %v4253 = vunpack.c.h.b16 %v4073
    %v4254 = vunpack.c.l.b16 %v4074
    %v4255 = vunpack.c.h.b16 %v4074
    %v4256 = vunpack.c.l.b16 %v4075
    %v4257 = vunpack.c.h.b16 %v4075
    %v4258 = vunpack.c.l.b16 %v4076
    %v4259 = vunpack.c.h.b16 %v4076
    %v4260 = vunpack.c.l.b16 %v4077
    %v4261 = vunpack.c.h.b16 %v4077
    %v4262 = vunpack.c.l.b16 %v4078
    %v4263 = vunpack.c.h.b16 %v4078
    %v4264 = vunpack.c.l.b16 %v4079
    %v4265 = vunpack.c.h.b16 %v4079
    %v4266 = vunpack.c.l.b16 %v4080
    %v4267 = vunpack.c.h.b16 %v4080
    %v4268 = vunpack.c.l.b16 %v4081
    %v4269 = vunpack.c.h.b16 %v4081
    %v4270 = vunpack.c.l.b16 %v4082
    %v4271 = vunpack.c.h.b16 %v4082
    %v4272 = vunpack.c.l.b16 %v4083
    %v4273 = vunpack.c.h.b16 %v4083
    %v4274 = vunpack.c.l.b16 %v4084
    %v4275 = vunpack.c.h.b16 %v4084
    %v4276 = vunpack.c.l.b16 %v4085
    %v4277 = vunpack.c.h.b16 %v4085
    %v4278 = vunpack.c.l.b16 %v4086
    %v4279 = vunpack.c.h.b16 %v4086
    %v4280 = vunpack.c.l.b16 %v4087
    %v4281 = vunpack.c.h.b16 %v4087
    %v4282 = vunpack.c.l.b16 %v4088
    %v4283 = vunpack.c.h.b16 %v4088
    %v4284 = vunpack.c.l.b16 %v4089
    %v4285 = vunpack.c.h.b16 %v4089
    %v4286 = vunpack.c.l.b16 %v4090
    %v4287 = vunpack.c.h.b16 %v4090
    %v4288 = vunpack.c.l.b16 %v4091
    %v4289 = vunpack.c.h.b16 %v4091
    %v4290 = vunpack.c.l.b16 %v4092
    %v4291 = vunpack.c.h.b16 %v4092
    %v4292 = vunpack.c.l.b16 %v4093
    %v4293 = vunpack.c.h.b16 %v4093
    %v4294 = vunpack.c.l.b16 %v4094
    %v4295 = vunpack.c.h.b16 %v4094
    %v4296 = vunpack.c.l.b16 %v4095
    %v4297 = vunpack.c.h.b16 %v4095
    %v4298 = vunpack.c.l.b16 %v4096
    %v4299 = vunpack.c.h.b16 %v4096
    %v4300 = vunpack.c.l.b16 %v4097
    %v4301 = vunpack.c.h.b16 %v4097
    %v4302 = vpack.c.b16 %v4176, %v4174
    %v4303 = vpack.c.b16 %v4177, %v4175
    %v4304 = vpack.c.b16 %v4180, %v4178
    %v4305 = vpack.c.b16 %v4181, %v4179
    %v4306 = vpack.c.b16 %v4184, %v4182
    %v4307 = vpack.c.b16 %v4185, %v4183
    %v4308 = vpack.c.b16 %v4188, %v4186
    %v4309 = vpack.c.b16 %v4189, %v4187
    %v4310 = vpack.c.b16 %v4192, %v4190
    %v4311 = vpack.c.b16 %v4193, %v4191
    %v4312 = vpack.c.b16 %v4196, %v4194
    %v4313 = vpack.c.b16 %v4197, %v4195
    %v4314 = vpack.c.b16 %v4200, %v4198
    %v4315 = vpack.c.b16 %v4201, %v4199
    %v4316 = vpack.c.b16 %v4204, %v4202
    %v4317 = vpack.c.b16 %v4205, %v4203
    %v4318 = vpack.c.b16 %v4208, %v4206
    %v4319 = vpack.c.b16 %v4209, %v4207
    %v4320 = vpack.c.b16 %v4212, %v4210
    %v4321 = vpack.c.b16 %v4213, %v4211
    %v4322 = vpack.c.b16 %v4216, %v4214
    %v4323 = vpack.c.b16 %v4217, %v4215
    %v4324 = vpack.c.b16 %v4220, %v4218
    %v4325 = vpack.c.b16 %v4221, %v4219
    %v4326 = vpack.c.b16 %v4224, %v4222
    %v4327 = vpack.c.b16 %v4225, %v4223
    %v4328 = vpack.c.b16 %v4228, %v4226
    %v4329 = vpack.c.b16 %v4229, %v4227
    %v4330 = vpack.c.b16 %v4232, %v4230
    %v4331 = vpack.c.b16 %v4233, %v4231
    %v4332 = vpack.c.b16 %v4236, %v4234
    %v4333 = vpack.c.b16 %v4237, %v4235
    %v4334 = vpack.c.b16 %v4240, %v4238
    %v4335 = vpack.c.b16 %v4241, %v4239
    %v4336 = vpack.c.b16 %v4244, %v4242
    %v4337 = vpack.c.b16 %v4245, %v4243
    %v4338 = vpack.c.b16 %v4248, %v4246
    %v4339 = vpack.c.b16 %v4249, %v4247
    %v4340 = vpack.c.b16 %v4252, %v4250
    %v4341 = vpack.c.b16 %v4253, %v4251
    %v4342 = vpack.c.b16 %v4256, %v4254
    %v4343 = vpack.c.b16 %v4257, %v4255
    %v4344 = vpack.c.b16 %v4260, %v4258
    %v4345 = vpack.c.b16 %v4261, %v4259
    %v4346 = vpack.c.b16 %v4264, %v4262
    %v4347 = vpack.c.b16 %v4265, %v4263
    %v4348 = vpack.c.b16 %v4268, %v4266
    %v4349 = vpack.c.b16 %v4269, %v4267
    %v4350 = vpack.c.b16 %v4272, %v4270
    %v4351 = vpack.c.b16 %v4273, %v4271
    %v4352 = vpack.c.b16 %v4276, %v4274
    %v4353 = vpack.c.b16 %v4277, %v4275
    %v4354 = vpack.c.b16 %v4280, %v4278
    %v4355 = vpack.c.b16 %v4281, %v4279
    %v4356 = vpack.c.b16 %v4284, %v4282
    %v4357 = vpack.c.b16 %v4285, %v4283
    %v4358 = vpack.c.b16 %v4288, %v4286
    %v4359 = vpack.c.b16 %v4289, %v4287
    %v4360 = vpack.c.b16 %v4292, %v4290
    %v4361 = vpack.c.b16 %v4293, %v4291
    %v4362 = vpack.c.b16 %v4296, %v4294
    %v4363 = vpack.c.b16 %v4297, %v4295
    %v4364 = vpack.c.b16 %v4300, %v4298
    %v4365 = vpack.c.b16 %v4301, %v4299
    %4430 = vmatprep.subr.bf16.mxu0 %v4303
    %4431 = vmatpush1.bf16.msra.mxu0 %v4302
    %4432 = vmatprep.subr.bf16.mxu0 %v4305
    %4433 = vmatpush1.bf16.msra.mxu0 %v4304
    %4434 = vmatprep.subr.bf16.mxu0 %v4307
    %4435 = vmatpush1.bf16.msra.mxu0 %v4306
    %4436 = vmatprep.subr.bf16.mxu0 %v4309
    %4437 = vmatpush1.bf16.msra.mxu0 %v4308
    %4438 = vmatprep.subr.bf16.mxu0 %v4311
    %4439 = vmatpush1.bf16.msra.mxu0 %v4310
    %4440 = vmatprep.subr.bf16.mxu0 %v4313
    %4441 = vmatpush1.bf16.msra.mxu0 %v4312
    %4442 = vmatprep.subr.bf16.mxu0 %v4315
    %4443 = vmatpush1.bf16.msra.mxu0 %v4314
    %4444 = vmatprep.subr.bf16.mxu0 %v4317
    %4445 = vmatpush1.bf16.msra.mxu0 %v4316
    %4446 = vmatprep.subr.bf16.mxu0 %v4319
    %4447 = vmatpush1.bf16.msra.mxu0 %v4318
    %4448 = vmatprep.subr.bf16.mxu0 %v4321
    %4449 = vmatpush1.bf16.msra.mxu0 %v4320
    %4450 = vmatprep.subr.bf16.mxu0 %v4323
    %4451 = vmatpush1.bf16.msra.mxu0 %v4322
    %4452 = vmatprep.subr.bf16.mxu0 %v4325
    %4453 = vmatpush1.bf16.msra.mxu0 %v4324
    %4454 = vmatprep.subr.bf16.mxu0 %v4327
    %4455 = vmatpush1.bf16.msra.mxu0 %v4326
    %4456 = vmatprep.subr.bf16.mxu0 %v4329
    %4457 = vmatpush1.bf16.msra.mxu0 %v4328
    %4458 = vmatprep.subr.bf16.mxu0 %v4331
    %4459 = vmatpush1.bf16.msra.mxu0 %v4330
    %4460 = vmatprep.subr.bf16.mxu0 %v4333
    %4461 = vmatpush1.bf16.msra.mxu0 %v4332
    %4462 = vmatprep.mubr.bf16.mxu0 %v4031
    %4463 = vmatmul.mubr.bf16.gmra.mrb[0].mxu0 %v4030
    %v4464 = vpop.f32.mrb[0].mxu0
    %v4465 = vadd.f32 %v4103, %v4464
    %v4466 = vpop.f32.mrb[0].mxu0
    %v4467 = vadd.f32 %v4107, %v4466
    %v4468 = vpop.f32.mrb[0].mxu0
    %v4469 = vadd.f32 %v4103, %v4468
    %v4470 = vpop.f32.mrb[0].mxu0
    %v4471 = vadd.f32 %v4107, %v4470
    %4472 = vdwg.mxu0
    %4473 = vmatprep.subr.bf16.mxu0 %v4335
    %4474 = vmatpush1.bf16.msra.mxu0 %v4334
    %4475 = vmatprep.subr.bf16.mxu0 %v4337
    %4476 = vmatpush1.bf16.msra.mxu0 %v4336
    %4477 = vmatprep.subr.bf16.mxu0 %v4339
    %4478 = vmatpush1.bf16.msra.mxu0 %v4338
    %4479 = vmatprep.subr.bf16.mxu0 %v4341
    %4480 = vmatpush1.bf16.msra.mxu0 %v4340
    %4481 = vmatprep.subr.bf16.mxu0 %v4343
    %4482 = vmatpush1.bf16.msra.mxu0 %v4342
    %4483 = vmatprep.subr.bf16.mxu0 %v4345
    %4484 = vmatpush1.bf16.msra.mxu0 %v4344
    %4485 = vmatprep.subr.bf16.mxu0 %v4347
    %4486 = vmatpush1.bf16.msra.mxu0 %v4346
    %4487 = vmatprep.subr.bf16.mxu0 %v4349
    %4488 = vmatpush1.bf16.msra.mxu0 %v4348
    %4489 = vmatprep.subr.bf16.mxu0 %v4351
    %4490 = vmatpush1.bf16.msra.mxu0 %v4350
    %4491 = vmatprep.subr.bf16.mxu0 %v4353
    %4492 = vmatpush1.bf16.msra.mxu0 %v4352
    %4493 = vmatprep.subr.bf16.mxu0 %v4355
    %4494 = vmatpush1.bf16.msra.mxu0 %v4354
    %4495 = vmatprep.subr.bf16.mxu0 %v4357
    %4496 = vmatpush1.bf16.msra.mxu0 %v4356
    %4497 = vmatprep.subr.bf16.mxu0 %v4359
    %4498 = vmatpush1.bf16.msra.mxu0 %v4358
    %4499 = vmatprep.subr.bf16.mxu0 %v4361
    %4500 = vmatpush1.bf16.msra.mxu0 %v4360
    %4501 = vmatprep.subr.bf16.mxu0 %v4363
    %4502 = vmatpush1.bf16.msra.mxu0 %v4362
    %4503 = vmatprep.subr.bf16.mxu0 %v4365
    %4504 = vmatpush1.bf16.msra.mxu0 %v4364
    %4505 = vmatprep.mubr.bf16.mxu0 %v4033
    %4506 = vmatmul.mubr.bf16.gmra.mrb[0].mxu0 %v4032
    %v4507 = vpop.f32.mrb[0].mxu0
    %v4508 = vadd.f32 %v4465, %v4507
    %v4509 = vpop.f32.mrb[0].mxu0
    %v4510 = vadd.f32 %v4467, %v4509
    %v4511 = vpop.f32.mrb[0].mxu0
    %v4512 = vadd.f32 %v4469, %v4511
    %v4513 = vpop.f32.mrb[0].mxu0
    %v4514 = vadd.f32 %v4471, %v4513
    %4515 = vdwg.mxu0
    %v4516 = vmax.f32 %v4508, 0.0
    %v4517 = vmax.f32 %v4510, 0.0
    %v4518 = vmax.f32 %v4512, 0.0
    %v4519 = vmax.f32 %v4514, 0.0
    %v4520 = vpack.c.bf16 %v4518, %v4516
    %v4521 = vpack.c.bf16 %v4519, %v4517
    %v4522 = vld [vmem:[#allocation22] sm:$0xf]
    %v4523 = vld [vmem:[#allocation22 + $0x4] sm:$0xf]
    %v4524 = vld [vmem:[#allocation22 + $0x8] sm:$0xf]
    %v4525 = vld [vmem:[#allocation22 + $0xc] sm:$0xf]
    %v4526 = vld [vmem:[#allocation22 + $0x10] sm:$0xf]
    %v4527 = vld [vmem:[#allocation22 + $0x14] sm:$0xf]
    %v4528 = vld [vmem:[#allocation22 + $0x18] sm:$0xf]
    %v4529 = vld [vmem:[#allocation22 + $0x1c] sm:$0xf]
    %v4530 = vld [vmem:[#allocation22 + $0x20] sm:$0xf]
    %v4531 = vld [vmem:[#allocation22 + $0x24] sm:$0xf]
    %v4532 = vld [vmem:[#allocation22 + $0x28] sm:$0xf]
    %v4533 = vld [vmem:[#allocation22 + $0x2c] sm:$0xf]
    %v4534 = vld [vmem:[#allocation22 + $0x30] sm:$0xf]
    %v4535 = vld [vmem:[#allocation22 + $0x34] sm:$0xf]
    %v4536 = vld [vmem:[#allocation22 + $0x38] sm:$0xf]
    %v4537 = vld [vmem:[#allocation22 + $0x3c] sm:$0xf]
    %v4538 = vld [vmem:[#allocation22 + $0x40] sm:$0xf]
    %v4539 = vld [vmem:[#allocation22 + $0x44] sm:$0xf]
    %v4540 = vld [vmem:[#allocation22 + $0x48] sm:$0xf]
    %v4541 = vld [vmem:[#allocation22 + $0x4c] sm:$0xf]
    %v4542 = vld [vmem:[#allocation22 + $0x50] sm:$0xf]
    %v4543 = vld [vmem:[#allocation22 + $0x54] sm:$0xf]
    %v4544 = vld [vmem:[#allocation22 + $0x58] sm:$0xf]
    %v4545 = vld [vmem:[#allocation22 + $0x5c] sm:$0xf]
    %v4546 = vld [vmem:[#allocation22 + $0x60] sm:$0xf]
    %v4547 = vld [vmem:[#allocation22 + $0x64] sm:$0xf]
    %v4548 = vld [vmem:[#allocation22 + $0x68] sm:$0xf]
    %v4549 = vld [vmem:[#allocation22 + $0x6c] sm:$0xf]
    %v4550 = vld [vmem:[#allocation22 + $0x70] sm:$0xf]
    %v4551 = vld [vmem:[#allocation22 + $0x74] sm:$0xf]
    %v4552 = vld [vmem:[#allocation22 + $0x78] sm:$0xf]
    %v4553 = vld [vmem:[#allocation22 + $0x7c] sm:$0xf]
    %v4554 = vld [vmem:[%s23] sm:$0x1]
    %v4556 = vlaneseq
    %v4557 = vshrl.u32 %v4556, 7
    %v4558 = vsub.s32 0, %v4557
    %v4559 = vrot.slane %v4554, %v4558
    %v4593 = vunpack.c.l.b16 %v4522
    %v4594 = vunpack.c.l.b16 %v4523
    %v4595 = vunpack.c.l.b16 %v4524
    %v4596 = vunpack.c.l.b16 %v4525
    %v4597 = vunpack.c.l.b16 %v4526
    %v4598 = vunpack.c.l.b16 %v4527
    %v4599 = vunpack.c.l.b16 %v4528
    %v4600 = vunpack.c.l.b16 %v4529
    %v4601 = vunpack.c.l.b16 %v4530
    %v4602 = vunpack.c.l.b16 %v4531
    %v4603 = vunpack.c.l.b16 %v4532
    %v4604 = vunpack.c.l.b16 %v4533
    %v4605 = vunpack.c.l.b16 %v4534
    %v4606 = vunpack.c.l.b16 %v4535
    %v4607 = vunpack.c.l.b16 %v4536
    %v4608 = vunpack.c.l.b16 %v4537
    %v4609 = vunpack.c.l.b16 %v4538
    %v4610 = vunpack.c.l.b16 %v4539
    %v4611 = vunpack.c.l.b16 %v4540
    %v4612 = vunpack.c.l.b16 %v4541
    %v4613 = vunpack.c.l.b16 %v4542
    %v4614 = vunpack.c.l.b16 %v4543
    %v4615 = vunpack.c.l.b16 %v4544
    %v4616 = vunpack.c.l.b16 %v4545
    %v4617 = vunpack.c.l.b16 %v4546
    %v4618 = vunpack.c.l.b16 %v4547
    %v4619 = vunpack.c.l.b16 %v4548
    %v4620 = vunpack.c.l.b16 %v4549
    %v4621 = vunpack.c.l.b16 %v4550
    %v4622 = vunpack.c.l.b16 %v4551
    %v4623 = vunpack.c.l.b16 %v4552
    %v4624 = vunpack.c.l.b16 %v4553
    %v4625 = vpack.c.b16 %v4594, %v4593
    %v4626 = vpack.c.b16 %v4596, %v4595
    %v4627 = vpack.c.b16 %v4598, %v4597
    %v4628 = vpack.c.b16 %v4600, %v4599
    %v4629 = vpack.c.b16 %v4602, %v4601
    %v4630 = vpack.c.b16 %v4604, %v4603
    %v4631 = vpack.c.b16 %v4606, %v4605
    %v4632 = vpack.c.b16 %v4608, %v4607
    %v4633 = vpack.c.b16 %v4610, %v4609
    %v4634 = vpack.c.b16 %v4612, %v4611
    %v4635 = vpack.c.b16 %v4614, %v4613
    %v4636 = vpack.c.b16 %v4616, %v4615
    %v4637 = vpack.c.b16 %v4618, %v4617
    %v4638 = vpack.c.b16 %v4620, %v4619
    %v4639 = vpack.c.b16 %v4622, %v4621
    %v4640 = vpack.c.b16 %v4624, %v4623
    %4657 = vmatprep.subr.bf16.mxu0 0
    %4658 = vmatpush1.bf16.msra.mxu0 %v4625
    %4659 = vmatprep.subr.bf16.mxu0 0
    %4660 = vmatpush1.bf16.msra.mxu0 %v4626
    %4661 = vmatprep.subr.bf16.mxu0 0
    %4662 = vmatpush1.bf16.msra.mxu0 %v4627
    %4663 = vmatprep.subr.bf16.mxu0 0
    %4664 = vmatpush1.bf16.msra.mxu0 %v4628
    %4665 = vmatprep.subr.bf16.mxu0 0
    %4666 = vmatpush1.bf16.msra.mxu0 %v4629
    %4667 = vmatprep.subr.bf16.mxu0 0
    %4668 = vmatpush1.bf16.msra.mxu0 %v4630
    %4669 = vmatprep.subr.bf16.mxu0 0
    %4670 = vmatpush1.bf16.msra.mxu0 %v4631
    %4671 = vmatprep.subr.bf16.mxu0 0
    %4672 = vmatpush1.bf16.msra.mxu0 %v4632
    %4673 = vmatprep.subr.bf16.mxu0 0
    %4674 = vmatpush1.bf16.msra.mxu0 %v4633
    %4675 = vmatprep.subr.bf16.mxu0 0
    %4676 = vmatpush1.bf16.msra.mxu0 %v4634
    %4677 = vmatprep.subr.bf16.mxu0 0
    %4678 = vmatpush1.bf16.msra.mxu0 %v4635
    %4679 = vmatprep.subr.bf16.mxu0 0
    %4680 = vmatpush1.bf16.msra.mxu0 %v4636
    %4681 = vmatprep.subr.bf16.mxu0 0
    %4682 = vmatpush1.bf16.msra.mxu0 %v4637
    %4683 = vmatprep.subr.bf16.mxu0 0
    %4684 = vmatpush1.bf16.msra.mxu0 %v4638
    %4685 = vmatprep.subr.bf16.mxu0 0
    %4686 = vmatpush1.bf16.msra.mxu0 %v4639
    %4687 = vmatprep.subr.bf16.mxu0 0
    %4688 = vmatpush1.bf16.msra.mxu0 %v4640
    %4689 = vmatprep.mubr.bf16.mxu0 %v4521
    %4690 = vmatmul.mubr.bf16.gmra.mrb[0].mxu0 %v4520
    %v4691 = vpop.f32.mrb[0].mxu0
    %v4692 = vadd.f32 %v4559, %v4691
    %v4693 = vpop.f32.mrb[0].mxu0
    %v4694 = vpop.f32.mrb[0].mxu0
    %v4695 = vadd.f32 %v4559, %v4694
    %v4696 = vpop.f32.mrb[0].mxu0
    %4697 = vdwg.mxu0
    %4698 = vst [vmem:[#allocation23] sm:$0xff] %v4692
    %4699 = vst [vmem:[#allocation23 + $0x8] sm:$0xff] %v4695
    // Predicated region
    $region150: #{tpu_custom_call.1} parent=1 // pred_check
      _
    $region151: #{tpu_custom_call.1} parent=1 // pred_check_branch
      %4701 = sbr.rel (0) target = $region153
    $region152: #{tpu_custom_call.1} parent=1 // pred_region
      %s4703 = ssub.s32 256, 256
      %4704 = vsyncadd [#allocation4], %s4703
      %s4705 = sshll.u32 [#allocation23], 4
      %s4706 = int_to_ptr.vmem [resolvable:$true] %s4705
      %4711 = dma.vmem_to_hbm [thread:$0]  %s4706, 256, %s24, [#allocation4], 128, 128, 8
    $region153: #{tpu_custom_call.1} parent=1 // pred_fallthru
      _
    // Predicated region
    $region154: #{tpu_custom_call.1} parent=1 // pred_check
      _
    $region155: #{tpu_custom_call.1} parent=1 // pred_check_branch
      %4713 = sbr.rel (0) target = $region157
    $region156: #{tpu_custom_call.1} parent=1 // pred_region
      %4714 = dma.done [#allocation4], 256
    $region157: #{tpu_custom_call.1} parent=1 // pred_fallthru
      _
    %4715 = vsyncpa [#allocation3], 1
    %4716 = vsyncpa [#allocation6], 1
    %4717 = vsyncpa [#allocation9], 1
    %4718 = vsyncpa [#allocation12], 1
    %4719 = vsyncpa [#allocation15], 1
    %4720 = vsyncpa [#allocation18], 1
    %4721 = vsyncpa [#allocation21], 1
    %4722 = vsyncpa [#allocation4], 1

</llo_original>
